<compile_context>
chip_gen: v6e
topology: v6e:2x2x1
jax: 0.10.0
libtpu: 0.0.40
codegen_flags: <defaults>
</compile_context>

<pallas_src>
import functools

import numpy as np
import jax
import jax.numpy as jnp
from jax.experimental import pallas as pl
from jax.experimental.pallas import tpu as pltpu  # noqa: F401  (TPU backend)


def _round_up(n, m):
    return ((n + m - 1) // m) * m


# ----------------------------------------------------------------------------
# Pallas kernels
# ----------------------------------------------------------------------------
def _conv_pool_kernel(p_ref, w_ref, b_ref, o_ref, *, mp):
    """Fused conv-as-matmul + bias + ReLU + 2x2 max-pool.

    p_ref: (4*mp, Kp)  im2col patches, 4 row-blocks = the 4 pool phases
                       (di, dj) in {0,1}^2; row r inside a block corresponds
                       to pooled output position (b, ph, pw).
    w_ref: (Kp, 128)   weight matrix, zero-padded to 128 output lanes.
    b_ref: (1, 128)    bias, zero-padded.
    o_ref: (mp, 128)   pooled + ReLU'd output (lane-dense store).
    """
    w = w_ref[...]
    b = b_ref[...]
    acc = jnp.maximum(
        jnp.dot(p_ref[0:mp, :], w, preferred_element_type=jnp.float32) + b, 0.0)
    for ph in range(1, 4):
        y = jnp.maximum(
            jnp.dot(p_ref[ph * mp:(ph + 1) * mp, :], w,
                    preferred_element_type=jnp.float32) + b, 0.0)
        acc = jnp.maximum(acc, y)
    o_ref[...] = acc.astype(o_ref.dtype)


def _fc_chain_kernel(x_ref, w1_ref, b1_ref, w2_ref, b2_ref, w3_ref, b3_ref,
                     o_ref):
    """fc1 -> fc2 -> fc3 fused; (Bp x 128) intermediates never leave VMEM."""
    h = jnp.dot(x_ref[...], w1_ref[...],
                preferred_element_type=jnp.float32) + b1_ref[...]
    h = jnp.dot(h, w2_ref[...], preferred_element_type=jnp.float32) + b2_ref[...]
    h = jnp.dot(h, w3_ref[...], preferred_element_type=jnp.float32) + b3_ref[...]
    o_ref[...] = h.astype(o_ref.dtype)


def _full_spec(shape):
    return pl.BlockSpec(shape, lambda: (0,) * len(shape))


def conv_pool(patches, w, b, mp):
    fourmp, kp = patches.shape
    ocp = w.shape[1]
    return pl.pallas_call(
        functools.partial(_conv_pool_kernel, mp=mp),
        out_shape=jax.ShapeDtypeStruct((mp, ocp), jnp.float32),
        in_specs=[_full_spec((fourmp, kp)),
                  _full_spec((kp, ocp)),
                  _full_spec((1, ocp))],
        out_specs=_full_spec((mp, ocp)),
    )(patches, w, b)


def fc_chain(x, w1, b1, w2, b2, w3, b3):
    bp, _ = x.shape
    n = w3.shape[1]
    args = (x, w1, b1, w2, b2, w3, b3)
    return pl.pallas_call(
        _fc_chain_kernel,
        out_shape=jax.ShapeDtypeStruct((bp, n), jnp.float32),
        in_specs=[_full_spec(a.shape) for a in args],
        out_specs=_full_spec((bp, n)),
    )(*args)


# ----------------------------------------------------------------------------
# im2col grouped by 2x2-pool phase (XLA glue, tiny tensors)
# ----------------------------------------------------------------------------
def im2col_pool_phases(x, kh, kw, k_pad):
    """x: [B,H,W,C] -> patches [4*Mp, k_pad], grouped by pool phase.

    Row r of phase block (di, dj) is the 5x5 patch for conv output
    (b, 2*ph+di, 2*pw+dj) with r = b*OHp*OWp + ph*OWp + pw.  Patch column
    order is (ki, kj, c).  Rows padded to Mp (mult. of 8), cols to k_pad,
    with zeros (matching zero-padded weight rows).
    """
    B, H, W, C = x.shape
    OH, OW = H - kh + 1, W - kw + 1
    OHp, OWp = OH // 2, OW // 2
    cols = []
    for i in range(kh):
        for j in range(kw):
            cols.append(x[:, i:i + OH, j:j + OW, :])
    K = kh * kw * C
    p = jnp.stack(cols, axis=3).reshape(B, OH, OW, K)
    p = p.reshape(B, OHp, 2, OWp, 2, K).transpose(2, 4, 0, 1, 3, 5)
    M = B * OHp * OWp
    Mp = _round_up(M, 8)
    p = p.reshape(4, M, K)
    p = jnp.pad(p, ((0, 0), (0, Mp - M), (0, k_pad - K)))
    return p.reshape(4 * Mp, k_pad), M, Mp, OHp, OWp


# ----------------------------------------------------------------------------
# Parameter init (PyTorch-style uniform(-1/sqrt(fan_in), +)) and one-time prep
# ----------------------------------------------------------------------------
def _uniform(key, shape, fan_in):
    bound = 1.0 / jnp.sqrt(jnp.array(fan_in, jnp.float32))
    return jax.random.uniform(key, shape, jnp.float32, -bound, bound)


def init_params(key):
    ks = jax.random.split(key, 10)
    p = {}
    p["conv1_w"] = _uniform(ks[0], (6, 3, 5, 5), 3 * 5 * 5)
    p["conv1_b"] = _uniform(ks[1], (6,), 3 * 5 * 5)
    p["conv2_w"] = _uniform(ks[2], (16, 6, 5, 5), 6 * 5 * 5)
    p["conv2_b"] = _uniform(ks[3], (16,), 6 * 5 * 5)
    p["fc1_w"] = _uniform(ks[4], (400, 120), 400)
    p["fc1_b"] = _uniform(ks[5], (120,), 400)
    p["fc2_w"] = _uniform(ks[6], (120, 84), 120)
    p["fc2_b"] = _uniform(ks[7], (84,), 120)
    p["fc3_w"] = _uniform(ks[8], (84, 10), 84)
    p["fc3_b"] = _uniform(ks[9], (10,), 84)
    return p


def _pad_to(a, shape):
    return jnp.pad(a, [(0, s - d) for d, s in zip(a.shape, shape)])


def prepare_params(params):
    """One-time (outside jit) weight reshaping, permutation and zero-padding."""
    pp = {}
    # conv1: OIHW -> (ki,kj,ic,oc) matrix, pad K 75->128, OC 6->128
    w1 = jnp.transpose(params["conv1_w"], (2, 3, 1, 0)).reshape(75, 6)
    pp["c1_w"] = _pad_to(w1, (_round_up(75, 128), 128))
    pp["c1_b"] = _pad_to(params["conv1_b"].reshape(1, 6), (1, 128))
    # conv2: pad K 150->256, OC 16->128
    w2 = jnp.transpose(params["conv2_w"], (2, 3, 1, 0)).reshape(150, 16)
    pp["c2_w"] = _pad_to(w2, (_round_up(150, 128), 128))
    pp["c2_b"] = _pad_to(params["conv2_b"].reshape(1, 16), (1, 128))
    # fc1: fold the NCHW (c,h,w) flatten order into the weight rows; our
    # activation features are ordered (h,w,c) -> row permutation of fc1_w.
    perm = (np.arange(16)[None, None, :] * 25
            + np.arange(5)[:, None, None] * 5
            + np.arange(5)[None, :, None]).reshape(400)
    pp["f1_w"] = _pad_to(params["fc1_w"][perm, :], (400, 128))
    pp["f1_b"] = _pad_to(params["fc1_b"].reshape(1, 120), (1, 128))
    pp["f2_w"] = _pad_to(params["fc2_w"], (128, 128))
    pp["f2_b"] = _pad_to(params["fc2_b"].reshape(1, 84), (1, 128))
    pp["f3_w"] = _pad_to(params["fc3_w"], (128, 128))
    pp["f3_b"] = _pad_to(params["fc3_b"].reshape(1, 10), (1, 128))
    return pp


# ----------------------------------------------------------------------------
# Forward pass (mirrors Net.forward)
# ----------------------------------------------------------------------------
@jax.jit
def net_forward(prepped, x_nchw):
    x = jnp.transpose(x_nchw, (0, 2, 3, 1)).astype(jnp.float32)      # NHWC
    B = x.shape[0]

    # layer1: conv(3->6,k5) + ReLU + maxpool2, fused in one kernel
    p1, M1, Mp1, OH1, OW1 = im2col_pool_phases(x, 5, 5, _round_up(75, 128))
    y1 = conv_pool(p1, prepped["c1_w"], prepped["c1_b"], Mp1)        # [Mp1,128]
    x2 = y1[:M1, :6].reshape(B, OH1, OW1, 6)                         # [B,14,14,6]

    # layer2: conv(6->16,k5) + ReLU + maxpool2, fused in one kernel
    p2, M2, Mp2, OH2, OW2 = im2col_pool_phases(x2, 5, 5, _round_up(150, 128))
    y2 = conv_pool(p2, prepped["c2_w"], prepped["c2_b"], Mp2)        # [Mp2,128]

    # flatten (h,w,c); NCHW ordering is already folded into f1_w rows
    feats = y2[:M2, :16].reshape(B, OH2 * OW2 * 16)                  # [B,400]

    # fc1 -> fc2 -> fc3 fused (no activations, matching the reference forward)
    Bp = max(8, _round_up(B, 8))
    xf = jnp.pad(feats, ((0, Bp - B), (0, 0)))                       # rows -> 8
    out = fc_chain(xf, prepped["f1_w"], prepped["f1_b"],
                   prepped["f2_w"], prepped["f2_b"],
                   prepped["f3_w"], prepped["f3_b"])                 # [Bp,128]
    return out[:B, :10]


if __name__ == "__main__":
    key = jax.random.PRNGKey(0)
    pkey, xkey = jax.random.split(key)
    params = init_params(pkey)
    prepped = prepare_params(params)   # one-time weight reshape/permute/pad
    # CIFAR-10 geometry is required by fc1 (16*5*5): batch=2, 3x32x32 input.
    x = jax.random.normal(xkey, (2, 3, 32, 32), dtype=jnp.float32)
    out = net_forward(prepped, x)
    jax.block_until_ready(out)
    assert out.shape == (2, 10), out.shape
    print("KERNEL_OK")
</pallas_src>

<mosaic_0001>
module attributes {stable_mosaic.version = 11 : i64} {
  func.func @_conv_pool_kernel(%arg0: memref<1568x128xf32, #tpu.memory_space<vmem>>, %arg1: memref<128x128xf32, #tpu.memory_space<vmem>>, %arg2: memref<1x128xf32, #tpu.memory_space<vmem>>, %arg3: memref<392x128xf32, #tpu.memory_space<vmem>>) attributes {dimension_semantics = [], scalar_prefetch = 0 : i64, scratch_operands = 0 : i64, tpu.core_type = #tpu.core_type<tc>} {
    %c0 = arith.constant 0 : index
    %c0_0 = arith.constant 0 : index
    %0 = vector.load %arg1[%c0, %c0_0] : memref<128x128xf32, #tpu.memory_space<vmem>>, vector<128x128xf32>
    %c0_1 = arith.constant 0 : index
    %c0_2 = arith.constant 0 : index
    %1 = vector.load %arg2[%c0_1, %c0_2] : memref<1x128xf32, #tpu.memory_space<vmem>>, vector<1x128xf32>
    %c0_3 = arith.constant 0 : index
    %c0_4 = arith.constant 0 : index
    %2 = vector.load %arg0[%c0_3, %c0_4] : memref<1568x128xf32, #tpu.memory_space<vmem>>, vector<392x128xf32>
    %cst = arith.constant dense<0.000000e+00> : vector<392x128xf32>
    %3 = tpu.matmul %2, %0, %cst {dimension_numbers = #tpu.dot_dimension_numbers<[1], [0], [0], [1], [0, 0, 1, 1], [], []>} : vector<392x128xf32>, vector<128x128xf32>, vector<392x128xf32> -> vector<392x128xf32>
    %4 = vector.broadcast %1 : vector<1x128xf32> to vector<392x128xf32>
    %5 = arith.addf %3, %4 : vector<392x128xf32>
    %cst_5 = arith.constant 0.000000e+00 : f32
    %6 = vector.broadcast %cst_5 : f32 to vector<392x128xf32>
    %7 = arith.maximumf %5, %6 : vector<392x128xf32>
    %c392 = arith.constant 392 : index
    %c0_6 = arith.constant 0 : index
    %8 = vector.load %arg0[%c392, %c0_6] : memref<1568x128xf32, #tpu.memory_space<vmem>>, vector<392x128xf32>
    %cst_7 = arith.constant dense<0.000000e+00> : vector<392x128xf32>
    %9 = tpu.matmul %8, %0, %cst_7 {dimension_numbers = #tpu.dot_dimension_numbers<[1], [0], [0], [1], [0, 0, 1, 1], [], []>} : vector<392x128xf32>, vector<128x128xf32>, vector<392x128xf32> -> vector<392x128xf32>
    %10 = vector.broadcast %1 : vector<1x128xf32> to vector<392x128xf32>
    %11 = arith.addf %9, %10 : vector<392x128xf32>
    %cst_8 = arith.constant 0.000000e+00 : f32
    %12 = vector.broadcast %cst_8 : f32 to vector<392x128xf32>
    %13 = arith.maximumf %11, %12 : vector<392x128xf32>
    %14 = arith.maximumf %7, %13 : vector<392x128xf32>
    %c784 = arith.constant 784 : index
    %c0_9 = arith.constant 0 : index
    %15 = vector.load %arg0[%c784, %c0_9] : memref<1568x128xf32, #tpu.memory_space<vmem>>, vector<392x128xf32>
    %cst_10 = arith.constant dense<0.000000e+00> : vector<392x128xf32>
    %16 = tpu.matmul %15, %0, %cst_10 {dimension_numbers = #tpu.dot_dimension_numbers<[1], [0], [0], [1], [0, 0, 1, 1], [], []>} : vector<392x128xf32>, vector<128x128xf32>, vector<392x128xf32> -> vector<392x128xf32>
    %17 = vector.broadcast %1 : vector<1x128xf32> to vector<392x128xf32>
    %18 = arith.addf %16, %17 : vector<392x128xf32>
    %cst_11 = arith.constant 0.000000e+00 : f32
    %19 = vector.broadcast %cst_11 : f32 to vector<392x128xf32>
    %20 = arith.maximumf %18, %19 : vector<392x128xf32>
    %21 = arith.maximumf %14, %20 : vector<392x128xf32>
    %c1176 = arith.constant 1176 : index
    %c0_12 = arith.constant 0 : index
    %22 = vector.load %arg0[%c1176, %c0_12] : memref<1568x128xf32, #tpu.memory_space<vmem>>, vector<392x128xf32>
    %cst_13 = arith.constant dense<0.000000e+00> : vector<392x128xf32>
    %23 = tpu.matmul %22, %0, %cst_13 {dimension_numbers = #tpu.dot_dimension_numbers<[1], [0], [0], [1], [0, 0, 1, 1], [], []>} : vector<392x128xf32>, vector<128x128xf32>, vector<392x128xf32> -> vector<392x128xf32>
    %24 = vector.broadcast %1 : vector<1x128xf32> to vector<392x128xf32>
    %25 = arith.addf %23, %24 : vector<392x128xf32>
    %cst_14 = arith.constant 0.000000e+00 : f32
    %26 = vector.broadcast %cst_14 : f32 to vector<392x128xf32>
    %27 = arith.maximumf %25, %26 : vector<392x128xf32>
    %28 = arith.maximumf %21, %27 : vector<392x128xf32>
    %c0_15 = arith.constant 0 : index
    %c0_16 = arith.constant 0 : index
    %29 = vector.load %arg3[%c0_15, %c0_16] : memref<392x128xf32, #tpu.memory_space<vmem>>, vector<392x128xf32>
    tpu.vector_store %arg3[%c0_15, %c0_16], %28 {strides = array<i32>} : memref<392x128xf32, #tpu.memory_space<vmem>>, vector<392x128xf32>,
    return
  }
}

module attributes {stable_mosaic.version = 11 : i64} {
  func.func @_conv_pool_kernel(%arg0: memref<224x256xf32, #tpu.memory_space<vmem>>, %arg1: memref<256x128xf32, #tpu.memory_space<vmem>>, %arg2: memref<1x128xf32, #tpu.memory_space<vmem>>, %arg3: memref<56x128xf32, #tpu.memory_space<vmem>>) attributes {dimension_semantics = [], scalar_prefetch = 0 : i64, scratch_operands = 0 : i64, tpu.core_type = #tpu.core_type<tc>} {
    %c0 = arith.constant 0 : index
    %c0_0 = arith.constant 0 : index
    %0 = vector.load %arg1[%c0, %c0_0] : memref<256x128xf32, #tpu.memory_space<vmem>>, vector<256x128xf32>
    %c0_1 = arith.constant 0 : index
    %c0_2 = arith.constant 0 : index
    %1 = vector.load %arg2[%c0_1, %c0_2] : memref<1x128xf32, #tpu.memory_space<vmem>>, vector<1x128xf32>
    %c0_3 = arith.constant 0 : index
    %c0_4 = arith.constant 0 : index
    %2 = vector.load %arg0[%c0_3, %c0_4] : memref<224x256xf32, #tpu.memory_space<vmem>>, vector<56x256xf32>
    %cst = arith.constant dense<0.000000e+00> : vector<56x128xf32>
    %3 = tpu.matmul %2, %0, %cst {dimension_numbers = #tpu.dot_dimension_numbers<[1], [0], [0], [1], [0, 0, 1, 1], [], []>} : vector<56x256xf32>, vector<256x128xf32>, vector<56x128xf32> -> vector<56x128xf32>
    %4 = vector.broadcast %1 : vector<1x128xf32> to vector<56x128xf32>
    %5 = arith.addf %3, %4 : vector<56x128xf32>
    %cst_5 = arith.constant 0.000000e+00 : f32
    %6 = vector.broadcast %cst_5 : f32 to vector<56x128xf32>
    %7 = arith.maximumf %5, %6 : vector<56x128xf32>
    %c56 = arith.constant 56 : index
    %c0_6 = arith.constant 0 : index
    %8 = vector.load %arg0[%c56, %c0_6] : memref<224x256xf32, #tpu.memory_space<vmem>>, vector<56x256xf32>
    %cst_7 = arith.constant dense<0.000000e+00> : vector<56x128xf32>
    %9 = tpu.matmul %8, %0, %cst_7 {dimension_numbers = #tpu.dot_dimension_numbers<[1], [0], [0], [1], [0, 0, 1, 1], [], []>} : vector<56x256xf32>, vector<256x128xf32>, vector<56x128xf32> -> vector<56x128xf32>
    %10 = vector.broadcast %1 : vector<1x128xf32> to vector<56x128xf32>
    %11 = arith.addf %9, %10 : vector<56x128xf32>
    %cst_8 = arith.constant 0.000000e+00 : f32
    %12 = vector.broadcast %cst_8 : f32 to vector<56x128xf32>
    %13 = arith.maximumf %11, %12 : vector<56x128xf32>
    %14 = arith.maximumf %7, %13 : vector<56x128xf32>
    %c112 = arith.constant 112 : index
    %c0_9 = arith.constant 0 : index
    %15 = vector.load %arg0[%c112, %c0_9] : memref<224x256xf32, #tpu.memory_space<vmem>>, vector<56x256xf32>
    %cst_10 = arith.constant dense<0.000000e+00> : vector<56x128xf32>
    %16 = tpu.matmul %15, %0, %cst_10 {dimension_numbers = #tpu.dot_dimension_numbers<[1], [0], [0], [1], [0, 0, 1, 1], [], []>} : vector<56x256xf32>, vector<256x128xf32>, vector<56x128xf32> -> vector<56x128xf32>
    %17 = vector.broadcast %1 : vector<1x128xf32> to vector<56x128xf32>
    %18 = arith.addf %16, %17 : vector<56x128xf32>
    %cst_11 = arith.constant 0.000000e+00 : f32
    %19 = vector.broadcast %cst_11 : f32 to vector<56x128xf32>
    %20 = arith.maximumf %18, %19 : vector<56x128xf32>
    %21 = arith.maximumf %14, %20 : vector<56x128xf32>
    %c168 = arith.constant 168 : index
    %c0_12 = arith.constant 0 : index
    %22 = vector.load %arg0[%c168, %c0_12] : memref<224x256xf32, #tpu.memory_space<vmem>>, vector<56x256xf32>
    %cst_13 = arith.constant dense<0.000000e+00> : vector<56x128xf32>
    %23 = tpu.matmul %22, %0, %cst_13 {dimension_numbers = #tpu.dot_dimension_numbers<[1], [0], [0], [1], [0, 0, 1, 1], [], []>} : vector<56x256xf32>, vector<256x128xf32>, vector<56x128xf32> -> vector<56x128xf32>
    %24 = vector.broadcast %1 : vector<1x128xf32> to vector<56x128xf32>
    %25 = arith.addf %23, %24 : vector<56x128xf32>
    %cst_14 = arith.constant 0.000000e+00 : f32
    %26 = vector.broadcast %cst_14 : f32 to vector<56x128xf32>
    %27 = arith.maximumf %25, %26 : vector<56x128xf32>
    %28 = arith.maximumf %21, %27 : vector<56x128xf32>
    %c0_15 = arith.constant 0 : index
    %c0_16 = arith.constant 0 : index
    %29 = vector.load %arg3[%c0_15, %c0_16] : memref<56x128xf32, #tpu.memory_space<vmem>>, vector<56x128xf32>
    tpu.vector_store %arg3[%c0_15, %c0_16], %28 {strides = array<i32>} : memref<56x128xf32, #tpu.memory_space<vmem>>, vector<56x128xf32>,
    return
  }
}

module attributes {stable_mosaic.version = 11 : i64} {
  func.func @_fc_chain_kernel(%arg0: memref<8x400xf32, #tpu.memory_space<vmem>>, %arg1: memref<400x128xf32, #tpu.memory_space<vmem>>, %arg2: memref<1x128xf32, #tpu.memory_space<vmem>>, %arg3: memref<128x128xf32, #tpu.memory_space<vmem>>, %arg4: memref<1x128xf32, #tpu.memory_space<vmem>>, %arg5: memref<128x128xf32, #tpu.memory_space<vmem>>, %arg6: memref<1x128xf32, #tpu.memory_space<vmem>>, %arg7: memref<8x128xf32, #tpu.memory_space<vmem>>) attributes {dimension_semantics = [], scalar_prefetch = 0 : i64, scratch_operands = 0 : i64, tpu.core_type = #tpu.core_type<tc>} {
    %c0 = arith.constant 0 : index
    %c0_0 = arith.constant 0 : index
    %0 = vector.load %arg0[%c0, %c0_0] : memref<8x400xf32, #tpu.memory_space<vmem>>, vector<8x400xf32>
    %c0_1 = arith.constant 0 : index
    %c0_2 = arith.constant 0 : index
    %1 = vector.load %arg1[%c0_1, %c0_2] : memref<400x128xf32, #tpu.memory_space<vmem>>, vector<400x128xf32>
    %cst = arith.constant dense<0.000000e+00> : vector<8x128xf32>
    %2 = tpu.matmul %0, %1, %cst {dimension_numbers = #tpu.dot_dimension_numbers<[1], [0], [0], [1], [0, 0, 1, 1], [], []>} : vector<8x400xf32>, vector<400x128xf32>, vector<8x128xf32> -> vector<8x128xf32>
    %c0_3 = arith.constant 0 : index
    %c0_4 = arith.constant 0 : index
    %3 = vector.load %arg2[%c0_3, %c0_4] : memref<1x128xf32, #tpu.memory_space<vmem>>, vector<1x128xf32>
    %4 = vector.broadcast %3 : vector<1x128xf32> to vector<8x128xf32>
    %5 = arith.addf %2, %4 : vector<8x128xf32>
    %c0_5 = arith.constant 0 : index
    %c0_6 = arith.constant 0 : index
    %6 = vector.load %arg3[%c0_5, %c0_6] : memref<128x128xf32, #tpu.memory_space<vmem>>, vector<128x128xf32>
    %cst_7 = arith.constant dense<0.000000e+00> : vector<8x128xf32>
    %7 = tpu.matmul %5, %6, %cst_7 {dimension_numbers = #tpu.dot_dimension_numbers<[1], [0], [0], [1], [0, 0, 1, 1], [], []>} : vector<8x128xf32>, vector<128x128xf32>, vector<8x128xf32> -> vector<8x128xf32>
    %c0_8 = arith.constant 0 : index
    %c0_9 = arith.constant 0 : index
    %8 = vector.load %arg4[%c0_8, %c0_9] : memref<1x128xf32, #tpu.memory_space<vmem>>, vector<1x128xf32>
    %9 = vector.broadcast %8 : vector<1x128xf32> to vector<8x128xf32>
    %10 = arith.addf %7, %9 : vector<8x128xf32>
    %c0_10 = arith.constant 0 : index
    %c0_11 = arith.constant 0 : index
    %11 = vector.load %arg5[%c0_10, %c0_11] : memref<128x128xf32, #tpu.memory_space<vmem>>, vector<128x128xf32>
    %cst_12 = arith.constant dense<0.000000e+00> : vector<8x128xf32>
    %12 = tpu.matmul %10, %11, %cst_12 {dimension_numbers = #tpu.dot_dimension_numbers<[1], [0], [0], [1], [0, 0, 1, 1], [], []>} : vector<8x128xf32>, vector<128x128xf32>, vector<8x128xf32> -> vector<8x128xf32>
    %c0_13 = arith.constant 0 : index
    %c0_14 = arith.constant 0 : index
    %13 = vector.load %arg6[%c0_13, %c0_14] : memref<1x128xf32, #tpu.memory_space<vmem>>, vector<1x128xf32>
    %14 = vector.broadcast %13 : vector<1x128xf32> to vector<8x128xf32>
    %15 = arith.addf %12, %14 : vector<8x128xf32>
    %c0_15 = arith.constant 0 : index
    %c0_16 = arith.constant 0 : index
    %16 = vector.load %arg7[%c0_15, %c0_16] : memref<8x128xf32, #tpu.memory_space<vmem>>, vector<8x128xf32>
    tpu.vector_store %arg7[%c0_15, %c0_16], %15 {strides = array<i32>} : memref<8x128xf32, #tpu.memory_space<vmem>>, vector<8x128xf32>,
    return
  }
}

</mosaic_0001>

<llo_original>
// kernel: net_forward.3
$region0: #{net_forward.3}
  #allocation0 [shape = 'u32[]', space=smem, size = 0x4, offset = 0x4, fixed_abs, tag = 'smem constant byte address 0x4 - core index']
  #allocation1 [shape = 'u32[144,128]{1,0:T(1,128)}', space=vmem, size = 0x12000, scoped, tag = 'internal scratch']
  %s0 = inlined_call_operand.vmem [shape: f32[1568,128], index: 0, kind: input, shape index: {}]
  %s1 = inlined_call_operand.vmem [shape: f32[128,128], index: 1, kind: input, shape index: {}]
  %s2 = inlined_call_operand.vmem [shape: f32[1,128], index: 2, kind: input, shape index: {}]
  %s3 = inlined_call_operand.vmem [shape: f32[392,128], index: 3, kind: output, shape index: {}]
  %s4 = sld [smem:[#allocation0]]
  $region22: #{net_forward.3} parent=0
    _
  %s6 = ssub.s32 1, %s4
  %s7 = scalar_select 0, %s6, %s4
  // Predicated region
  $region2: #{net_forward.3} parent=0 // pred_check
    _
  $region3: #{net_forward.3} parent=0 // pred_check_branch
    %9 = sbr.rel (0) target = $region5
  $region4: #{net_forward.3} parent=0 // pred_region
    _
  $region5: #{net_forward.3} parent=0 // pred_fallthru
    _
  // Predicated region
  $region6: #{net_forward.3} parent=0 // pred_check
    _
  $region7: #{net_forward.3} parent=0 // pred_check_branch
    %11 = sbr.rel (0) target = $region9
  $region8: #{net_forward.3} parent=0 // pred_region
    _
  $region9: #{net_forward.3} parent=0 // pred_fallthru
    _
  // Predicated region
  $region10: #{net_forward.3} parent=0 // pred_check
    _
  $region11: #{net_forward.3} parent=0 // pred_check_branch
    %13 = sbr.rel (0) target = $region13
  $region12: #{net_forward.3} parent=0 // pred_region
    _
  $region13: #{net_forward.3} parent=0 // pred_fallthru
    _
  %v14 = vld [vmem:[%s1] sm:$0xff]
  %v15 = vld [vmem:[%s1 + $0x8] sm:$0xff]
  %v16 = vld [vmem:[%s1 + $0x10] sm:$0xff]
  %v17 = vld [vmem:[%s1 + $0x18] sm:$0xff]
  %v18 = vld [vmem:[%s1 + $0x20] sm:$0xff]
  %v19 = vld [vmem:[%s1 + $0x28] sm:$0xff]
  %v20 = vld [vmem:[%s1 + $0x30] sm:$0xff]
  %v21 = vld [vmem:[%s1 + $0x38] sm:$0xff]
  %v22 = vld [vmem:[%s1 + $0x40] sm:$0xff]
  %v23 = vld [vmem:[%s1 + $0x48] sm:$0xff]
  %v24 = vld [vmem:[%s1 + $0x50] sm:$0xff]
  %v25 = vld [vmem:[%s1 + $0x58] sm:$0xff]
  %v26 = vld [vmem:[%s1 + $0x60] sm:$0xff]
  %v27 = vld [vmem:[%s1 + $0x68] sm:$0xff]
  %v28 = vld [vmem:[%s1 + $0x70] sm:$0xff]
  %v29 = vld [vmem:[%s1 + $0x78] sm:$0xff]
  %v30 = vld [vmem:[%s2] sm:$0x1]
  %v31 = vld [vmem:[%s0] sm:$0xff]
  %v32 = vld [vmem:[%s0 + $0x8] sm:$0xff]
  %v33 = vld [vmem:[%s0 + $0x10] sm:$0xff]
  %v34 = vld [vmem:[%s0 + $0x18] sm:$0xff]
  %v35 = vld [vmem:[%s0 + $0x20] sm:$0xff]
  %v36 = vld [vmem:[%s0 + $0x28] sm:$0xff]
  %v37 = vld [vmem:[%s0 + $0x30] sm:$0xff]
  %v38 = vld [vmem:[%s0 + $0x38] sm:$0xff]
  %v39 = vld [vmem:[%s0 + $0x40] sm:$0xff]
  %v40 = vld [vmem:[%s0 + $0x48] sm:$0xff]
  %v41 = vld [vmem:[%s0 + $0x50] sm:$0xff]
  %v42 = vld [vmem:[%s0 + $0x58] sm:$0xff]
  %v43 = vld [vmem:[%s0 + $0x60] sm:$0xff]
  %v44 = vld [vmem:[%s0 + $0x68] sm:$0xff]
  %v45 = vld [vmem:[%s0 + $0x70] sm:$0xff]
  %v46 = vld [vmem:[%s0 + $0x78] sm:$0xff]
  %v47 = vld [vmem:[%s0 + $0x80] sm:$0xff]
  %v48 = vld [vmem:[%s0 + $0x88] sm:$0xff]
  %v49 = vld [vmem:[%s0 + $0x90] sm:$0xff]
  %v50 = vld [vmem:[%s0 + $0x98] sm:$0xff]
  %v51 = vld [vmem:[%s0 + $0xa0] sm:$0xff]
  %v52 = vld [vmem:[%s0 + $0xa8] sm:$0xff]
  %v53 = vld [vmem:[%s0 + $0xb0] sm:$0xff]
  %v54 = vld [vmem:[%s0 + $0xb8] sm:$0xff]
  %v55 = vld [vmem:[%s0 + $0xc0] sm:$0xff]
  %v56 = vld [vmem:[%s0 + $0xc8] sm:$0xff]
  %v57 = vld [vmem:[%s0 + $0xd0] sm:$0xff]
  %v58 = vld [vmem:[%s0 + $0xd8] sm:$0xff]
  %v59 = vld [vmem:[%s0 + $0xe0] sm:$0xff]
  %v60 = vld [vmem:[%s0 + $0xe8] sm:$0xff]
  %v61 = vld [vmem:[%s0 + $0xf0] sm:$0xff]
  %v62 = vld [vmem:[%s0 + $0xf8] sm:$0xff]
  %v63 = vld [vmem:[%s0 + $0x100] sm:$0xff]
  %v64 = vld [vmem:[%s0 + $0x108] sm:$0xff]
  %v65 = vld [vmem:[%s0 + $0x110] sm:$0xff]
  %v66 = vld [vmem:[%s0 + $0x118] sm:$0xff]
  %v67 = vld [vmem:[%s0 + $0x120] sm:$0xff]
  %v68 = vld [vmem:[%s0 + $0x128] sm:$0xff]
  %v69 = vld [vmem:[%s0 + $0x130] sm:$0xff]
  %v70 = vld [vmem:[%s0 + $0x138] sm:$0xff]
  %v71 = vld [vmem:[%s0 + $0x140] sm:$0xff]
  %v72 = vld [vmem:[%s0 + $0x148] sm:$0xff]
  %v73 = vld [vmem:[%s0 + $0x150] sm:$0xff]
  %v74 = vld [vmem:[%s0 + $0x158] sm:$0xff]
  %v75 = vld [vmem:[%s0 + $0x160] sm:$0xff]
  %v76 = vld [vmem:[%s0 + $0x168] sm:$0xff]
  %v77 = vld [vmem:[%s0 + $0x170] sm:$0xff]
  %v78 = vld [vmem:[%s0 + $0x178] sm:$0xff]
  %v79 = vld [vmem:[%s0 + $0x180] sm:$0xff]
  %v81 = vlaneseq
  %v82 = vshrl.u32 %v81, 7
  %v83 = vsub.s32 0, %v82
  %v84 = vrot.slane %v30, %v83
  %86 = vmatprep.subr.mxu0 0.0
  %87 = vmatpush1.msra.mxu0 %v29
  %88 = vmatprep.subr.mxu0 0.0
  %89 = vmatpush1.msra.mxu0 %v28
  %90 = vmatprep.subr.mxu0 0.0
  %91 = vmatpush1.msra.mxu0 %v27
  %92 = vmatprep.subr.mxu0 0.0
  %93 = vmatpush1.msra.mxu0 %v26
  %94 = vmatprep.subr.mxu0 0.0
  %95 = vmatpush1.msra.mxu0 %v25
  %96 = vmatprep.subr.mxu0 0.0
  %97 = vmatpush1.msra.mxu0 %v24
  %98 = vmatprep.subr.mxu0 0.0
  %99 = vmatpush1.msra.mxu0 %v23
  %100 = vmatprep.subr.mxu0 0.0
  %101 = vmatpush1.msra.mxu0 %v22
  %102 = vmatprep.subr.mxu0 0.0
  %103 = vmatpush1.msra.mxu0 %v21
  %104 = vmatprep.subr.mxu0 0.0
  %105 = vmatpush1.msra.mxu0 %v20
  %106 = vmatprep.subr.mxu0 0.0
  %107 = vmatpush1.msra.mxu0 %v19
  %108 = vmatprep.subr.mxu0 0.0
  %109 = vmatpush1.msra.mxu0 %v18
  %110 = vmatprep.subr.mxu0 0.0
  %111 = vmatpush1.msra.mxu0 %v17
  %112 = vmatprep.subr.mxu0 0.0
  %113 = vmatpush1.msra.mxu0 %v16
  %114 = vmatprep.subr.mxu0 0.0
  %115 = vmatpush1.msra.mxu0 %v15
  %116 = vmatprep.subr.mxu0 0.0
  %117 = vmatpush1.msra.mxu0 %v14
  %118 = vmatprep.subr.mxu0 0.0
  %119 = vmatpush2.msra.mxu0 0.0
  %120 = vmatprep.subr.mxu0 0.0
  %121 = vmatpush2.msra.mxu0 0.0
  %122 = vmatprep.subr.mxu0 0.0
  %123 = vmatpush2.msra.mxu0 0.0
  %124 = vmatprep.subr.mxu0 0.0
  %125 = vmatpush2.msra.mxu0 0.0
  %126 = vmatprep.subr.mxu0 0.0
  %127 = vmatpush2.msra.mxu0 0.0
  %128 = vmatprep.subr.mxu0 0.0
  %129 = vmatpush2.msra.mxu0 0.0
  %130 = vmatprep.subr.mxu0 0.0
  %131 = vmatpush2.msra.mxu0 0.0
  %132 = vmatprep.subr.mxu0 0.0
  %133 = vmatpush2.msra.mxu0 0.0
  %134 = vmatprep.subr.mxu0 0.0
  %135 = vmatpush2.msra.mxu0 0.0
  %136 = vmatprep.subr.mxu0 0.0
  %137 = vmatpush2.msra.mxu0 0.0
  %138 = vmatprep.subr.mxu0 0.0
  %139 = vmatpush2.msra.mxu0 0.0
  %140 = vmatprep.subr.mxu0 0.0
  %141 = vmatpush2.msra.mxu0 0.0
  %142 = vmatprep.subr.mxu0 0.0
  %143 = vmatpush2.msra.mxu0 0.0
  %144 = vmatprep.subr.mxu0 0.0
  %145 = vmatpush2.msra.mxu0 0.0
  %146 = vmatprep.subr.mxu0 0.0
  %147 = vmatpush2.msra.mxu0 0.0
  %148 = vmatprep.subr.mxu0 0.0
  %149 = vmatpush2.msra.mxu0 0.0
  %150 = vmatprep.mubr.f32.mxu0 0.0
  %151 = vmatmul.mubr.f32.gmra.mxu0 %v31
  %v152 = vpop.f32.mrf.mxu0
  %v153 = vadd.f32 %v84, %v152
  %v154 = vpop.f32.mrf.mxu0
  %155 = vmatprep.mubr.f32.mxu0 0.0
  %156 = vmatmul.mubr.f32.gmra.mxu0 %v32
  %v157 = vpop.f32.mrf.mxu0
  %v158 = vadd.f32 %v84, %v157
  %v159 = vpop.f32.mrf.mxu0
  %160 = vmatprep.mubr.f32.mxu0 0.0
  %161 = vmatmul.mubr.f32.gmra.mxu0 %v33
  %v162 = vpop.f32.mrf.mxu0
  %v163 = vadd.f32 %v84, %v162
  %v164 = vpop.f32.mrf.mxu0
  %165 = vmatprep.mubr.f32.mxu0 0.0
  %166 = vmatmul.mubr.f32.gmra.mxu0 %v34
  %v167 = vpop.f32.mrf.mxu0
  %v168 = vadd.f32 %v84, %v167
  %v169 = vpop.f32.mrf.mxu0
  %170 = vmatprep.mubr.f32.mxu0 0.0
  %171 = vmatmul.mubr.f32.gmra.mxu0 %v35
  %v172 = vpop.f32.mrf.mxu0
  %v173 = vadd.f32 %v84, %v172
  %v174 = vpop.f32.mrf.mxu0
  %175 = vmatprep.mubr.f32.mxu0 0.0
  %176 = vmatmul.mubr.f32.gmra.mxu0 %v36
  %v177 = vpop.f32.mrf.mxu0
  %v178 = vadd.f32 %v84, %v177
  %v179 = vpop.f32.mrf.mxu0
  %180 = vmatprep.mubr.f32.mxu0 0.0
  %181 = vmatmul.mubr.f32.gmra.mxu0 %v37
  %v182 = vpop.f32.mrf.mxu0
  %v183 = vadd.f32 %v84, %v182
  %v184 = vpop.f32.mrf.mxu0
  %185 = vmatprep.mubr.f32.mxu0 0.0
  %186 = vmatmul.mubr.f32.gmra.mxu0 %v38
  %v187 = vpop.f32.mrf.mxu0
  %v188 = vadd.f32 %v84, %v187
  %v189 = vpop.f32.mrf.mxu0
  %190 = vmatprep.mubr.f32.mxu0 0.0
  %191 = vmatmul.mubr.f32.gmra.mxu0 %v39
  %v192 = vpop.f32.mrf.mxu0
  %v193 = vadd.f32 %v84, %v192
  %v194 = vpop.f32.mrf.mxu0
  %195 = vmatprep.mubr.f32.mxu0 0.0
  %196 = vmatmul.mubr.f32.gmra.mxu0 %v40
  %v197 = vpop.f32.mrf.mxu0
  %v198 = vadd.f32 %v84, %v197
  %v199 = vpop.f32.mrf.mxu0
  %200 = vmatprep.mubr.f32.mxu0 0.0
  %201 = vmatmul.mubr.f32.gmra.mxu0 %v41
  %v202 = vpop.f32.mrf.mxu0
  %v203 = vadd.f32 %v84, %v202
  %v204 = vpop.f32.mrf.mxu0
  %205 = vmatprep.mubr.f32.mxu0 0.0
  %206 = vmatmul.mubr.f32.gmra.mxu0 %v42
  %v207 = vpop.f32.mrf.mxu0
  %v208 = vadd.f32 %v84, %v207
  %v209 = vpop.f32.mrf.mxu0
  %210 = vmatprep.mubr.f32.mxu0 0.0
  %211 = vmatmul.mubr.f32.gmra.mxu0 %v43
  %v212 = vpop.f32.mrf.mxu0
  %v213 = vadd.f32 %v84, %v212
  %v214 = vpop.f32.mrf.mxu0
  %215 = vmatprep.mubr.f32.mxu0 0.0
  %216 = vmatmul.mubr.f32.gmra.mxu0 %v44
  %v217 = vpop.f32.mrf.mxu0
  %v218 = vadd.f32 %v84, %v217
  %v219 = vpop.f32.mrf.mxu0
  %220 = vmatprep.mubr.f32.mxu0 0.0
  %221 = vmatmul.mubr.f32.gmra.mxu0 %v45
  %v222 = vpop.f32.mrf.mxu0
  %v223 = vadd.f32 %v84, %v222
  %v224 = vpop.f32.mrf.mxu0
  %225 = vmatprep.mubr.f32.mxu0 0.0
  %226 = vmatmul.mubr.f32.gmra.mxu0 %v46
  %v227 = vpop.f32.mrf.mxu0
  %v228 = vadd.f32 %v84, %v227
  %v229 = vpop.f32.mrf.mxu0
  %230 = vmatprep.mubr.f32.mxu0 0.0
  %231 = vmatmul.mubr.f32.gmra.mxu0 %v47
  %v232 = vpop.f32.mrf.mxu0
  %v233 = vadd.f32 %v84, %v232
  %v234 = vpop.f32.mrf.mxu0
  %235 = vmatprep.mubr.f32.mxu0 0.0
  %236 = vmatmul.mubr.f32.gmra.mxu0 %v48
  %v237 = vpop.f32.mrf.mxu0
  %v238 = vadd.f32 %v84, %v237
  %v239 = vpop.f32.mrf.mxu0
  %240 = vmatprep.mubr.f32.mxu0 0.0
  %241 = vmatmul.mubr.f32.gmra.mxu0 %v49
  %v242 = vpop.f32.mrf.mxu0
  %v243 = vadd.f32 %v84, %v242
  %v244 = vpop.f32.mrf.mxu0
  %245 = vmatprep.mubr.f32.mxu0 0.0
  %246 = vmatmul.mubr.f32.gmra.mxu0 %v50
  %v247 = vpop.f32.mrf.mxu0
  %v248 = vadd.f32 %v84, %v247
  %v249 = vpop.f32.mrf.mxu0
  %250 = vmatprep.mubr.f32.mxu0 0.0
  %251 = vmatmul.mubr.f32.gmra.mxu0 %v51
  %v252 = vpop.f32.mrf.mxu0
  %v253 = vadd.f32 %v84, %v252
  %v254 = vpop.f32.mrf.mxu0
  %255 = vmatprep.mubr.f32.mxu0 0.0
  %256 = vmatmul.mubr.f32.gmra.mxu0 %v52
  %v257 = vpop.f32.mrf.mxu0
  %v258 = vadd.f32 %v84, %v257
  %v259 = vpop.f32.mrf.mxu0
  %260 = vmatprep.mubr.f32.mxu0 0.0
  %261 = vmatmul.mubr.f32.gmra.mxu0 %v53
  %v262 = vpop.f32.mrf.mxu0
  %v263 = vadd.f32 %v84, %v262
  %v264 = vpop.f32.mrf.mxu0
  %265 = vmatprep.mubr.f32.mxu0 0.0
  %266 = vmatmul.mubr.f32.gmra.mxu0 %v54
  %v267 = vpop.f32.mrf.mxu0
  %v268 = vadd.f32 %v84, %v267
  %v269 = vpop.f32.mrf.mxu0
  %270 = vmatprep.mubr.f32.mxu0 0.0
  %271 = vmatmul.mubr.f32.gmra.mxu0 %v55
  %v272 = vpop.f32.mrf.mxu0
  %v273 = vadd.f32 %v84, %v272
  %v274 = vpop.f32.mrf.mxu0
  %275 = vmatprep.mubr.f32.mxu0 0.0
  %276 = vmatmul.mubr.f32.gmra.mxu0 %v56
  %v277 = vpop.f32.mrf.mxu0
  %v278 = vadd.f32 %v84, %v277
  %v279 = vpop.f32.mrf.mxu0
  %280 = vmatprep.mubr.f32.mxu0 0.0
  %281 = vmatmul.mubr.f32.gmra.mxu0 %v57
  %v282 = vpop.f32.mrf.mxu0
  %v283 = vadd.f32 %v84, %v282
  %v284 = vpop.f32.mrf.mxu0
  %285 = vmatprep.mubr.f32.mxu0 0.0
  %286 = vmatmul.mubr.f32.gmra.mxu0 %v58
  %v287 = vpop.f32.mrf.mxu0
  %v288 = vadd.f32 %v84, %v287
  %v289 = vpop.f32.mrf.mxu0
  %290 = vmatprep.mubr.f32.mxu0 0.0
  %291 = vmatmul.mubr.f32.gmra.mxu0 %v59
  %v292 = vpop.f32.mrf.mxu0
  %v293 = vadd.f32 %v84, %v292
  %v294 = vpop.f32.mrf.mxu0
  %295 = vmatprep.mubr.f32.mxu0 0.0
  %296 = vmatmul.mubr.f32.gmra.mxu0 %v60
  %v297 = vpop.f32.mrf.mxu0
  %v298 = vadd.f32 %v84, %v297
  %v299 = vpop.f32.mrf.mxu0
  %300 = vmatprep.mubr.f32.mxu0 0.0
  %301 = vmatmul.mubr.f32.gmra.mxu0 %v61
  %v302 = vpop.f32.mrf.mxu0
  %v303 = vadd.f32 %v84, %v302
  %v304 = vpop.f32.mrf.mxu0
  %305 = vmatprep.mubr.f32.mxu0 0.0
  %306 = vmatmul.mubr.f32.gmra.mxu0 %v62
  %v307 = vpop.f32.mrf.mxu0
  %v308 = vadd.f32 %v84, %v307
  %v309 = vpop.f32.mrf.mxu0
  %310 = vmatprep.mubr.f32.mxu0 0.0
  %311 = vmatmul.mubr.f32.gmra.mxu0 %v63
  %v312 = vpop.f32.mrf.mxu0
  %v313 = vadd.f32 %v84, %v312
  %v314 = vpop.f32.mrf.mxu0
  %315 = vmatprep.mubr.f32.mxu0 0.0
  %316 = vmatmul.mubr.f32.gmra.mxu0 %v64
  %v317 = vpop.f32.mrf.mxu0
  %v318 = vadd.f32 %v84, %v317
  %v319 = vpop.f32.mrf.mxu0
  %320 = vmatprep.mubr.f32.mxu0 0.0
  %321 = vmatmul.mubr.f32.gmra.mxu0 %v65
  %v322 = vpop.f32.mrf.mxu0
  %v323 = vadd.f32 %v84, %v322
  %v324 = vpop.f32.mrf.mxu0
  %325 = vmatprep.mubr.f32.mxu0 0.0
  %326 = vmatmul.mubr.f32.gmra.mxu0 %v66
  %v327 = vpop.f32.mrf.mxu0
  %v328 = vadd.f32 %v84, %v327
  %v329 = vpop.f32.mrf.mxu0
  %330 = vmatprep.mubr.f32.mxu0 0.0
  %331 = vmatmul.mubr.f32.gmra.mxu0 %v67
  %v332 = vpop.f32.mrf.mxu0
  %v333 = vadd.f32 %v84, %v332
  %v334 = vpop.f32.mrf.mxu0
  %335 = vmatprep.mubr.f32.mxu0 0.0
  %336 = vmatmul.mubr.f32.gmra.mxu0 %v68
  %v337 = vpop.f32.mrf.mxu0
  %v338 = vadd.f32 %v84, %v337
  %v339 = vpop.f32.mrf.mxu0
  %340 = vmatprep.mubr.f32.mxu0 0.0
  %341 = vmatmul.mubr.f32.gmra.mxu0 %v69
  %v342 = vpop.f32.mrf.mxu0
  %v343 = vadd.f32 %v84, %v342
  %v344 = vpop.f32.mrf.mxu0
  %345 = vmatprep.mubr.f32.mxu0 0.0
  %346 = vmatmul.mubr.f32.gmra.mxu0 %v70
  %v347 = vpop.f32.mrf.mxu0
  %v348 = vadd.f32 %v84, %v347
  %v349 = vpop.f32.mrf.mxu0
  %350 = vmatprep.mubr.f32.mxu0 0.0
  %351 = vmatmul.mubr.f32.gmra.mxu0 %v71
  %v352 = vpop.f32.mrf.mxu0
  %v353 = vadd.f32 %v84, %v352
  %v354 = vpop.f32.mrf.mxu0
  %355 = vmatprep.mubr.f32.mxu0 0.0
  %356 = vmatmul.mubr.f32.gmra.mxu0 %v72
  %v357 = vpop.f32.mrf.mxu0
  %v358 = vadd.f32 %v84, %v357
  %v359 = vpop.f32.mrf.mxu0
  %360 = vmatprep.mubr.f32.mxu0 0.0
  %361 = vmatmul.mubr.f32.gmra.mxu0 %v73
  %v362 = vpop.f32.mrf.mxu0
  %v363 = vadd.f32 %v84, %v362
  %v364 = vpop.f32.mrf.mxu0
  %365 = vmatprep.mubr.f32.mxu0 0.0
  %366 = vmatmul.mubr.f32.gmra.mxu0 %v74
  %v367 = vpop.f32.mrf.mxu0
  %v368 = vadd.f32 %v84, %v367
  %v369 = vpop.f32.mrf.mxu0
  %370 = vmatprep.mubr.f32.mxu0 0.0
  %371 = vmatmul.mubr.f32.gmra.mxu0 %v75
  %v372 = vpop.f32.mrf.mxu0
  %v373 = vadd.f32 %v84, %v372
  %v374 = vpop.f32.mrf.mxu0
  %375 = vmatprep.mubr.f32.mxu0 0.0
  %376 = vmatmul.mubr.f32.gmra.mxu0 %v76
  %v377 = vpop.f32.mrf.mxu0
  %v378 = vadd.f32 %v84, %v377
  %v379 = vpop.f32.mrf.mxu0
  %380 = vmatprep.mubr.f32.mxu0 0.0
  %381 = vmatmul.mubr.f32.gmra.mxu0 %v77
  %v382 = vpop.f32.mrf.mxu0
  %v383 = vadd.f32 %v84, %v382
  %v384 = vpop.f32.mrf.mxu0
  %385 = vmatprep.mubr.f32.mxu0 0.0
  %386 = vmatmul.mubr.f32.gmra.mxu0 %v78
  %v387 = vpop.f32.mrf.mxu0
  %v388 = vadd.f32 %v84, %v387
  %v389 = vpop.f32.mrf.mxu0
  %390 = vmatprep.mubr.f32.mxu0 0.0
  %391 = vmatmul.mubr.f32.gmra.mxu0 %v79
  %v392 = vpop.f32.mrf.mxu0
  %v393 = vadd.f32 %v84, %v392
  %v394 = vpop.f32.mrf.mxu0
  %395 = vdwg.mxu0
  %v396 = vmax.f32 %v153, 0.0
  %v397 = vmax.f32 %v158, 0.0
  %v398 = vmax.f32 %v163, 0.0
  %v399 = vmax.f32 %v168, 0.0
  %v400 = vmax.f32 %v173, 0.0
  %v401 = vmax.f32 %v178, 0.0
  %v402 = vmax.f32 %v183, 0.0
  %v403 = vmax.f32 %v188, 0.0
  %v404 = vmax.f32 %v193, 0.0
  %v405 = vmax.f32 %v198, 0.0
  %v406 = vmax.f32 %v203, 0.0
  %v407 = vmax.f32 %v208, 0.0
  %v408 = vmax.f32 %v213, 0.0
  %v409 = vmax.f32 %v218, 0.0
  %v410 = vmax.f32 %v223, 0.0
  %v411 = vmax.f32 %v228, 0.0
  %v412 = vmax.f32 %v233, 0.0
  %v413 = vmax.f32 %v238, 0.0
  %v414 = vmax.f32 %v243, 0.0
  %v415 = vmax.f32 %v248, 0.0
  %v416 = vmax.f32 %v253, 0.0
  %v417 = vmax.f32 %v258, 0.0
  %v418 = vmax.f32 %v263, 0.0
  %v419 = vmax.f32 %v268, 0.0
  %v420 = vmax.f32 %v273, 0.0
  %v421 = vmax.f32 %v278, 0.0
  %v422 = vmax.f32 %v283, 0.0
  %v423 = vmax.f32 %v288, 0.0
  %v424 = vmax.f32 %v293, 0.0
  %v425 = vmax.f32 %v298, 0.0
  %v426 = vmax.f32 %v303, 0.0
  %v427 = vmax.f32 %v308, 0.0
  %v428 = vmax.f32 %v313, 0.0
  %v429 = vmax.f32 %v318, 0.0
  %v430 = vmax.f32 %v323, 0.0
  %v431 = vmax.f32 %v328, 0.0
  %v432 = vmax.f32 %v333, 0.0
  %v433 = vmax.f32 %v338, 0.0
  %v434 = vmax.f32 %v343, 0.0
  %v435 = vmax.f32 %v348, 0.0
  %v436 = vmax.f32 %v353, 0.0
  %v437 = vmax.f32 %v358, 0.0
  %v438 = vmax.f32 %v363, 0.0
  %v439 = vmax.f32 %v368, 0.0
  %v440 = vmax.f32 %v373, 0.0
  %v441 = vmax.f32 %v378, 0.0
  %v442 = vmax.f32 %v383, 0.0
  %v443 = vmax.f32 %v388, 0.0
  %v444 = vmax.f32 %v393, 0.0
  %v445 = vld [vmem:[%s0 + $0x188] sm:$0xff]
  %v446 = vld [vmem:[%s0 + $0x190] sm:$0xff]
  %v447 = vld [vmem:[%s0 + $0x198] sm:$0xff]
  %v448 = vld [vmem:[%s0 + $0x1a0] sm:$0xff]
  %v449 = vld [vmem:[%s0 + $0x1a8] sm:$0xff]
  %v450 = vld [vmem:[%s0 + $0x1b0] sm:$0xff]
  %v451 = vld [vmem:[%s0 + $0x1b8] sm:$0xff]
  %v452 = vld [vmem:[%s0 + $0x1c0] sm:$0xff]
  %v453 = vld [vmem:[%s0 + $0x1c8] sm:$0xff]
  %v454 = vld [vmem:[%s0 + $0x1d0] sm:$0xff]
  %v455 = vld [vmem:[%s0 + $0x1d8] sm:$0xff]
  %v456 = vld [vmem:[%s0 + $0x1e0] sm:$0xff]
  %v457 = vld [vmem:[%s0 + $0x1e8] sm:$0xff]
  %v458 = vld [vmem:[%s0 + $0x1f0] sm:$0xff]
  %v459 = vld [vmem:[%s0 + $0x1f8] sm:$0xff]
  %v460 = vld [vmem:[%s0 + $0x200] sm:$0xff]
  %v461 = vld [vmem:[%s0 + $0x208] sm:$0xff]
  %v462 = vld [vmem:[%s0 + $0x210] sm:$0xff]
  %v463 = vld [vmem:[%s0 + $0x218] sm:$0xff]
  %v464 = vld [vmem:[%s0 + $0x220] sm:$0xff]
  %v465 = vld [vmem:[%s0 + $0x228] sm:$0xff]
  %v466 = vld [vmem:[%s0 + $0x230] sm:$0xff]
  %v467 = vld [vmem:[%s0 + $0x238] sm:$0xff]
  %v468 = vld [vmem:[%s0 + $0x240] sm:$0xff]
  %v469 = vld [vmem:[%s0 + $0x248] sm:$0xff]
  %v470 = vld [vmem:[%s0 + $0x250] sm:$0xff]
  %v471 = vld [vmem:[%s0 + $0x258] sm:$0xff]
  %v472 = vld [vmem:[%s0 + $0x260] sm:$0xff]
  %v473 = vld [vmem:[%s0 + $0x268] sm:$0xff]
  %v474 = vld [vmem:[%s0 + $0x270] sm:$0xff]
  %v475 = vld [vmem:[%s0 + $0x278] sm:$0xff]
  %v476 = vld [vmem:[%s0 + $0x280] sm:$0xff]
  %v477 = vld [vmem:[%s0 + $0x288] sm:$0xff]
  %v478 = vld [vmem:[%s0 + $0x290] sm:$0xff]
  %v479 = vld [vmem:[%s0 + $0x298] sm:$0xff]
  %v480 = vld [vmem:[%s0 + $0x2a0] sm:$0xff]
  %v481 = vld [vmem:[%s0 + $0x2a8] sm:$0xff]
  %v482 = vld [vmem:[%s0 + $0x2b0] sm:$0xff]
  %v483 = vld [vmem:[%s0 + $0x2b8] sm:$0xff]
  %v484 = vld [vmem:[%s0 + $0x2c0] sm:$0xff]
  %v485 = vld [vmem:[%s0 + $0x2c8] sm:$0xff]
  %v486 = vld [vmem:[%s0 + $0x2d0] sm:$0xff]
  %v487 = vld [vmem:[%s0 + $0x2d8] sm:$0xff]
  %v488 = vld [vmem:[%s0 + $0x2e0] sm:$0xff]
  %v489 = vld [vmem:[%s0 + $0x2e8] sm:$0xff]
  %v490 = vld [vmem:[%s0 + $0x2f0] sm:$0xff]
  %v491 = vld [vmem:[%s0 + $0x2f8] sm:$0xff]
  %v492 = vld [vmem:[%s0 + $0x300] sm:$0xff]
  %v493 = vld [vmem:[%s0 + $0x308] sm:$0xff]
  %494 = vmatprep.subr.mxu0 0.0
  %495 = vmatpush1.msra.mxu0 %v29
  %496 = vmatprep.subr.mxu0 0.0
  %497 = vmatpush1.msra.mxu0 %v28
  %498 = vmatprep.subr.mxu0 0.0
  %499 = vmatpush1.msra.mxu0 %v27
  %500 = vmatprep.subr.mxu0 0.0
  %501 = vmatpush1.msra.mxu0 %v26
  %502 = vmatprep.subr.mxu0 0.0
  %503 = vmatpush1.msra.mxu0 %v25
  %504 = vmatprep.subr.mxu0 0.0
  %505 = vmatpush1.msra.mxu0 %v24
  %506 = vmatprep.subr.mxu0 0.0
  %507 = vmatpush1.msra.mxu0 %v23
  %508 = vmatprep.subr.mxu0 0.0
  %509 = vmatpush1.msra.mxu0 %v22
  %510 = vmatprep.subr.mxu0 0.0
  %511 = vmatpush1.msra.mxu0 %v21
  %512 = vmatprep.subr.mxu0 0.0
  %513 = vmatpush1.msra.mxu0 %v20
  %514 = vmatprep.subr.mxu0 0.0
  %515 = vmatpush1.msra.mxu0 %v19
  %516 = vmatprep.subr.mxu0 0.0
  %517 = vmatpush1.msra.mxu0 %v18
  %518 = vmatprep.subr.mxu0 0.0
  %519 = vmatpush1.msra.mxu0 %v17
  %520 = vmatprep.subr.mxu0 0.0
  %521 = vmatpush1.msra.mxu0 %v16
  %522 = vmatprep.subr.mxu0 0.0
  %523 = vmatpush1.msra.mxu0 %v15
  %524 = vmatprep.subr.mxu0 0.0
  %525 = vmatpush1.msra.mxu0 %v14
  %526 = vmatprep.subr.mxu0 0.0
  %527 = vmatpush2.msra.mxu0 0.0
  %528 = vmatprep.subr.mxu0 0.0
  %529 = vmatpush2.msra.mxu0 0.0
  %530 = vmatprep.subr.mxu0 0.0
  %531 = vmatpush2.msra.mxu0 0.0
  %532 = vmatprep.subr.mxu0 0.0
  %533 = vmatpush2.msra.mxu0 0.0
  %534 = vmatprep.subr.mxu0 0.0
  %535 = vmatpush2.msra.mxu0 0.0
  %536 = vmatprep.subr.mxu0 0.0
  %537 = vmatpush2.msra.mxu0 0.0
  %538 = vmatprep.subr.mxu0 0.0
  %539 = vmatpush2.msra.mxu0 0.0
  %540 = vmatprep.subr.mxu0 0.0
  %541 = vmatpush2.msra.mxu0 0.0
  %542 = vmatprep.subr.mxu0 0.0
  %543 = vmatpush2.msra.mxu0 0.0
  %544 = vmatprep.subr.mxu0 0.0
  %545 = vmatpush2.msra.mxu0 0.0
  %546 = vmatprep.subr.mxu0 0.0
  %547 = vmatpush2.msra.mxu0 0.0
  %548 = vmatprep.subr.mxu0 0.0
  %549 = vmatpush2.msra.mxu0 0.0
  %550 = vmatprep.subr.mxu0 0.0
  %551 = vmatpush2.msra.mxu0 0.0
  %552 = vmatprep.subr.mxu0 0.0
  %553 = vmatpush2.msra.mxu0 0.0
  %554 = vmatprep.subr.mxu0 0.0
  %555 = vmatpush2.msra.mxu0 0.0
  %556 = vmatprep.subr.mxu0 0.0
  %557 = vmatpush2.msra.mxu0 0.0
  %558 = vmatprep.mubr.f32.mxu0 0.0
  %559 = vmatmul.mubr.f32.gmra.mxu0 %v445
  %v560 = vpop.f32.mrf.mxu0
  %v561 = vadd.f32 %v84, %v560
  %v562 = vpop.f32.mrf.mxu0
  %563 = vmatprep.mubr.f32.mxu0 0.0
  %564 = vmatmul.mubr.f32.gmra.mxu0 %v446
  %v565 = vpop.f32.mrf.mxu0
  %v566 = vadd.f32 %v84, %v565
  %v567 = vpop.f32.mrf.mxu0
  %568 = vmatprep.mubr.f32.mxu0 0.0
  %569 = vmatmul.mubr.f32.gmra.mxu0 %v447
  %v570 = vpop.f32.mrf.mxu0
  %v571 = vadd.f32 %v84, %v570
  %v572 = vpop.f32.mrf.mxu0
  %573 = vmatprep.mubr.f32.mxu0 0.0
  %574 = vmatmul.mubr.f32.gmra.mxu0 %v448
  %v575 = vpop.f32.mrf.mxu0
  %v576 = vadd.f32 %v84, %v575
  %v577 = vpop.f32.mrf.mxu0
  %578 = vmatprep.mubr.f32.mxu0 0.0
  %579 = vmatmul.mubr.f32.gmra.mxu0 %v449
  %v580 = vpop.f32.mrf.mxu0
  %v581 = vadd.f32 %v84, %v580
  %v582 = vpop.f32.mrf.mxu0
  %583 = vmatprep.mubr.f32.mxu0 0.0
  %584 = vmatmul.mubr.f32.gmra.mxu0 %v450
  %v585 = vpop.f32.mrf.mxu0
  %v586 = vadd.f32 %v84, %v585
  %v587 = vpop.f32.mrf.mxu0
  %588 = vmatprep.mubr.f32.mxu0 0.0
  %589 = vmatmul.mubr.f32.gmra.mxu0 %v451
  %v590 = vpop.f32.mrf.mxu0
  %v591 = vadd.f32 %v84, %v590
  %v592 = vpop.f32.mrf.mxu0
  %593 = vmatprep.mubr.f32.mxu0 0.0
  %594 = vmatmul.mubr.f32.gmra.mxu0 %v452
  %v595 = vpop.f32.mrf.mxu0
  %v596 = vadd.f32 %v84, %v595
  %v597 = vpop.f32.mrf.mxu0
  %598 = vmatprep.mubr.f32.mxu0 0.0
  %599 = vmatmul.mubr.f32.gmra.mxu0 %v453
  %v600 = vpop.f32.mrf.mxu0
  %v601 = vadd.f32 %v84, %v600
  %v602 = vpop.f32.mrf.mxu0
  %603 = vmatprep.mubr.f32.mxu0 0.0
  %604 = vmatmul.mubr.f32.gmra.mxu0 %v454
  %v605 = vpop.f32.mrf.mxu0
  %v606 = vadd.f32 %v84, %v605
  %v607 = vpop.f32.mrf.mxu0
  %608 = vmatprep.mubr.f32.mxu0 0.0
  %609 = vmatmul.mubr.f32.gmra.mxu0 %v455
  %v610 = vpop.f32.mrf.mxu0
  %v611 = vadd.f32 %v84, %v610
  %v612 = vpop.f32.mrf.mxu0
  %613 = vmatprep.mubr.f32.mxu0 0.0
  %614 = vmatmul.mubr.f32.gmra.mxu0 %v456
  %v615 = vpop.f32.mrf.mxu0
  %v616 = vadd.f32 %v84, %v615
  %v617 = vpop.f32.mrf.mxu0
  %618 = vmatprep.mubr.f32.mxu0 0.0
  %619 = vmatmul.mubr.f32.gmra.mxu0 %v457
  %v620 = vpop.f32.mrf.mxu0
  %v621 = vadd.f32 %v84, %v620
  %v622 = vpop.f32.mrf.mxu0
  %623 = vmatprep.mubr.f32.mxu0 0.0
  %624 = vmatmul.mubr.f32.gmra.mxu0 %v458
  %v625 = vpop.f32.mrf.mxu0
  %v626 = vadd.f32 %v84, %v625
  %v627 = vpop.f32.mrf.mxu0
  %628 = vmatprep.mubr.f32.mxu0 0.0
  %629 = vmatmul.mubr.f32.gmra.mxu0 %v459
  %v630 = vpop.f32.mrf.mxu0
  %v631 = vadd.f32 %v84, %v630
  %v632 = vpop.f32.mrf.mxu0
  %633 = vmatprep.mubr.f32.mxu0 0.0
  %634 = vmatmul.mubr.f32.gmra.mxu0 %v460
  %v635 = vpop.f32.mrf.mxu0
  %v636 = vadd.f32 %v84, %v635
  %v637 = vpop.f32.mrf.mxu0
  %638 = vmatprep.mubr.f32.mxu0 0.0
  %639 = vmatmul.mubr.f32.gmra.mxu0 %v461
  %v640 = vpop.f32.mrf.mxu0
  %v641 = vadd.f32 %v84, %v640
  %v642 = vpop.f32.mrf.mxu0
  %643 = vmatprep.mubr.f32.mxu0 0.0
  %644 = vmatmul.mubr.f32.gmra.mxu0 %v462
  %v645 = vpop.f32.mrf.mxu0
  %v646 = vadd.f32 %v84, %v645
  %v647 = vpop.f32.mrf.mxu0
  %648 = vmatprep.mubr.f32.mxu0 0.0
  %649 = vmatmul.mubr.f32.gmra.mxu0 %v463
  %v650 = vpop.f32.mrf.mxu0
  %v651 = vadd.f32 %v84, %v650
  %v652 = vpop.f32.mrf.mxu0
  %653 = vmatprep.mubr.f32.mxu0 0.0
  %654 = vmatmul.mubr.f32.gmra.mxu0 %v464
  %v655 = vpop.f32.mrf.mxu0
  %v656 = vadd.f32 %v84, %v655
  %v657 = vpop.f32.mrf.mxu0
  %658 = vmatprep.mubr.f32.mxu0 0.0
  %659 = vmatmul.mubr.f32.gmra.mxu0 %v465
  %v660 = vpop.f32.mrf.mxu0
  %v661 = vadd.f32 %v84, %v660
  %v662 = vpop.f32.mrf.mxu0
  %663 = vmatprep.mubr.f32.mxu0 0.0
  %664 = vmatmul.mubr.f32.gmra.mxu0 %v466
  %v665 = vpop.f32.mrf.mxu0
  %v666 = vadd.f32 %v84, %v665
  %v667 = vpop.f32.mrf.mxu0
  %668 = vmatprep.mubr.f32.mxu0 0.0
  %669 = vmatmul.mubr.f32.gmra.mxu0 %v467
  %v670 = vpop.f32.mrf.mxu0
  %v671 = vadd.f32 %v84, %v670
  %v672 = vpop.f32.mrf.mxu0
  %673 = vmatprep.mubr.f32.mxu0 0.0
  %674 = vmatmul.mubr.f32.gmra.mxu0 %v468
  %v675 = vpop.f32.mrf.mxu0
  %v676 = vadd.f32 %v84, %v675
  %v677 = vpop.f32.mrf.mxu0
  %678 = vmatprep.mubr.f32.mxu0 0.0
  %679 = vmatmul.mubr.f32.gmra.mxu0 %v469
  %v680 = vpop.f32.mrf.mxu0
  %v681 = vadd.f32 %v84, %v680
  %v682 = vpop.f32.mrf.mxu0
  %683 = vmatprep.mubr.f32.mxu0 0.0
  %684 = vmatmul.mubr.f32.gmra.mxu0 %v470
  %v685 = vpop.f32.mrf.mxu0
  %v686 = vadd.f32 %v84, %v685
  %v687 = vpop.f32.mrf.mxu0
  %688 = vmatprep.mubr.f32.mxu0 0.0
  %689 = vmatmul.mubr.f32.gmra.mxu0 %v471
  %v690 = vpop.f32.mrf.mxu0
  %v691 = vadd.f32 %v84, %v690
  %v692 = vpop.f32.mrf.mxu0
  %693 = vmatprep.mubr.f32.mxu0 0.0
  %694 = vmatmul.mubr.f32.gmra.mxu0 %v472
  %v695 = vpop.f32.mrf.mxu0
  %v696 = vadd.f32 %v84, %v695
  %v697 = vpop.f32.mrf.mxu0
  %698 = vmatprep.mubr.f32.mxu0 0.0
  %699 = vmatmul.mubr.f32.gmra.mxu0 %v473
  %v700 = vpop.f32.mrf.mxu0
  %v701 = vadd.f32 %v84, %v700
  %v702 = vpop.f32.mrf.mxu0
  %703 = vmatprep.mubr.f32.mxu0 0.0
  %704 = vmatmul.mubr.f32.gmra.mxu0 %v474
  %v705 = vpop.f32.mrf.mxu0
  %v706 = vadd.f32 %v84, %v705
  %v707 = vpop.f32.mrf.mxu0
  %708 = vmatprep.mubr.f32.mxu0 0.0
  %709 = vmatmul.mubr.f32.gmra.mxu0 %v475
  %v710 = vpop.f32.mrf.mxu0
  %v711 = vadd.f32 %v84, %v710
  %v712 = vpop.f32.mrf.mxu0
  %713 = vmatprep.mubr.f32.mxu0 0.0
  %714 = vmatmul.mubr.f32.gmra.mxu0 %v476
  %v715 = vpop.f32.mrf.mxu0
  %v716 = vadd.f32 %v84, %v715
  %v717 = vpop.f32.mrf.mxu0
  %718 = vmatprep.mubr.f32.mxu0 0.0
  %719 = vmatmul.mubr.f32.gmra.mxu0 %v477
  %v720 = vpop.f32.mrf.mxu0
  %v721 = vadd.f32 %v84, %v720
  %v722 = vpop.f32.mrf.mxu0
  %723 = vmatprep.mubr.f32.mxu0 0.0
  %724 = vmatmul.mubr.f32.gmra.mxu0 %v478
  %v725 = vpop.f32.mrf.mxu0
  %v726 = vadd.f32 %v84, %v725
  %v727 = vpop.f32.mrf.mxu0
  %728 = vmatprep.mubr.f32.mxu0 0.0
  %729 = vmatmul.mubr.f32.gmra.mxu0 %v479
  %v730 = vpop.f32.mrf.mxu0
  %v731 = vadd.f32 %v84, %v730
  %v732 = vpop.f32.mrf.mxu0
  %733 = vmatprep.mubr.f32.mxu0 0.0
  %734 = vmatmul.mubr.f32.gmra.mxu0 %v480
  %v735 = vpop.f32.mrf.mxu0
  %v736 = vadd.f32 %v84, %v735
  %v737 = vpop.f32.mrf.mxu0
  %738 = vmatprep.mubr.f32.mxu0 0.0
  %739 = vmatmul.mubr.f32.gmra.mxu0 %v481
  %v740 = vpop.f32.mrf.mxu0
  %v741 = vadd.f32 %v84, %v740
  %v742 = vpop.f32.mrf.mxu0
  %743 = vmatprep.mubr.f32.mxu0 0.0
  %744 = vmatmul.mubr.f32.gmra.mxu0 %v482
  %v745 = vpop.f32.mrf.mxu0
  %v746 = vadd.f32 %v84, %v745
  %v747 = vpop.f32.mrf.mxu0
  %748 = vmatprep.mubr.f32.mxu0 0.0
  %749 = vmatmul.mubr.f32.gmra.mxu0 %v483
  %v750 = vpop.f32.mrf.mxu0
  %v751 = vadd.f32 %v84, %v750
  %v752 = vpop.f32.mrf.mxu0
  %753 = vmatprep.mubr.f32.mxu0 0.0
  %754 = vmatmul.mubr.f32.gmra.mxu0 %v484
  %v755 = vpop.f32.mrf.mxu0
  %v756 = vadd.f32 %v84, %v755
  %v757 = vpop.f32.mrf.mxu0
  %758 = vmatprep.mubr.f32.mxu0 0.0
  %759 = vmatmul.mubr.f32.gmra.mxu0 %v485
  %v760 = vpop.f32.mrf.mxu0
  %v761 = vadd.f32 %v84, %v760
  %v762 = vpop.f32.mrf.mxu0
  %763 = vmatprep.mubr.f32.mxu0 0.0
  %764 = vmatmul.mubr.f32.gmra.mxu0 %v486
  %v765 = vpop.f32.mrf.mxu0
  %v766 = vadd.f32 %v84, %v765
  %v767 = vpop.f32.mrf.mxu0
  %768 = vmatprep.mubr.f32.mxu0 0.0
  %769 = vmatmul.mubr.f32.gmra.mxu0 %v487
  %v770 = vpop.f32.mrf.mxu0
  %v771 = vadd.f32 %v84, %v770
  %v772 = vpop.f32.mrf.mxu0
  %773 = vmatprep.mubr.f32.mxu0 0.0
  %774 = vmatmul.mubr.f32.gmra.mxu0 %v488
  %v775 = vpop.f32.mrf.mxu0
  %v776 = vadd.f32 %v84, %v775
  %v777 = vpop.f32.mrf.mxu0
  %778 = vmatprep.mubr.f32.mxu0 0.0
  %779 = vmatmul.mubr.f32.gmra.mxu0 %v489
  %v780 = vpop.f32.mrf.mxu0
  %v781 = vadd.f32 %v84, %v780
  %v782 = vpop.f32.mrf.mxu0
  %783 = vmatprep.mubr.f32.mxu0 0.0
  %784 = vmatmul.mubr.f32.gmra.mxu0 %v490
  %v785 = vpop.f32.mrf.mxu0
  %v786 = vadd.f32 %v84, %v785
  %v787 = vpop.f32.mrf.mxu0
  %788 = vmatprep.mubr.f32.mxu0 0.0
  %789 = vmatmul.mubr.f32.gmra.mxu0 %v491
  %v790 = vpop.f32.mrf.mxu0
  %v791 = vadd.f32 %v84, %v790
  %v792 = vpop.f32.mrf.mxu0
  %793 = vmatprep.mubr.f32.mxu0 0.0
  %794 = vmatmul.mubr.f32.gmra.mxu0 %v492
  %v795 = vpop.f32.mrf.mxu0
  %v796 = vadd.f32 %v84, %v795
  %v797 = vpop.f32.mrf.mxu0
  %798 = vmatprep.mubr.f32.mxu0 0.0
  %799 = vmatmul.mubr.f32.gmra.mxu0 %v493
  %v800 = vpop.f32.mrf.mxu0
  %v801 = vadd.f32 %v84, %v800
  %v802 = vpop.f32.mrf.mxu0
  %803 = vdwg.mxu0
  %v804 = vmax.f32 %v561, 0.0
  %v805 = vmax.f32 %v566, 0.0
  %v806 = vmax.f32 %v571, 0.0
  %v807 = vmax.f32 %v576, 0.0
  %v808 = vmax.f32 %v581, 0.0
  %v809 = vmax.f32 %v586, 0.0
  %v810 = vmax.f32 %v591, 0.0
  %v811 = vmax.f32 %v596, 0.0
  %v812 = vmax.f32 %v601, 0.0
  %v813 = vmax.f32 %v606, 0.0
  %v814 = vmax.f32 %v611, 0.0
  %v815 = vmax.f32 %v616, 0.0
  %v816 = vmax.f32 %v621, 0.0
  %v817 = vmax.f32 %v626, 0.0
  %v818 = vmax.f32 %v631, 0.0
  %v819 = vmax.f32 %v636, 0.0
  %v820 = vmax.f32 %v641, 0.0
  %v821 = vmax.f32 %v646, 0.0
  %v822 = vmax.f32 %v651, 0.0
  %v823 = vmax.f32 %v656, 0.0
  %v824 = vmax.f32 %v661, 0.0
  %v825 = vmax.f32 %v666, 0.0
  %v826 = vmax.f32 %v671, 0.0
  %v827 = vmax.f32 %v676, 0.0
  %v828 = vmax.f32 %v681, 0.0
  %v829 = vmax.f32 %v686, 0.0
  %v830 = vmax.f32 %v691, 0.0
  %v831 = vmax.f32 %v696, 0.0
  %v832 = vmax.f32 %v701, 0.0
  %v833 = vmax.f32 %v706, 0.0
  %v834 = vmax.f32 %v711, 0.0
  %v835 = vmax.f32 %v716, 0.0
  %v836 = vmax.f32 %v721, 0.0
  %v837 = vmax.f32 %v726, 0.0
  %v838 = vmax.f32 %v731, 0.0
  %v839 = vmax.f32 %v736, 0.0
  %v840 = vmax.f32 %v741, 0.0
  %v841 = vmax.f32 %v746, 0.0
  %v842 = vmax.f32 %v751, 0.0
  %v843 = vmax.f32 %v756, 0.0
  %v844 = vmax.f32 %v761, 0.0
  %v845 = vmax.f32 %v766, 0.0
  %v846 = vmax.f32 %v771, 0.0
  %v847 = vmax.f32 %v776, 0.0
  %v848 = vmax.f32 %v781, 0.0
  %v849 = vmax.f32 %v786, 0.0
  %v850 = vmax.f32 %v791, 0.0
  %v851 = vmax.f32 %v796, 0.0
  %v852 = vmax.f32 %v801, 0.0
  %v853 = vmax.f32 %v396, %v804
  %v854 = vmax.f32 %v397, %v805
  %v855 = vmax.f32 %v398, %v806
  %v856 = vmax.f32 %v399, %v807
  %v857 = vmax.f32 %v400, %v808
  %v858 = vmax.f32 %v401, %v809
  %v859 = vmax.f32 %v402, %v810
  %v860 = vmax.f32 %v403, %v811
  %v861 = vmax.f32 %v404, %v812
  %v862 = vmax.f32 %v405, %v813
  %v863 = vmax.f32 %v406, %v814
  %v864 = vmax.f32 %v407, %v815
  %v865 = vmax.f32 %v408, %v816
  %v866 = vmax.f32 %v409, %v817
  %v867 = vmax.f32 %v410, %v818
  %v868 = vmax.f32 %v411, %v819
  %v869 = vmax.f32 %v412, %v820
  %v870 = vmax.f32 %v413, %v821
  %v871 = vmax.f32 %v414, %v822
  %v872 = vmax.f32 %v415, %v823
  %v873 = vmax.f32 %v416, %v824
  %v874 = vmax.f32 %v417, %v825
  %v875 = vmax.f32 %v418, %v826
  %v876 = vmax.f32 %v419, %v827
  %v877 = vmax.f32 %v420, %v828
  %v878 = vmax.f32 %v421, %v829
  %v879 = vmax.f32 %v422, %v830
  %v880 = vmax.f32 %v423, %v831
  %v881 = vmax.f32 %v424, %v832
  %v882 = vmax.f32 %v425, %v833
  %v883 = vmax.f32 %v426, %v834
  %v884 = vmax.f32 %v427, %v835
  %v885 = vmax.f32 %v428, %v836
  %v886 = vmax.f32 %v429, %v837
  %v887 = vmax.f32 %v430, %v838
  %v888 = vmax.f32 %v431, %v839
  %v889 = vmax.f32 %v432, %v840
  %v890 = vmax.f32 %v433, %v841
  %v891 = vmax.f32 %v434, %v842
  %v892 = vmax.f32 %v435, %v843
  %v893 = vmax.f32 %v436, %v844
  %v894 = vmax.f32 %v437, %v845
  %v895 = vmax.f32 %v438, %v846
  %v896 = vmax.f32 %v439, %v847
  %v897 = vmax.f32 %v440, %v848
  %v898 = vmax.f32 %v441, %v849
  %v899 = vmax.f32 %v442, %v850
  %v900 = vmax.f32 %v443, %v851
  %v901 = vmax.f32 %v444, %v852
  %v902 = vld [vmem:[%s0 + $0x310] sm:$0xff]
  %v903 = vld [vmem:[%s0 + $0x318] sm:$0xff]
  %v904 = vld [vmem:[%s0 + $0x320] sm:$0xff]
  %v905 = vld [vmem:[%s0 + $0x328] sm:$0xff]
  %v906 = vld [vmem:[%s0 + $0x330] sm:$0xff]
  %v907 = vld [vmem:[%s0 + $0x338] sm:$0xff]
  %v908 = vld [vmem:[%s0 + $0x340] sm:$0xff]
  %v909 = vld [vmem:[%s0 + $0x348] sm:$0xff]
  %v910 = vld [vmem:[%s0 + $0x350] sm:$0xff]
  %v911 = vld [vmem:[%s0 + $0x358] sm:$0xff]
  %v912 = vld [vmem:[%s0 + $0x360] sm:$0xff]
  %v913 = vld [vmem:[%s0 + $0x368] sm:$0xff]
  %v914 = vld [vmem:[%s0 + $0x370] sm:$0xff]
  %v915 = vld [vmem:[%s0 + $0x378] sm:$0xff]
  %v916 = vld [vmem:[%s0 + $0x380] sm:$0xff]
  %v917 = vld [vmem:[%s0 + $0x388] sm:$0xff]
  %v918 = vld [vmem:[%s0 + $0x390] sm:$0xff]
  %v919 = vld [vmem:[%s0 + $0x398] sm:$0xff]
  %v920 = vld [vmem:[%s0 + $0x3a0] sm:$0xff]
  %v921 = vld [vmem:[%s0 + $0x3a8] sm:$0xff]
  %v922 = vld [vmem:[%s0 + $0x3b0] sm:$0xff]
  %v923 = vld [vmem:[%s0 + $0x3b8] sm:$0xff]
  %v924 = vld [vmem:[%s0 + $0x3c0] sm:$0xff]
  %v925 = vld [vmem:[%s0 + $0x3c8] sm:$0xff]
  %v926 = vld [vmem:[%s0 + $0x3d0] sm:$0xff]
  %v927 = vld [vmem:[%s0 + $0x3d8] sm:$0xff]
  %v928 = vld [vmem:[%s0 + $0x3e0] sm:$0xff]
  %v929 = vld [vmem:[%s0 + $0x3e8] sm:$0xff]
  %v930 = vld [vmem:[%s0 + $0x3f0] sm:$0xff]
  %v931 = vld [vmem:[%s0 + $0x3f8] sm:$0xff]
  %v932 = vld [vmem:[%s0 + $0x400] sm:$0xff]
  %v933 = vld [vmem:[%s0 + $0x408] sm:$0xff]
  %v934 = vld [vmem:[%s0 + $0x410] sm:$0xff]
  %v935 = vld [vmem:[%s0 + $0x418] sm:$0xff]
  %v936 = vld [vmem:[%s0 + $0x420] sm:$0xff]
  %v937 = vld [vmem:[%s0 + $0x428] sm:$0xff]
  %v938 = vld [vmem:[%s0 + $0x430] sm:$0xff]
  %v939 = vld [vmem:[%s0 + $0x438] sm:$0xff]
  %v940 = vld [vmem:[%s0 + $0x440] sm:$0xff]
  %v941 = vld [vmem:[%s0 + $0x448] sm:$0xff]
  %v942 = vld [vmem:[%s0 + $0x450] sm:$0xff]
  %v943 = vld [vmem:[%s0 + $0x458] sm:$0xff]
  %v944 = vld [vmem:[%s0 + $0x460] sm:$0xff]
  %v945 = vld [vmem:[%s0 + $0x468] sm:$0xff]
  %v946 = vld [vmem:[%s0 + $0x470] sm:$0xff]
  %v947 = vld [vmem:[%s0 + $0x478] sm:$0xff]
  %v948 = vld [vmem:[%s0 + $0x480] sm:$0xff]
  %v949 = vld [vmem:[%s0 + $0x488] sm:$0xff]
  %v950 = vld [vmem:[%s0 + $0x490] sm:$0xff]
  %951 = vmatprep.subr.mxu0 0.0
  %952 = vmatpush1.msra.mxu0 %v29
  %953 = vmatprep.subr.mxu0 0.0
  %954 = vmatpush1.msra.mxu0 %v28
  %955 = vmatprep.subr.mxu0 0.0
  %956 = vmatpush1.msra.mxu0 %v27
  %957 = vmatprep.subr.mxu0 0.0
  %958 = vmatpush1.msra.mxu0 %v26
  %959 = vmatprep.subr.mxu0 0.0
  %960 = vmatpush1.msra.mxu0 %v25
  %961 = vmatprep.subr.mxu0 0.0
  %962 = vmatpush1.msra.mxu0 %v24
  %963 = vmatprep.subr.mxu0 0.0
  %964 = vmatpush1.msra.mxu0 %v23
  %965 = vmatprep.subr.mxu0 0.0
  %966 = vmatpush1.msra.mxu0 %v22
  %967 = vmatprep.subr.mxu0 0.0
  %968 = vmatpush1.msra.mxu0 %v21
  %969 = vmatprep.subr.mxu0 0.0
  %970 = vmatpush1.msra.mxu0 %v20
  %971 = vmatprep.subr.mxu0 0.0
  %972 = vmatpush1.msra.mxu0 %v19
  %973 = vmatprep.subr.mxu0 0.0
  %974 = vmatpush1.msra.mxu0 %v18
  %975 = vmatprep.subr.mxu0 0.0
  %976 = vmatpush1.msra.mxu0 %v17
  %977 = vmatprep.subr.mxu0 0.0
  %978 = vmatpush1.msra.mxu0 %v16
  %979 = vmatprep.subr.mxu0 0.0
  %980 = vmatpush1.msra.mxu0 %v15
  %981 = vmatprep.subr.mxu0 0.0
  %982 = vmatpush1.msra.mxu0 %v14
  %983 = vmatprep.subr.mxu0 0.0
  %984 = vmatpush2.msra.mxu0 0.0
  %985 = vmatprep.subr.mxu0 0.0
  %986 = vmatpush2.msra.mxu0 0.0
  %987 = vmatprep.subr.mxu0 0.0
  %988 = vmatpush2.msra.mxu0 0.0
  %989 = vmatprep.subr.mxu0 0.0
  %990 = vmatpush2.msra.mxu0 0.0
  %991 = vmatprep.subr.mxu0 0.0
  %992 = vmatpush2.msra.mxu0 0.0
  %993 = vmatprep.subr.mxu0 0.0
  %994 = vmatpush2.msra.mxu0 0.0
  %995 = vmatprep.subr.mxu0 0.0
  %996 = vmatpush2.msra.mxu0 0.0
  %997 = vmatprep.subr.mxu0 0.0
  %998 = vmatpush2.msra.mxu0 0.0
  %999 = vmatprep.subr.mxu0 0.0
  %1000 = vmatpush2.msra.mxu0 0.0
  %1001 = vmatprep.subr.mxu0 0.0
  %1002 = vmatpush2.msra.mxu0 0.0
  %1003 = vmatprep.subr.mxu0 0.0
  %1004 = vmatpush2.msra.mxu0 0.0
  %1005 = vmatprep.subr.mxu0 0.0
  %1006 = vmatpush2.msra.mxu0 0.0
  %1007 = vmatprep.subr.mxu0 0.0
  %1008 = vmatpush2.msra.mxu0 0.0
  %1009 = vmatprep.subr.mxu0 0.0
  %1010 = vmatpush2.msra.mxu0 0.0
  %1011 = vmatprep.subr.mxu0 0.0
  %1012 = vmatpush2.msra.mxu0 0.0
  %1013 = vmatprep.subr.mxu0 0.0
  %1014 = vmatpush2.msra.mxu0 0.0
  %1015 = vmatprep.mubr.f32.mxu0 0.0
  %1016 = vmatmul.mubr.f32.gmra.mxu0 %v902
  %v1017 = vpop.f32.mrf.mxu0
  %v1018 = vadd.f32 %v84, %v1017
  %v1019 = vpop.f32.mrf.mxu0
  %1020 = vmatprep.mubr.f32.mxu0 0.0
  %1021 = vmatmul.mubr.f32.gmra.mxu0 %v903
  %v1022 = vpop.f32.mrf.mxu0
  %v1023 = vadd.f32 %v84, %v1022
  %v1024 = vpop.f32.mrf.mxu0
  %1025 = vmatprep.mubr.f32.mxu0 0.0
  %1026 = vmatmul.mubr.f32.gmra.mxu0 %v904
  %v1027 = vpop.f32.mrf.mxu0
  %v1028 = vadd.f32 %v84, %v1027
  %v1029 = vpop.f32.mrf.mxu0
  %1030 = vmatprep.mubr.f32.mxu0 0.0
  %1031 = vmatmul.mubr.f32.gmra.mxu0 %v905
  %v1032 = vpop.f32.mrf.mxu0
  %v1033 = vadd.f32 %v84, %v1032
  %v1034 = vpop.f32.mrf.mxu0
  %1035 = vmatprep.mubr.f32.mxu0 0.0
  %1036 = vmatmul.mubr.f32.gmra.mxu0 %v906
  %v1037 = vpop.f32.mrf.mxu0
  %v1038 = vadd.f32 %v84, %v1037
  %v1039 = vpop.f32.mrf.mxu0
  %1040 = vmatprep.mubr.f32.mxu0 0.0
  %1041 = vmatmul.mubr.f32.gmra.mxu0 %v907
  %v1042 = vpop.f32.mrf.mxu0
  %v1043 = vadd.f32 %v84, %v1042
  %v1044 = vpop.f32.mrf.mxu0
  %1045 = vmatprep.mubr.f32.mxu0 0.0
  %1046 = vmatmul.mubr.f32.gmra.mxu0 %v908
  %v1047 = vpop.f32.mrf.mxu0
  %v1048 = vadd.f32 %v84, %v1047
  %v1049 = vpop.f32.mrf.mxu0
  %1050 = vmatprep.mubr.f32.mxu0 0.0
  %1051 = vmatmul.mubr.f32.gmra.mxu0 %v909
  %v1052 = vpop.f32.mrf.mxu0
  %v1053 = vadd.f32 %v84, %v1052
  %v1054 = vpop.f32.mrf.mxu0
  %1055 = vmatprep.mubr.f32.mxu0 0.0
  %1056 = vmatmul.mubr.f32.gmra.mxu0 %v910
  %v1057 = vpop.f32.mrf.mxu0
  %v1058 = vadd.f32 %v84, %v1057
  %v1059 = vpop.f32.mrf.mxu0
  %1060 = vmatprep.mubr.f32.mxu0 0.0
  %1061 = vmatmul.mubr.f32.gmra.mxu0 %v911
  %v1062 = vpop.f32.mrf.mxu0
  %v1063 = vadd.f32 %v84, %v1062
  %v1064 = vpop.f32.mrf.mxu0
  %1065 = vmatprep.mubr.f32.mxu0 0.0
  %1066 = vmatmul.mubr.f32.gmra.mxu0 %v912
  %v1067 = vpop.f32.mrf.mxu0
  %v1068 = vadd.f32 %v84, %v1067
  %v1069 = vpop.f32.mrf.mxu0
  %1070 = vmatprep.mubr.f32.mxu0 0.0
  %1071 = vmatmul.mubr.f32.gmra.mxu0 %v913
  %v1072 = vpop.f32.mrf.mxu0
  %v1073 = vadd.f32 %v84, %v1072
  %v1074 = vpop.f32.mrf.mxu0
  %1075 = vmatprep.mubr.f32.mxu0 0.0
  %1076 = vmatmul.mubr.f32.gmra.mxu0 %v914
  %v1077 = vpop.f32.mrf.mxu0
  %v1078 = vadd.f32 %v84, %v1077
  %v1079 = vpop.f32.mrf.mxu0
  %1080 = vmatprep.mubr.f32.mxu0 0.0
  %1081 = vmatmul.mubr.f32.gmra.mxu0 %v915
  %v1082 = vpop.f32.mrf.mxu0
  %v1083 = vadd.f32 %v84, %v1082
  %v1084 = vpop.f32.mrf.mxu0
  %1085 = vmatprep.mubr.f32.mxu0 0.0
  %1086 = vmatmul.mubr.f32.gmra.mxu0 %v916
  %v1087 = vpop.f32.mrf.mxu0
  %v1088 = vadd.f32 %v84, %v1087
  %v1089 = vpop.f32.mrf.mxu0
  %1090 = vmatprep.mubr.f32.mxu0 0.0
  %1091 = vmatmul.mubr.f32.gmra.mxu0 %v917
  %v1092 = vpop.f32.mrf.mxu0
  %v1093 = vadd.f32 %v84, %v1092
  %v1094 = vpop.f32.mrf.mxu0
  %1095 = vmatprep.mubr.f32.mxu0 0.0
  %1096 = vmatmul.mubr.f32.gmra.mxu0 %v918
  %v1097 = vpop.f32.mrf.mxu0
  %v1098 = vadd.f32 %v84, %v1097
  %v1099 = vpop.f32.mrf.mxu0
  %1100 = vmatprep.mubr.f32.mxu0 0.0
  %1101 = vmatmul.mubr.f32.gmra.mxu0 %v919
  %v1102 = vpop.f32.mrf.mxu0
  %v1103 = vadd.f32 %v84, %v1102
  %v1104 = vpop.f32.mrf.mxu0
  %1105 = vmatprep.mubr.f32.mxu0 0.0
  %1106 = vmatmul.mubr.f32.gmra.mxu0 %v920
  %v1107 = vpop.f32.mrf.mxu0
  %v1108 = vadd.f32 %v84, %v1107
  %v1109 = vpop.f32.mrf.mxu0
  %1110 = vmatprep.mubr.f32.mxu0 0.0
  %1111 = vmatmul.mubr.f32.gmra.mxu0 %v921
  %v1112 = vpop.f32.mrf.mxu0
  %v1113 = vadd.f32 %v84, %v1112
  %v1114 = vpop.f32.mrf.mxu0
  %1115 = vmatprep.mubr.f32.mxu0 0.0
  %1116 = vmatmul.mubr.f32.gmra.mxu0 %v922
  %v1117 = vpop.f32.mrf.mxu0
  %v1118 = vadd.f32 %v84, %v1117
  %v1119 = vpop.f32.mrf.mxu0
  %1120 = vmatprep.mubr.f32.mxu0 0.0
  %1121 = vmatmul.mubr.f32.gmra.mxu0 %v923
  %v1122 = vpop.f32.mrf.mxu0
  %v1123 = vadd.f32 %v84, %v1122
  %v1124 = vpop.f32.mrf.mxu0
  %1125 = vmatprep.mubr.f32.mxu0 0.0
  %1126 = vmatmul.mubr.f32.gmra.mxu0 %v924
  %v1127 = vpop.f32.mrf.mxu0
  %v1128 = vadd.f32 %v84, %v1127
  %v1129 = vpop.f32.mrf.mxu0
  %1130 = vmatprep.mubr.f32.mxu0 0.0
  %1131 = vmatmul.mubr.f32.gmra.mxu0 %v925
  %v1132 = vpop.f32.mrf.mxu0
  %v1133 = vadd.f32 %v84, %v1132
  %v1134 = vpop.f32.mrf.mxu0
  %1135 = vmatprep.mubr.f32.mxu0 0.0
  %1136 = vmatmul.mubr.f32.gmra.mxu0 %v926
  %v1137 = vpop.f32.mrf.mxu0
  %v1138 = vadd.f32 %v84, %v1137
  %v1139 = vpop.f32.mrf.mxu0
  %1140 = vmatprep.mubr.f32.mxu0 0.0
  %1141 = vmatmul.mubr.f32.gmra.mxu0 %v927
  %v1142 = vpop.f32.mrf.mxu0
  %v1143 = vadd.f32 %v84, %v1142
  %v1144 = vpop.f32.mrf.mxu0
  %1145 = vmatprep.mubr.f32.mxu0 0.0
  %1146 = vmatmul.mubr.f32.gmra.mxu0 %v928
  %v1147 = vpop.f32.mrf.mxu0
  %v1148 = vadd.f32 %v84, %v1147
  %v1149 = vpop.f32.mrf.mxu0
  %1150 = vmatprep.mubr.f32.mxu0 0.0
  %1151 = vmatmul.mubr.f32.gmra.mxu0 %v929
  %v1152 = vpop.f32.mrf.mxu0
  %v1153 = vadd.f32 %v84, %v1152
  %v1154 = vpop.f32.mrf.mxu0
  %1155 = vmatprep.mubr.f32.mxu0 0.0
  %1156 = vmatmul.mubr.f32.gmra.mxu0 %v930
  %v1157 = vpop.f32.mrf.mxu0
  %v1158 = vadd.f32 %v84, %v1157
  %v1159 = vpop.f32.mrf.mxu0
  %1160 = vmatprep.mubr.f32.mxu0 0.0
  %1161 = vmatmul.mubr.f32.gmra.mxu0 %v931
  %v1162 = vpop.f32.mrf.mxu0
  %v1163 = vadd.f32 %v84, %v1162
  %v1164 = vpop.f32.mrf.mxu0
  %1165 = vmatprep.mubr.f32.mxu0 0.0
  %1166 = vmatmul.mubr.f32.gmra.mxu0 %v932
  %v1167 = vpop.f32.mrf.mxu0
  %v1168 = vadd.f32 %v84, %v1167
  %v1169 = vpop.f32.mrf.mxu0
  %1170 = vmatprep.mubr.f32.mxu0 0.0
  %1171 = vmatmul.mubr.f32.gmra.mxu0 %v933
  %v1172 = vpop.f32.mrf.mxu0
  %v1173 = vadd.f32 %v84, %v1172
  %v1174 = vpop.f32.mrf.mxu0
  %1175 = vmatprep.mubr.f32.mxu0 0.0
  %1176 = vmatmul.mubr.f32.gmra.mxu0 %v934
  %v1177 = vpop.f32.mrf.mxu0
  %v1178 = vadd.f32 %v84, %v1177
  %v1179 = vpop.f32.mrf.mxu0
  %1180 = vmatprep.mubr.f32.mxu0 0.0
  %1181 = vmatmul.mubr.f32.gmra.mxu0 %v935
  %v1182 = vpop.f32.mrf.mxu0
  %v1183 = vadd.f32 %v84, %v1182
  %v1184 = vpop.f32.mrf.mxu0
  %1185 = vmatprep.mubr.f32.mxu0 0.0
  %1186 = vmatmul.mubr.f32.gmra.mxu0 %v936
  %v1187 = vpop.f32.mrf.mxu0
  %v1188 = vadd.f32 %v84, %v1187
  %v1189 = vpop.f32.mrf.mxu0
  %1190 = vmatprep.mubr.f32.mxu0 0.0
  %1191 = vmatmul.mubr.f32.gmra.mxu0 %v937
  %v1192 = vpop.f32.mrf.mxu0
  %v1193 = vadd.f32 %v84, %v1192
  %v1194 = vpop.f32.mrf.mxu0
  %1195 = vmatprep.mubr.f32.mxu0 0.0
  %1196 = vmatmul.mubr.f32.gmra.mxu0 %v938
  %v1197 = vpop.f32.mrf.mxu0
  %v1198 = vadd.f32 %v84, %v1197
  %v1199 = vpop.f32.mrf.mxu0
  %1200 = vmatprep.mubr.f32.mxu0 0.0
  %1201 = vmatmul.mubr.f32.gmra.mxu0 %v939
  %v1202 = vpop.f32.mrf.mxu0
  %v1203 = vadd.f32 %v84, %v1202
  %v1204 = vpop.f32.mrf.mxu0
  %1205 = vmatprep.mubr.f32.mxu0 0.0
  %1206 = vmatmul.mubr.f32.gmra.mxu0 %v940
  %v1207 = vpop.f32.mrf.mxu0
  %v1208 = vadd.f32 %v84, %v1207
  %v1209 = vpop.f32.mrf.mxu0
  %1210 = vmatprep.mubr.f32.mxu0 0.0
  %1211 = vmatmul.mubr.f32.gmra.mxu0 %v941
  %v1212 = vpop.f32.mrf.mxu0
  %v1213 = vadd.f32 %v84, %v1212
  %v1214 = vpop.f32.mrf.mxu0
  %1215 = vmatprep.mubr.f32.mxu0 0.0
  %1216 = vmatmul.mubr.f32.gmra.mxu0 %v942
  %v1217 = vpop.f32.mrf.mxu0
  %v1218 = vadd.f32 %v84, %v1217
  %v1219 = vpop.f32.mrf.mxu0
  %1220 = vmatprep.mubr.f32.mxu0 0.0
  %1221 = vmatmul.mubr.f32.gmra.mxu0 %v943
  %v1222 = vpop.f32.mrf.mxu0
  %v1223 = vadd.f32 %v84, %v1222
  %v1224 = vpop.f32.mrf.mxu0
  %1225 = vmatprep.mubr.f32.mxu0 0.0
  %1226 = vmatmul.mubr.f32.gmra.mxu0 %v944
  %v1227 = vpop.f32.mrf.mxu0
  %v1228 = vadd.f32 %v84, %v1227
  %v1229 = vpop.f32.mrf.mxu0
  %1230 = vmatprep.mubr.f32.mxu0 0.0
  %1231 = vmatmul.mubr.f32.gmra.mxu0 %v945
  %v1232 = vpop.f32.mrf.mxu0
  %v1233 = vadd.f32 %v84, %v1232
  %v1234 = vpop.f32.mrf.mxu0
  %1235 = vmatprep.mubr.f32.mxu0 0.0
  %1236 = vmatmul.mubr.f32.gmra.mxu0 %v946
  %v1237 = vpop.f32.mrf.mxu0
  %v1238 = vadd.f32 %v84, %v1237
  %v1239 = vpop.f32.mrf.mxu0
  %1240 = vmatprep.mubr.f32.mxu0 0.0
  %1241 = vmatmul.mubr.f32.gmra.mxu0 %v947
  %v1242 = vpop.f32.mrf.mxu0
  %v1243 = vadd.f32 %v84, %v1242
  %v1244 = vpop.f32.mrf.mxu0
  %1245 = vmatprep.mubr.f32.mxu0 0.0
  %1246 = vmatmul.mubr.f32.gmra.mxu0 %v948
  %v1247 = vpop.f32.mrf.mxu0
  %v1248 = vadd.f32 %v84, %v1247
  %v1249 = vpop.f32.mrf.mxu0
  %1250 = vmatprep.mubr.f32.mxu0 0.0
  %1251 = vmatmul.mubr.f32.gmra.mxu0 %v949
  %v1252 = vpop.f32.mrf.mxu0
  %v1253 = vadd.f32 %v84, %v1252
  %v1254 = vpop.f32.mrf.mxu0
  %1255 = vmatprep.mubr.f32.mxu0 0.0
  %1256 = vmatmul.mubr.f32.gmra.mxu0 %v950
  %v1257 = vpop.f32.mrf.mxu0
  %v1258 = vadd.f32 %v84, %v1257
  %v1259 = vpop.f32.mrf.mxu0
  %1260 = vdwg.mxu0
  %v1261 = vmax.f32 %v1018, 0.0
  %v1262 = vmax.f32 %v1023, 0.0
  %v1263 = vmax.f32 %v1028, 0.0
  %v1264 = vmax.f32 %v1033, 0.0
  %v1265 = vmax.f32 %v1038, 0.0
  %v1266 = vmax.f32 %v1043, 0.0
  %v1267 = vmax.f32 %v1048, 0.0
  %v1268 = vmax.f32 %v1053, 0.0
  %v1269 = vmax.f32 %v1058, 0.0
  %v1270 = vmax.f32 %v1063, 0.0
  %v1271 = vmax.f32 %v1068, 0.0
  %v1272 = vmax.f32 %v1073, 0.0
  %v1273 = vmax.f32 %v1078, 0.0
  %v1274 = vmax.f32 %v1083, 0.0
  %v1275 = vmax.f32 %v1088, 0.0
  %v1276 = vmax.f32 %v1093, 0.0
  %v1277 = vmax.f32 %v1098, 0.0
  %v1278 = vmax.f32 %v1103, 0.0
  %v1279 = vmax.f32 %v1108, 0.0
  %v1280 = vmax.f32 %v1113, 0.0
  %v1281 = vmax.f32 %v1118, 0.0
  %v1282 = vmax.f32 %v1123, 0.0
  %v1283 = vmax.f32 %v1128, 0.0
  %v1284 = vmax.f32 %v1133, 0.0
  %v1285 = vmax.f32 %v1138, 0.0
  %v1286 = vmax.f32 %v1143, 0.0
  %v1287 = vmax.f32 %v1148, 0.0
  %v1288 = vmax.f32 %v1153, 0.0
  %v1289 = vmax.f32 %v1158, 0.0
  %v1290 = vmax.f32 %v1163, 0.0
  %v1291 = vmax.f32 %v1168, 0.0
  %v1292 = vmax.f32 %v1173, 0.0
  %v1293 = vmax.f32 %v1178, 0.0
  %v1294 = vmax.f32 %v1183, 0.0
  %v1295 = vmax.f32 %v1188, 0.0
  %v1296 = vmax.f32 %v1193, 0.0
  %v1297 = vmax.f32 %v1198, 0.0
  %v1298 = vmax.f32 %v1203, 0.0
  %v1299 = vmax.f32 %v1208, 0.0
  %v1300 = vmax.f32 %v1213, 0.0
  %v1301 = vmax.f32 %v1218, 0.0
  %v1302 = vmax.f32 %v1223, 0.0
  %v1303 = vmax.f32 %v1228, 0.0
  %v1304 = vmax.f32 %v1233, 0.0
  %v1305 = vmax.f32 %v1238, 0.0
  %v1306 = vmax.f32 %v1243, 0.0
  %v1307 = vmax.f32 %v1248, 0.0
  %v1308 = vmax.f32 %v1253, 0.0
  %v1309 = vmax.f32 %v1258, 0.0
  %v1310 = vmax.f32 %v853, %v1261
  %v1311 = vmax.f32 %v854, %v1262
  %v1312 = vmax.f32 %v855, %v1263
  %v1313 = vmax.f32 %v856, %v1264
  %v1314 = vmax.f32 %v857, %v1265
  %v1315 = vmax.f32 %v858, %v1266
  %v1316 = vmax.f32 %v859, %v1267
  %v1317 = vmax.f32 %v860, %v1268
  %v1318 = vmax.f32 %v861, %v1269
  %v1319 = vmax.f32 %v862, %v1270
  %v1320 = vmax.f32 %v863, %v1271
  %v1321 = vmax.f32 %v864, %v1272
  %v1322 = vmax.f32 %v865, %v1273
  %v1323 = vmax.f32 %v866, %v1274
  %v1324 = vmax.f32 %v867, %v1275
  %v1325 = vmax.f32 %v868, %v1276
  %v1326 = vmax.f32 %v869, %v1277
  %v1327 = vmax.f32 %v870, %v1278
  %v1328 = vmax.f32 %v871, %v1279
  %v1329 = vmax.f32 %v872, %v1280
  %v1330 = vmax.f32 %v873, %v1281
  %v1331 = vmax.f32 %v874, %v1282
  %v1332 = vmax.f32 %v875, %v1283
  %v1333 = vmax.f32 %v876, %v1284
  %v1334 = vmax.f32 %v877, %v1285
  %v1335 = vmax.f32 %v878, %v1286
  %v1336 = vmax.f32 %v879, %v1287
  %v1337 = vmax.f32 %v880, %v1288
  %v1338 = vmax.f32 %v881, %v1289
  %v1339 = vmax.f32 %v882, %v1290
  %v1340 = vmax.f32 %v883, %v1291
  %v1341 = vmax.f32 %v884, %v1292
  %v1342 = vmax.f32 %v885, %v1293
  %v1343 = vmax.f32 %v886, %v1294
  %v1344 = vmax.f32 %v887, %v1295
  %v1345 = vmax.f32 %v888, %v1296
  %v1346 = vmax.f32 %v889, %v1297
  %v1347 = vmax.f32 %v890, %v1298
  %v1348 = vmax.f32 %v891, %v1299
  %v1349 = vmax.f32 %v892, %v1300
  %v1350 = vmax.f32 %v893, %v1301
  %v1351 = vmax.f32 %v894, %v1302
  %v1352 = vmax.f32 %v895, %v1303
  %v1353 = vmax.f32 %v896, %v1304
  %v1354 = vmax.f32 %v897, %v1305
  %v1355 = vmax.f32 %v898, %v1306
  %v1356 = vmax.f32 %v899, %v1307
  %v1357 = vmax.f32 %v900, %v1308
  %v1358 = vmax.f32 %v901, %v1309
  %v1359 = vld [vmem:[%s0 + $0x498] sm:$0xff]
  %v1360 = vld [vmem:[%s0 + $0x4a0] sm:$0xff]
  %v1361 = vld [vmem:[%s0 + $0x4a8] sm:$0xff]
  %v1362 = vld [vmem:[%s0 + $0x4b0] sm:$0xff]
  %v1363 = vld [vmem:[%s0 + $0x4b8] sm:$0xff]
  %v1364 = vld [vmem:[%s0 + $0x4c0] sm:$0xff]
  %v1365 = vld [vmem:[%s0 + $0x4c8] sm:$0xff]
  %v1366 = vld [vmem:[%s0 + $0x4d0] sm:$0xff]
  %v1367 = vld [vmem:[%s0 + $0x4d8] sm:$0xff]
  %v1368 = vld [vmem:[%s0 + $0x4e0] sm:$0xff]
  %v1369 = vld [vmem:[%s0 + $0x4e8] sm:$0xff]
  %v1370 = vld [vmem:[%s0 + $0x4f0] sm:$0xff]
  %v1371 = vld [vmem:[%s0 + $0x4f8] sm:$0xff]
  %v1372 = vld [vmem:[%s0 + $0x500] sm:$0xff]
  %v1373 = vld [vmem:[%s0 + $0x508] sm:$0xff]
  %v1374 = vld [vmem:[%s0 + $0x510] sm:$0xff]
  %v1375 = vld [vmem:[%s0 + $0x518] sm:$0xff]
  %v1376 = vld [vmem:[%s0 + $0x520] sm:$0xff]
  %v1377 = vld [vmem:[%s0 + $0x528] sm:$0xff]
  %v1378 = vld [vmem:[%s0 + $0x530] sm:$0xff]
  %v1379 = vld [vmem:[%s0 + $0x538] sm:$0xff]
  %v1380 = vld [vmem:[%s0 + $0x540] sm:$0xff]
  %v1381 = vld [vmem:[%s0 + $0x548] sm:$0xff]
  %v1382 = vld [vmem:[%s0 + $0x550] sm:$0xff]
  %v1383 = vld [vmem:[%s0 + $0x558] sm:$0xff]
  %v1384 = vld [vmem:[%s0 + $0x560] sm:$0xff]
  %v1385 = vld [vmem:[%s0 + $0x568] sm:$0xff]
  %v1386 = vld [vmem:[%s0 + $0x570] sm:$0xff]
  %v1387 = vld [vmem:[%s0 + $0x578] sm:$0xff]
  %v1388 = vld [vmem:[%s0 + $0x580] sm:$0xff]
  %v1389 = vld [vmem:[%s0 + $0x588] sm:$0xff]
  %v1390 = vld [vmem:[%s0 + $0x590] sm:$0xff]
  %v1391 = vld [vmem:[%s0 + $0x598] sm:$0xff]
  %v1392 = vld [vmem:[%s0 + $0x5a0] sm:$0xff]
  %v1393 = vld [vmem:[%s0 + $0x5a8] sm:$0xff]
  %v1394 = vld [vmem:[%s0 + $0x5b0] sm:$0xff]
  %v1395 = vld [vmem:[%s0 + $0x5b8] sm:$0xff]
  %v1396 = vld [vmem:[%s0 + $0x5c0] sm:$0xff]
  %v1397 = vld [vmem:[%s0 + $0x5c8] sm:$0xff]
  %v1398 = vld [vmem:[%s0 + $0x5d0] sm:$0xff]
  %v1399 = vld [vmem:[%s0 + $0x5d8] sm:$0xff]
  %v1400 = vld [vmem:[%s0 + $0x5e0] sm:$0xff]
  %v1401 = vld [vmem:[%s0 + $0x5e8] sm:$0xff]
  %v1402 = vld [vmem:[%s0 + $0x5f0] sm:$0xff]
  %v1403 = vld [vmem:[%s0 + $0x5f8] sm:$0xff]
  %v1404 = vld [vmem:[%s0 + $0x600] sm:$0xff]
  %v1405 = vld [vmem:[%s0 + $0x608] sm:$0xff]
  %v1406 = vld [vmem:[%s0 + $0x610] sm:$0xff]
  %v1407 = vld [vmem:[%s0 + $0x618] sm:$0xff]
  %1408 = vmatprep.subr.mxu0 0.0
  %1409 = vmatpush1.msra.mxu0 %v29
  %1410 = vmatprep.subr.mxu0 0.0
  %1411 = vmatpush1.msra.mxu0 %v28
  %1412 = vmatprep.subr.mxu0 0.0
  %1413 = vmatpush1.msra.mxu0 %v27
  %1414 = vmatprep.subr.mxu0 0.0
  %1415 = vmatpush1.msra.mxu0 %v26
  %1416 = vmatprep.subr.mxu0 0.0
  %1417 = vmatpush1.msra.mxu0 %v25
  %1418 = vmatprep.subr.mxu0 0.0
  %1419 = vmatpush1.msra.mxu0 %v24
  %1420 = vmatprep.subr.mxu0 0.0
  %1421 = vmatpush1.msra.mxu0 %v23
  %1422 = vmatprep.subr.mxu0 0.0
  %1423 = vmatpush1.msra.mxu0 %v22
  %1424 = vmatprep.subr.mxu0 0.0
  %1425 = vmatpush1.msra.mxu0 %v21
  %1426 = vmatprep.subr.mxu0 0.0
  %1427 = vmatpush1.msra.mxu0 %v20
  %1428 = vmatprep.subr.mxu0 0.0
  %1429 = vmatpush1.msra.mxu0 %v19
  %1430 = vmatprep.subr.mxu0 0.0
  %1431 = vmatpush1.msra.mxu0 %v18
  %1432 = vmatprep.subr.mxu0 0.0
  %1433 = vmatpush1.msra.mxu0 %v17
  %1434 = vmatprep.subr.mxu0 0.0
  %1435 = vmatpush1.msra.mxu0 %v16
  %1436 = vmatprep.subr.mxu0 0.0
  %1437 = vmatpush1.msra.mxu0 %v15
  %1438 = vmatprep.subr.mxu0 0.0
  %1439 = vmatpush1.msra.mxu0 %v14
  %1440 = vmatprep.subr.mxu0 0.0
  %1441 = vmatpush2.msra.mxu0 0.0
  %1442 = vmatprep.subr.mxu0 0.0
  %1443 = vmatpush2.msra.mxu0 0.0
  %1444 = vmatprep.subr.mxu0 0.0
  %1445 = vmatpush2.msra.mxu0 0.0
  %1446 = vmatprep.subr.mxu0 0.0
  %1447 = vmatpush2.msra.mxu0 0.0
  %1448 = vmatprep.subr.mxu0 0.0
  %1449 = vmatpush2.msra.mxu0 0.0
  %1450 = vmatprep.subr.mxu0 0.0
  %1451 = vmatpush2.msra.mxu0 0.0
  %1452 = vmatprep.subr.mxu0 0.0
  %1453 = vmatpush2.msra.mxu0 0.0
  %1454 = vmatprep.subr.mxu0 0.0
  %1455 = vmatpush2.msra.mxu0 0.0
  %1456 = vmatprep.subr.mxu0 0.0
  %1457 = vmatpush2.msra.mxu0 0.0
  %1458 = vmatprep.subr.mxu0 0.0
  %1459 = vmatpush2.msra.mxu0 0.0
  %1460 = vmatprep.subr.mxu0 0.0
  %1461 = vmatpush2.msra.mxu0 0.0
  %1462 = vmatprep.subr.mxu0 0.0
  %1463 = vmatpush2.msra.mxu0 0.0
  %1464 = vmatprep.subr.mxu0 0.0
  %1465 = vmatpush2.msra.mxu0 0.0
  %1466 = vmatprep.subr.mxu0 0.0
  %1467 = vmatpush2.msra.mxu0 0.0
  %1468 = vmatprep.subr.mxu0 0.0
  %1469 = vmatpush2.msra.mxu0 0.0
  %1470 = vmatprep.subr.mxu0 0.0
  %1471 = vmatpush2.msra.mxu0 0.0
  %1472 = vmatprep.mubr.f32.mxu0 0.0
  %1473 = vmatmul.mubr.f32.gmra.mxu0 %v1359
  %v1474 = vpop.f32.mrf.mxu0
  %v1475 = vadd.f32 %v84, %v1474
  %v1476 = vpop.f32.mrf.mxu0
  %1477 = vmatprep.mubr.f32.mxu0 0.0
  %1478 = vmatmul.mubr.f32.gmra.mxu0 %v1360
  %v1479 = vpop.f32.mrf.mxu0
  %v1480 = vadd.f32 %v84, %v1479
  %v1481 = vpop.f32.mrf.mxu0
  %1482 = vmatprep.mubr.f32.mxu0 0.0
  %1483 = vmatmul.mubr.f32.gmra.mxu0 %v1361
  %v1484 = vpop.f32.mrf.mxu0
  %v1485 = vadd.f32 %v84, %v1484
  %v1486 = vpop.f32.mrf.mxu0
  %1487 = vmatprep.mubr.f32.mxu0 0.0
  %1488 = vmatmul.mubr.f32.gmra.mxu0 %v1362
  %v1489 = vpop.f32.mrf.mxu0
  %v1490 = vadd.f32 %v84, %v1489
  %v1491 = vpop.f32.mrf.mxu0
  %1492 = vmatprep.mubr.f32.mxu0 0.0
  %1493 = vmatmul.mubr.f32.gmra.mxu0 %v1363
  %v1494 = vpop.f32.mrf.mxu0
  %v1495 = vadd.f32 %v84, %v1494
  %v1496 = vpop.f32.mrf.mxu0
  %1497 = vmatprep.mubr.f32.mxu0 0.0
  %1498 = vmatmul.mubr.f32.gmra.mxu0 %v1364
  %v1499 = vpop.f32.mrf.mxu0
  %v1500 = vadd.f32 %v84, %v1499
  %v1501 = vpop.f32.mrf.mxu0
  %1502 = vmatprep.mubr.f32.mxu0 0.0
  %1503 = vmatmul.mubr.f32.gmra.mxu0 %v1365
  %v1504 = vpop.f32.mrf.mxu0
  %v1505 = vadd.f32 %v84, %v1504
  %v1506 = vpop.f32.mrf.mxu0
  %1507 = vmatprep.mubr.f32.mxu0 0.0
  %1508 = vmatmul.mubr.f32.gmra.mxu0 %v1366
  %v1509 = vpop.f32.mrf.mxu0
  %v1510 = vadd.f32 %v84, %v1509
  %v1511 = vpop.f32.mrf.mxu0
  %1512 = vmatprep.mubr.f32.mxu0 0.0
  %1513 = vmatmul.mubr.f32.gmra.mxu0 %v1367
  %v1514 = vpop.f32.mrf.mxu0
  %v1515 = vadd.f32 %v84, %v1514
  %v1516 = vpop.f32.mrf.mxu0
  %1517 = vmatprep.mubr.f32.mxu0 0.0
  %1518 = vmatmul.mubr.f32.gmra.mxu0 %v1368
  %v1519 = vpop.f32.mrf.mxu0
  %v1520 = vadd.f32 %v84, %v1519
  %v1521 = vpop.f32.mrf.mxu0
  %1522 = vmatprep.mubr.f32.mxu0 0.0
  %1523 = vmatmul.mubr.f32.gmra.mxu0 %v1369
  %v1524 = vpop.f32.mrf.mxu0
  %v1525 = vadd.f32 %v84, %v1524
  %v1526 = vpop.f32.mrf.mxu0
  %1527 = vmatprep.mubr.f32.mxu0 0.0
  %1528 = vmatmul.mubr.f32.gmra.mxu0 %v1370
  %v1529 = vpop.f32.mrf.mxu0
  %v1530 = vadd.f32 %v84, %v1529
  %v1531 = vpop.f32.mrf.mxu0
  %1532 = vmatprep.mubr.f32.mxu0 0.0
  %1533 = vmatmul.mubr.f32.gmra.mxu0 %v1371
  %v1534 = vpop.f32.mrf.mxu0
  %v1535 = vadd.f32 %v84, %v1534
  %v1536 = vpop.f32.mrf.mxu0
  %1537 = vmatprep.mubr.f32.mxu0 0.0
  %1538 = vmatmul.mubr.f32.gmra.mxu0 %v1372
  %v1539 = vpop.f32.mrf.mxu0
  %v1540 = vadd.f32 %v84, %v1539
  %v1541 = vpop.f32.mrf.mxu0
  %1542 = vmatprep.mubr.f32.mxu0 0.0
  %1543 = vmatmul.mubr.f32.gmra.mxu0 %v1373
  %v1544 = vpop.f32.mrf.mxu0
  %v1545 = vadd.f32 %v84, %v1544
  %v1546 = vpop.f32.mrf.mxu0
  %1547 = vmatprep.mubr.f32.mxu0 0.0
  %1548 = vmatmul.mubr.f32.gmra.mxu0 %v1374
  %v1549 = vpop.f32.mrf.mxu0
  %v1550 = vadd.f32 %v84, %v1549
  %v1551 = vpop.f32.mrf.mxu0
  %1552 = vmatprep.mubr.f32.mxu0 0.0
  %1553 = vmatmul.mubr.f32.gmra.mxu0 %v1375
  %v1554 = vpop.f32.mrf.mxu0
  %v1555 = vadd.f32 %v84, %v1554
  %v1556 = vpop.f32.mrf.mxu0
  %1557 = vmatprep.mubr.f32.mxu0 0.0
  %1558 = vmatmul.mubr.f32.gmra.mxu0 %v1376
  %v1559 = vpop.f32.mrf.mxu0
  %v1560 = vadd.f32 %v84, %v1559
  %v1561 = vpop.f32.mrf.mxu0
  %1562 = vmatprep.mubr.f32.mxu0 0.0
  %1563 = vmatmul.mubr.f32.gmra.mxu0 %v1377
  %v1564 = vpop.f32.mrf.mxu0
  %v1565 = vadd.f32 %v84, %v1564
  %v1566 = vpop.f32.mrf.mxu0
  %1567 = vmatprep.mubr.f32.mxu0 0.0
  %1568 = vmatmul.mubr.f32.gmra.mxu0 %v1378
  %v1569 = vpop.f32.mrf.mxu0
  %v1570 = vadd.f32 %v84, %v1569
  %v1571 = vpop.f32.mrf.mxu0
  %1572 = vmatprep.mubr.f32.mxu0 0.0
  %1573 = vmatmul.mubr.f32.gmra.mxu0 %v1379
  %v1574 = vpop.f32.mrf.mxu0
  %v1575 = vadd.f32 %v84, %v1574
  %v1576 = vpop.f32.mrf.mxu0
  %1577 = vmatprep.mubr.f32.mxu0 0.0
  %1578 = vmatmul.mubr.f32.gmra.mxu0 %v1380
  %v1579 = vpop.f32.mrf.mxu0
  %v1580 = vadd.f32 %v84, %v1579
  %v1581 = vpop.f32.mrf.mxu0
  %1582 = vmatprep.mubr.f32.mxu0 0.0
  %1583 = vmatmul.mubr.f32.gmra.mxu0 %v1381
  %v1584 = vpop.f32.mrf.mxu0
  %v1585 = vadd.f32 %v84, %v1584
  %v1586 = vpop.f32.mrf.mxu0
  %1587 = vmatprep.mubr.f32.mxu0 0.0
  %1588 = vmatmul.mubr.f32.gmra.mxu0 %v1382
  %v1589 = vpop.f32.mrf.mxu0
  %v1590 = vadd.f32 %v84, %v1589
  %v1591 = vpop.f32.mrf.mxu0
  %1592 = vmatprep.mubr.f32.mxu0 0.0
  %1593 = vmatmul.mubr.f32.gmra.mxu0 %v1383
  %v1594 = vpop.f32.mrf.mxu0
  %v1595 = vadd.f32 %v84, %v1594
  %v1596 = vpop.f32.mrf.mxu0
  %1597 = vmatprep.mubr.f32.mxu0 0.0
  %1598 = vmatmul.mubr.f32.gmra.mxu0 %v1384
  %v1599 = vpop.f32.mrf.mxu0
  %v1600 = vadd.f32 %v84, %v1599
  %v1601 = vpop.f32.mrf.mxu0
  %1602 = vmatprep.mubr.f32.mxu0 0.0
  %1603 = vmatmul.mubr.f32.gmra.mxu0 %v1385
  %v1604 = vpop.f32.mrf.mxu0
  %v1605 = vadd.f32 %v84, %v1604
  %v1606 = vpop.f32.mrf.mxu0
  %1607 = vmatprep.mubr.f32.mxu0 0.0
  %1608 = vmatmul.mubr.f32.gmra.mxu0 %v1386
  %v1609 = vpop.f32.mrf.mxu0
  %v1610 = vadd.f32 %v84, %v1609
  %v1611 = vpop.f32.mrf.mxu0
  %1612 = vmatprep.mubr.f32.mxu0 0.0
  %1613 = vmatmul.mubr.f32.gmra.mxu0 %v1387
  %v1614 = vpop.f32.mrf.mxu0
  %v1615 = vadd.f32 %v84, %v1614
  %v1616 = vpop.f32.mrf.mxu0
  %1617 = vmatprep.mubr.f32.mxu0 0.0
  %1618 = vmatmul.mubr.f32.gmra.mxu0 %v1388
  %v1619 = vpop.f32.mrf.mxu0
  %v1620 = vadd.f32 %v84, %v1619
  %v1621 = vpop.f32.mrf.mxu0
  %1622 = vmatprep.mubr.f32.mxu0 0.0
  %1623 = vmatmul.mubr.f32.gmra.mxu0 %v1389
  %v1624 = vpop.f32.mrf.mxu0
  %v1625 = vadd.f32 %v84, %v1624
  %v1626 = vpop.f32.mrf.mxu0
  %1627 = vmatprep.mubr.f32.mxu0 0.0
  %1628 = vmatmul.mubr.f32.gmra.mxu0 %v1390
  %v1629 = vpop.f32.mrf.mxu0
  %v1630 = vadd.f32 %v84, %v1629
  %v1631 = vpop.f32.mrf.mxu0
  %1632 = vmatprep.mubr.f32.mxu0 0.0
  %1633 = vmatmul.mubr.f32.gmra.mxu0 %v1391
  %v1634 = vpop.f32.mrf.mxu0
  %v1635 = vadd.f32 %v84, %v1634
  %v1636 = vpop.f32.mrf.mxu0
  %1637 = vmatprep.mubr.f32.mxu0 0.0
  %1638 = vmatmul.mubr.f32.gmra.mxu0 %v1392
  %v1639 = vpop.f32.mrf.mxu0
  %v1640 = vadd.f32 %v84, %v1639
  %v1641 = vpop.f32.mrf.mxu0
  %1642 = vmatprep.mubr.f32.mxu0 0.0
  %1643 = vmatmul.mubr.f32.gmra.mxu0 %v1393
  %v1644 = vpop.f32.mrf.mxu0
  %v1645 = vadd.f32 %v84, %v1644
  %v1646 = vpop.f32.mrf.mxu0
  %1647 = vmatprep.mubr.f32.mxu0 0.0
  %1648 = vmatmul.mubr.f32.gmra.mxu0 %v1394
  %v1649 = vpop.f32.mrf.mxu0
  %v1650 = vadd.f32 %v84, %v1649
  %v1651 = vpop.f32.mrf.mxu0
  %1652 = vmatprep.mubr.f32.mxu0 0.0
  %1653 = vmatmul.mubr.f32.gmra.mxu0 %v1395
  %v1654 = vpop.f32.mrf.mxu0
  %v1655 = vadd.f32 %v84, %v1654
  %v1656 = vpop.f32.mrf.mxu0
  %1657 = vmatprep.mubr.f32.mxu0 0.0
  %1658 = vmatmul.mubr.f32.gmra.mxu0 %v1396
  %v1659 = vpop.f32.mrf.mxu0
  %v1660 = vadd.f32 %v84, %v1659
  %v1661 = vpop.f32.mrf.mxu0
  %1662 = vmatprep.mubr.f32.mxu0 0.0
  %1663 = vmatmul.mubr.f32.gmra.mxu0 %v1397
  %v1664 = vpop.f32.mrf.mxu0
  %v1665 = vadd.f32 %v84, %v1664
  %v1666 = vpop.f32.mrf.mxu0
  %1667 = vmatprep.mubr.f32.mxu0 0.0
  %1668 = vmatmul.mubr.f32.gmra.mxu0 %v1398
  %v1669 = vpop.f32.mrf.mxu0
  %v1670 = vadd.f32 %v84, %v1669
  %v1671 = vpop.f32.mrf.mxu0
  %1672 = vmatprep.mubr.f32.mxu0 0.0
  %1673 = vmatmul.mubr.f32.gmra.mxu0 %v1399
  %v1674 = vpop.f32.mrf.mxu0
  %v1675 = vadd.f32 %v84, %v1674
  %v1676 = vpop.f32.mrf.mxu0
  %1677 = vmatprep.mubr.f32.mxu0 0.0
  %1678 = vmatmul.mubr.f32.gmra.mxu0 %v1400
  %v1679 = vpop.f32.mrf.mxu0
  %v1680 = vadd.f32 %v84, %v1679
  %v1681 = vpop.f32.mrf.mxu0
  %1682 = vmatprep.mubr.f32.mxu0 0.0
  %1683 = vmatmul.mubr.f32.gmra.mxu0 %v1401
  %v1684 = vpop.f32.mrf.mxu0
  %v1685 = vadd.f32 %v84, %v1684
  %v1686 = vpop.f32.mrf.mxu0
  %1687 = vmatprep.mubr.f32.mxu0 0.0
  %1688 = vmatmul.mubr.f32.gmra.mxu0 %v1402
  %v1689 = vpop.f32.mrf.mxu0
  %v1690 = vadd.f32 %v84, %v1689
  %v1691 = vpop.f32.mrf.mxu0
  %1692 = vmatprep.mubr.f32.mxu0 0.0
  %1693 = vmatmul.mubr.f32.gmra.mxu0 %v1403
  %v1694 = vpop.f32.mrf.mxu0
  %v1695 = vadd.f32 %v84, %v1694
  %v1696 = vpop.f32.mrf.mxu0
  %1697 = vmatprep.mubr.f32.mxu0 0.0
  %1698 = vmatmul.mubr.f32.gmra.mxu0 %v1404
  %v1699 = vpop.f32.mrf.mxu0
  %v1700 = vadd.f32 %v84, %v1699
  %v1701 = vpop.f32.mrf.mxu0
  %1702 = vmatprep.mubr.f32.mxu0 0.0
  %1703 = vmatmul.mubr.f32.gmra.mxu0 %v1405
  %v1704 = vpop.f32.mrf.mxu0
  %v1705 = vadd.f32 %v84, %v1704
  %v1706 = vpop.f32.mrf.mxu0
  %1707 = vmatprep.mubr.f32.mxu0 0.0
  %1708 = vmatmul.mubr.f32.gmra.mxu0 %v1406
  %v1709 = vpop.f32.mrf.mxu0
  %v1710 = vadd.f32 %v84, %v1709
  %v1711 = vpop.f32.mrf.mxu0
  %1712 = vmatprep.mubr.f32.mxu0 0.0
  %1713 = vmatmul.mubr.f32.gmra.mxu0 %v1407
  %v1714 = vpop.f32.mrf.mxu0
  %v1715 = vadd.f32 %v84, %v1714
  %v1716 = vpop.f32.mrf.mxu0
  %1717 = vdwg.mxu0
  %v1718 = vmax.f32 %v1475, 0.0
  %v1719 = vmax.f32 %v1480, 0.0
  %v1720 = vmax.f32 %v1485, 0.0
  %v1721 = vmax.f32 %v1490, 0.0
  %v1722 = vmax.f32 %v1495, 0.0
  %v1723 = vmax.f32 %v1500, 0.0
  %v1724 = vmax.f32 %v1505, 0.0
  %v1725 = vmax.f32 %v1510, 0.0
  %v1726 = vmax.f32 %v1515, 0.0
  %v1727 = vmax.f32 %v1520, 0.0
  %v1728 = vmax.f32 %v1525, 0.0
  %v1729 = vmax.f32 %v1530, 0.0
  %v1730 = vmax.f32 %v1535, 0.0
  %v1731 = vmax.f32 %v1540, 0.0
  %v1732 = vmax.f32 %v1545, 0.0
  %v1733 = vmax.f32 %v1550, 0.0
  %v1734 = vmax.f32 %v1555, 0.0
  %v1735 = vmax.f32 %v1560, 0.0
  %v1736 = vmax.f32 %v1565, 0.0
  %v1737 = vmax.f32 %v1570, 0.0
  %v1738 = vmax.f32 %v1575, 0.0
  %v1739 = vmax.f32 %v1580, 0.0
  %v1740 = vmax.f32 %v1585, 0.0
  %v1741 = vmax.f32 %v1590, 0.0
  %v1742 = vmax.f32 %v1595, 0.0
  %v1743 = vmax.f32 %v1600, 0.0
  %v1744 = vmax.f32 %v1605, 0.0
  %v1745 = vmax.f32 %v1610, 0.0
  %v1746 = vmax.f32 %v1615, 0.0
  %v1747 = vmax.f32 %v1620, 0.0
  %v1748 = vmax.f32 %v1625, 0.0
  %v1749 = vmax.f32 %v1630, 0.0
  %v1750 = vmax.f32 %v1635, 0.0
  %v1751 = vmax.f32 %v1640, 0.0
  %v1752 = vmax.f32 %v1645, 0.0
  %v1753 = vmax.f32 %v1650, 0.0
  %v1754 = vmax.f32 %v1655, 0.0
  %v1755 = vmax.f32 %v1660, 0.0
  %v1756 = vmax.f32 %v1665, 0.0
  %v1757 = vmax.f32 %v1670, 0.0
  %v1758 = vmax.f32 %v1675, 0.0
  %v1759 = vmax.f32 %v1680, 0.0
  %v1760 = vmax.f32 %v1685, 0.0
  %v1761 = vmax.f32 %v1690, 0.0
  %v1762 = vmax.f32 %v1695, 0.0
  %v1763 = vmax.f32 %v1700, 0.0
  %v1764 = vmax.f32 %v1705, 0.0
  %v1765 = vmax.f32 %v1710, 0.0
  %v1766 = vmax.f32 %v1715, 0.0
  %v1767 = vmax.f32 %v1310, %v1718
  %v1768 = vmax.f32 %v1311, %v1719
  %v1769 = vmax.f32 %v1312, %v1720
  %v1770 = vmax.f32 %v1313, %v1721
  %v1771 = vmax.f32 %v1314, %v1722
  %v1772 = vmax.f32 %v1315, %v1723
  %v1773 = vmax.f32 %v1316, %v1724
  %v1774 = vmax.f32 %v1317, %v1725
  %v1775 = vmax.f32 %v1318, %v1726
  %v1776 = vmax.f32 %v1319, %v1727
  %v1777 = vmax.f32 %v1320, %v1728
  %v1778 = vmax.f32 %v1321, %v1729
  %v1779 = vmax.f32 %v1322, %v1730
  %v1780 = vmax.f32 %v1323, %v1731
  %v1781 = vmax.f32 %v1324, %v1732
  %v1782 = vmax.f32 %v1325, %v1733
  %v1783 = vmax.f32 %v1326, %v1734
  %v1784 = vmax.f32 %v1327, %v1735
  %v1785 = vmax.f32 %v1328, %v1736
  %v1786 = vmax.f32 %v1329, %v1737
  %v1787 = vmax.f32 %v1330, %v1738
  %v1788 = vmax.f32 %v1331, %v1739
  %v1789 = vmax.f32 %v1332, %v1740
  %v1790 = vmax.f32 %v1333, %v1741
  %v1791 = vmax.f32 %v1334, %v1742
  %v1792 = vmax.f32 %v1335, %v1743
  %v1793 = vmax.f32 %v1336, %v1744
  %v1794 = vmax.f32 %v1337, %v1745
  %v1795 = vmax.f32 %v1338, %v1746
  %v1796 = vmax.f32 %v1339, %v1747
  %v1797 = vmax.f32 %v1340, %v1748
  %v1798 = vmax.f32 %v1341, %v1749
  %v1799 = vmax.f32 %v1342, %v1750
  %v1800 = vmax.f32 %v1343, %v1751
  %v1801 = vmax.f32 %v1344, %v1752
  %v1802 = vmax.f32 %v1345, %v1753
  %v1803 = vmax.f32 %v1346, %v1754
  %v1804 = vmax.f32 %v1347, %v1755
  %v1805 = vmax.f32 %v1348, %v1756
  %v1806 = vmax.f32 %v1349, %v1757
  %v1807 = vmax.f32 %v1350, %v1758
  %v1808 = vmax.f32 %v1351, %v1759
  %v1809 = vmax.f32 %v1352, %v1760
  %v1810 = vmax.f32 %v1353, %v1761
  %v1811 = vmax.f32 %v1354, %v1762
  %v1812 = vmax.f32 %v1355, %v1763
  %v1813 = vmax.f32 %v1356, %v1764
  %v1814 = vmax.f32 %v1357, %v1765
  %v1815 = vmax.f32 %v1358, %v1766
  %1816 = vst [vmem:[%s3] sm:$0xff] %v1767
  %1817 = vst [vmem:[%s3 + $0x8] sm:$0xff] %v1768
  %1818 = vst [vmem:[%s3 + $0x10] sm:$0xff] %v1769
  %1819 = vst [vmem:[%s3 + $0x18] sm:$0xff] %v1770
  %1820 = vst [vmem:[%s3 + $0x20] sm:$0xff] %v1771
  %1821 = vst [vmem:[%s3 + $0x28] sm:$0xff] %v1772
  %1822 = vst [vmem:[%s3 + $0x30] sm:$0xff] %v1773
  %1823 = vst [vmem:[%s3 + $0x38] sm:$0xff] %v1774
  %1824 = vst [vmem:[%s3 + $0x40] sm:$0xff] %v1775
  %1825 = vst [vmem:[%s3 + $0x48] sm:$0xff] %v1776
  %1826 = vst [vmem:[%s3 + $0x50] sm:$0xff] %v1777
  %1827 = vst [vmem:[%s3 + $0x58] sm:$0xff] %v1778
  %1828 = vst [vmem:[%s3 + $0x60] sm:$0xff] %v1779
  %1829 = vst [vmem:[%s3 + $0x68] sm:$0xff] %v1780
  %1830 = vst [vmem:[%s3 + $0x70] sm:$0xff] %v1781
  %1831 = vst [vmem:[%s3 + $0x78] sm:$0xff] %v1782
  %1832 = vst [vmem:[%s3 + $0x80] sm:$0xff] %v1783
  %1833 = vst [vmem:[%s3 + $0x88] sm:$0xff] %v1784
  %1834 = vst [vmem:[%s3 + $0x90] sm:$0xff] %v1785
  %1835 = vst [vmem:[%s3 + $0x98] sm:$0xff] %v1786
  %1836 = vst [vmem:[%s3 + $0xa0] sm:$0xff] %v1787
  %1837 = vst [vmem:[%s3 + $0xa8] sm:$0xff] %v1788
  %1838 = vst [vmem:[%s3 + $0xb0] sm:$0xff] %v1789
  %1839 = vst [vmem:[%s3 + $0xb8] sm:$0xff] %v1790
  %1840 = vst [vmem:[%s3 + $0xc0] sm:$0xff] %v1791
  %1841 = vst [vmem:[%s3 + $0xc8] sm:$0xff] %v1792
  %1842 = vst [vmem:[%s3 + $0xd0] sm:$0xff] %v1793
  %1843 = vst [vmem:[%s3 + $0xd8] sm:$0xff] %v1794
  %1844 = vst [vmem:[%s3 + $0xe0] sm:$0xff] %v1795
  %1845 = vst [vmem:[%s3 + $0xe8] sm:$0xff] %v1796
  %1846 = vst [vmem:[%s3 + $0xf0] sm:$0xff] %v1797
  %1847 = vst [vmem:[%s3 + $0xf8] sm:$0xff] %v1798
  %1848 = vst [vmem:[%s3 + $0x100] sm:$0xff] %v1799
  %1849 = vst [vmem:[%s3 + $0x108] sm:$0xff] %v1800
  %1850 = vst [vmem:[%s3 + $0x110] sm:$0xff] %v1801
  %1851 = vst [vmem:[%s3 + $0x118] sm:$0xff] %v1802
  %1852 = vst [vmem:[%s3 + $0x120] sm:$0xff] %v1803
  %1853 = vst [vmem:[%s3 + $0x128] sm:$0xff] %v1804
  %1854 = vst [vmem:[%s3 + $0x130] sm:$0xff] %v1805
  %1855 = vst [vmem:[%s3 + $0x138] sm:$0xff] %v1806
  %1856 = vst [vmem:[%s3 + $0x140] sm:$0xff] %v1807
  %1857 = vst [vmem:[%s3 + $0x148] sm:$0xff] %v1808
  %1858 = vst [vmem:[%s3 + $0x150] sm:$0xff] %v1809
  %1859 = vst [vmem:[%s3 + $0x158] sm:$0xff] %v1810
  %1860 = vst [vmem:[%s3 + $0x160] sm:$0xff] %v1811
  %1861 = vst [vmem:[%s3 + $0x168] sm:$0xff] %v1812
  %1862 = vst [vmem:[%s3 + $0x170] sm:$0xff] %v1813
  %1863 = vst [vmem:[%s3 + $0x178] sm:$0xff] %v1814
  %1864 = vst [vmem:[%s3 + $0x180] sm:$0xff] %v1815
  // Predicated region
  $region14: #{net_forward.3} parent=0 // pred_check
    _
  $region15: #{net_forward.3} parent=0 // pred_check_branch
    %1866 = sbr.rel (0) target = $region17
  $region16: #{net_forward.3} parent=0 // pred_region
    _
  $region17: #{net_forward.3} parent=0 // pred_fallthru
    _
  // Predicated region
  $region18: #{net_forward.3} parent=0 // pred_check
    _
  $region19: #{net_forward.3} parent=0 // pred_check_branch
    %1868 = sbr.rel (0) target = $region21
  $region20: #{net_forward.3} parent=0 // pred_region
    _
  $region21: #{net_forward.3} parent=0 // pred_fallthru
    _

// kernel: net_forward.4
$region0: #{net_forward.4}
  #allocation0 [shape = 'u32[]', space=smem, size = 0x4, offset = 0x4, fixed_abs, tag = 'smem constant byte address 0x4 - core index']
  #allocation1 [shape = 'u32[144,128]{1,0:T(1,128)}', space=vmem, size = 0x12000, scoped, tag = 'internal scratch']
  %s0 = inlined_call_operand.vmem [shape: f32[224,256], index: 0, kind: input, shape index: {}]
  %s1 = inlined_call_operand.vmem [shape: f32[256,128], index: 1, kind: input, shape index: {}]
  %s2 = inlined_call_operand.vmem [shape: f32[1,128], index: 2, kind: input, shape index: {}]
  %s3 = inlined_call_operand.vmem [shape: f32[56,128], index: 3, kind: output, shape index: {}]
  %s4 = sld [smem:[#allocation0]]
  $region22: #{net_forward.4} parent=0
    _
  %s6 = ssub.s32 1, %s4
  %s7 = scalar_select 0, %s6, %s4
  // Predicated region
  $region2: #{net_forward.4} parent=0 // pred_check
    _
  $region3: #{net_forward.4} parent=0 // pred_check_branch
    %9 = sbr.rel (0) target = $region5
  $region4: #{net_forward.4} parent=0 // pred_region
    _
  $region5: #{net_forward.4} parent=0 // pred_fallthru
    _
  // Predicated region
  $region6: #{net_forward.4} parent=0 // pred_check
    _
  $region7: #{net_forward.4} parent=0 // pred_check_branch
    %11 = sbr.rel (0) target = $region9
  $region8: #{net_forward.4} parent=0 // pred_region
    _
  $region9: #{net_forward.4} parent=0 // pred_fallthru
    _
  // Predicated region
  $region10: #{net_forward.4} parent=0 // pred_check
    _
  $region11: #{net_forward.4} parent=0 // pred_check_branch
    %13 = sbr.rel (0) target = $region13
  $region12: #{net_forward.4} parent=0 // pred_region
    _
  $region13: #{net_forward.4} parent=0 // pred_fallthru
    _
  %v14 = vld [vmem:[%s1] sm:$0xff]
  %v15 = vld [vmem:[%s1 + $0x8] sm:$0xff]
  %v16 = vld [vmem:[%s1 + $0x10] sm:$0xff]
  %v17 = vld [vmem:[%s1 + $0x18] sm:$0xff]
  %v18 = vld [vmem:[%s1 + $0x20] sm:$0xff]
  %v19 = vld [vmem:[%s1 + $0x28] sm:$0xff]
  %v20 = vld [vmem:[%s1 + $0x30] sm:$0xff]
  %v21 = vld [vmem:[%s1 + $0x38] sm:$0xff]
  %v22 = vld [vmem:[%s1 + $0x40] sm:$0xff]
  %v23 = vld [vmem:[%s1 + $0x48] sm:$0xff]
  %v24 = vld [vmem:[%s1 + $0x50] sm:$0xff]
  %v25 = vld [vmem:[%s1 + $0x58] sm:$0xff]
  %v26 = vld [vmem:[%s1 + $0x60] sm:$0xff]
  %v27 = vld [vmem:[%s1 + $0x68] sm:$0xff]
  %v28 = vld [vmem:[%s1 + $0x70] sm:$0xff]
  %v29 = vld [vmem:[%s1 + $0x78] sm:$0xff]
  %v30 = vld [vmem:[%s1 + $0x80] sm:$0xff]
  %v31 = vld [vmem:[%s1 + $0x88] sm:$0xff]
  %v32 = vld [vmem:[%s1 + $0x90] sm:$0xff]
  %v33 = vld [vmem:[%s1 + $0x98] sm:$0xff]
  %v34 = vld [vmem:[%s1 + $0xa0] sm:$0xff]
  %v35 = vld [vmem:[%s1 + $0xa8] sm:$0xff]
  %v36 = vld [vmem:[%s1 + $0xb0] sm:$0xff]
  %v37 = vld [vmem:[%s1 + $0xb8] sm:$0xff]
  %v38 = vld [vmem:[%s1 + $0xc0] sm:$0xff]
  %v39 = vld [vmem:[%s1 + $0xc8] sm:$0xff]
  %v40 = vld [vmem:[%s1 + $0xd0] sm:$0xff]
  %v41 = vld [vmem:[%s1 + $0xd8] sm:$0xff]
  %v42 = vld [vmem:[%s1 + $0xe0] sm:$0xff]
  %v43 = vld [vmem:[%s1 + $0xe8] sm:$0xff]
  %v44 = vld [vmem:[%s1 + $0xf0] sm:$0xff]
  %v45 = vld [vmem:[%s1 + $0xf8] sm:$0xff]
  %v46 = vld [vmem:[%s2] sm:$0x1]
  %v47 = vld [vmem:[%s0] sm:$0xff]
  %v48 = vld [vmem:[%s0 + $0x8] sm:$0xff]
  %v49 = vld [vmem:[%s0 + $0x10] sm:$0xff]
  %v50 = vld [vmem:[%s0 + $0x18] sm:$0xff]
  %v51 = vld [vmem:[%s0 + $0x20] sm:$0xff]
  %v52 = vld [vmem:[%s0 + $0x28] sm:$0xff]
  %v53 = vld [vmem:[%s0 + $0x30] sm:$0xff]
  %v54 = vld [vmem:[%s0 + $0x38] sm:$0xff]
  %v55 = vld [vmem:[%s0 + $0x40] sm:$0xff]
  %v56 = vld [vmem:[%s0 + $0x48] sm:$0xff]
  %v57 = vld [vmem:[%s0 + $0x50] sm:$0xff]
  %v58 = vld [vmem:[%s0 + $0x58] sm:$0xff]
  %v59 = vld [vmem:[%s0 + $0x60] sm:$0xff]
  %v60 = vld [vmem:[%s0 + $0x68] sm:$0xff]
  %v62 = vlaneseq
  %v63 = vshrl.u32 %v62, 7
  %v64 = vsub.s32 0, %v63
  %v65 = vrot.slane %v46, %v64
  %67 = vmatprep.subr.mxu0 0.0
  %68 = vmatpush1.msra.mxu0 %v29
  %69 = vmatprep.subr.mxu0 0.0
  %70 = vmatpush1.msra.mxu0 %v28
  %71 = vmatprep.subr.mxu0 0.0
  %72 = vmatpush1.msra.mxu0 %v27
  %73 = vmatprep.subr.mxu0 0.0
  %74 = vmatpush1.msra.mxu0 %v26
  %75 = vmatprep.subr.mxu0 0.0
  %76 = vmatpush1.msra.mxu0 %v25
  %77 = vmatprep.subr.mxu0 0.0
  %78 = vmatpush1.msra.mxu0 %v24
  %79 = vmatprep.subr.mxu0 0.0
  %80 = vmatpush1.msra.mxu0 %v23
  %81 = vmatprep.subr.mxu0 0.0
  %82 = vmatpush1.msra.mxu0 %v22
  %83 = vmatprep.subr.mxu0 0.0
  %84 = vmatpush1.msra.mxu0 %v21
  %85 = vmatprep.subr.mxu0 0.0
  %86 = vmatpush1.msra.mxu0 %v20
  %87 = vmatprep.subr.mxu0 0.0
  %88 = vmatpush1.msra.mxu0 %v19
  %89 = vmatprep.subr.mxu0 0.0
  %90 = vmatpush1.msra.mxu0 %v18
  %91 = vmatprep.subr.mxu0 0.0
  %92 = vmatpush1.msra.mxu0 %v17
  %93 = vmatprep.subr.mxu0 0.0
  %94 = vmatpush1.msra.mxu0 %v16
  %95 = vmatprep.subr.mxu0 0.0
  %96 = vmatpush1.msra.mxu0 %v15
  %97 = vmatprep.subr.mxu0 0.0
  %98 = vmatpush1.msra.mxu0 %v14
  %99 = vmatprep.subr.mxu0 0.0
  %100 = vmatpush2.msra.mxu0 %v45
  %101 = vmatprep.subr.mxu0 0.0
  %102 = vmatpush2.msra.mxu0 %v44
  %103 = vmatprep.subr.mxu0 0.0
  %104 = vmatpush2.msra.mxu0 %v43
  %105 = vmatprep.subr.mxu0 0.0
  %106 = vmatpush2.msra.mxu0 %v42
  %107 = vmatprep.subr.mxu0 0.0
  %108 = vmatpush2.msra.mxu0 %v41
  %109 = vmatprep.subr.mxu0 0.0
  %110 = vmatpush2.msra.mxu0 %v40
  %111 = vmatprep.subr.mxu0 0.0
  %112 = vmatpush2.msra.mxu0 %v39
  %113 = vmatprep.subr.mxu0 0.0
  %114 = vmatpush2.msra.mxu0 %v38
  %115 = vmatprep.subr.mxu0 0.0
  %116 = vmatpush2.msra.mxu0 %v37
  %117 = vmatprep.subr.mxu0 0.0
  %118 = vmatpush2.msra.mxu0 %v36
  %119 = vmatprep.subr.mxu0 0.0
  %120 = vmatpush2.msra.mxu0 %v35
  %121 = vmatprep.subr.mxu0 0.0
  %122 = vmatpush2.msra.mxu0 %v34
  %123 = vmatprep.subr.mxu0 0.0
  %124 = vmatpush2.msra.mxu0 %v33
  %125 = vmatprep.subr.mxu0 0.0
  %126 = vmatpush2.msra.mxu0 %v32
  %127 = vmatprep.subr.mxu0 0.0
  %128 = vmatpush2.msra.mxu0 %v31
  %129 = vmatprep.subr.mxu0 0.0
  %130 = vmatpush2.msra.mxu0 %v30
  %131 = vmatprep.mubr.f32.mxu0 %v48
  %132 = vmatmul.mubr.f32.gmra.mxu0 %v47
  %v133 = vpop.f32.mrf.mxu0
  %v134 = vadd.f32 %v65, %v133
  %v135 = vpop.f32.mrf.mxu0
  %136 = vmatprep.mubr.f32.mxu0 %v50
  %137 = vmatmul.mubr.f32.gmra.mxu0 %v49
  %v138 = vpop.f32.mrf.mxu0
  %v139 = vadd.f32 %v65, %v138
  %v140 = vpop.f32.mrf.mxu0
  %141 = vmatprep.mubr.f32.mxu0 %v52
  %142 = vmatmul.mubr.f32.gmra.mxu0 %v51
  %v143 = vpop.f32.mrf.mxu0
  %v144 = vadd.f32 %v65, %v143
  %v145 = vpop.f32.mrf.mxu0
  %146 = vmatprep.mubr.f32.mxu0 %v54
  %147 = vmatmul.mubr.f32.gmra.mxu0 %v53
  %v148 = vpop.f32.mrf.mxu0
  %v149 = vadd.f32 %v65, %v148
  %v150 = vpop.f32.mrf.mxu0
  %151 = vmatprep.mubr.f32.mxu0 %v56
  %152 = vmatmul.mubr.f32.gmra.mxu0 %v55
  %v153 = vpop.f32.mrf.mxu0
  %v154 = vadd.f32 %v65, %v153
  %v155 = vpop.f32.mrf.mxu0
  %156 = vmatprep.mubr.f32.mxu0 %v58
  %157 = vmatmul.mubr.f32.gmra.mxu0 %v57
  %v158 = vpop.f32.mrf.mxu0
  %v159 = vadd.f32 %v65, %v158
  %v160 = vpop.f32.mrf.mxu0
  %161 = vmatprep.mubr.f32.mxu0 %v60
  %162 = vmatmul.mubr.f32.gmra.mxu0 %v59
  %v163 = vpop.f32.mrf.mxu0
  %v164 = vadd.f32 %v65, %v163
  %v165 = vpop.f32.mrf.mxu0
  %166 = vdwg.mxu0
  %v167 = vmax.f32 %v134, 0.0
  %v168 = vmax.f32 %v139, 0.0
  %v169 = vmax.f32 %v144, 0.0
  %v170 = vmax.f32 %v149, 0.0
  %v171 = vmax.f32 %v154, 0.0
  %v172 = vmax.f32 %v159, 0.0
  %v173 = vmax.f32 %v164, 0.0
  %v174 = vld [vmem:[%s0 + $0x70] sm:$0xff]
  %v175 = vld [vmem:[%s0 + $0x78] sm:$0xff]
  %v176 = vld [vmem:[%s0 + $0x80] sm:$0xff]
  %v177 = vld [vmem:[%s0 + $0x88] sm:$0xff]
  %v178 = vld [vmem:[%s0 + $0x90] sm:$0xff]
  %v179 = vld [vmem:[%s0 + $0x98] sm:$0xff]
  %v180 = vld [vmem:[%s0 + $0xa0] sm:$0xff]
  %v181 = vld [vmem:[%s0 + $0xa8] sm:$0xff]
  %v182 = vld [vmem:[%s0 + $0xb0] sm:$0xff]
  %v183 = vld [vmem:[%s0 + $0xb8] sm:$0xff]
  %v184 = vld [vmem:[%s0 + $0xc0] sm:$0xff]
  %v185 = vld [vmem:[%s0 + $0xc8] sm:$0xff]
  %v186 = vld [vmem:[%s0 + $0xd0] sm:$0xff]
  %v187 = vld [vmem:[%s0 + $0xd8] sm:$0xff]
  %188 = vmatprep.subr.mxu0 0.0
  %189 = vmatpush1.msra.mxu0 %v29
  %190 = vmatprep.subr.mxu0 0.0
  %191 = vmatpush1.msra.mxu0 %v28
  %192 = vmatprep.subr.mxu0 0.0
  %193 = vmatpush1.msra.mxu0 %v27
  %194 = vmatprep.subr.mxu0 0.0
  %195 = vmatpush1.msra.mxu0 %v26
  %196 = vmatprep.subr.mxu0 0.0
  %197 = vmatpush1.msra.mxu0 %v25
  %198 = vmatprep.subr.mxu0 0.0
  %199 = vmatpush1.msra.mxu0 %v24
  %200 = vmatprep.subr.mxu0 0.0
  %201 = vmatpush1.msra.mxu0 %v23
  %202 = vmatprep.subr.mxu0 0.0
  %203 = vmatpush1.msra.mxu0 %v22
  %204 = vmatprep.subr.mxu0 0.0
  %205 = vmatpush1.msra.mxu0 %v21
  %206 = vmatprep.subr.mxu0 0.0
  %207 = vmatpush1.msra.mxu0 %v20
  %208 = vmatprep.subr.mxu0 0.0
  %209 = vmatpush1.msra.mxu0 %v19
  %210 = vmatprep.subr.mxu0 0.0
  %211 = vmatpush1.msra.mxu0 %v18
  %212 = vmatprep.subr.mxu0 0.0
  %213 = vmatpush1.msra.mxu0 %v17
  %214 = vmatprep.subr.mxu0 0.0
  %215 = vmatpush1.msra.mxu0 %v16
  %216 = vmatprep.subr.mxu0 0.0
  %217 = vmatpush1.msra.mxu0 %v15
  %218 = vmatprep.subr.mxu0 0.0
  %219 = vmatpush1.msra.mxu0 %v14
  %220 = vmatprep.subr.mxu0 0.0
  %221 = vmatpush2.msra.mxu0 %v45
  %222 = vmatprep.subr.mxu0 0.0
  %223 = vmatpush2.msra.mxu0 %v44
  %224 = vmatprep.subr.mxu0 0.0
  %225 = vmatpush2.msra.mxu0 %v43
  %226 = vmatprep.subr.mxu0 0.0
  %227 = vmatpush2.msra.mxu0 %v42
  %228 = vmatprep.subr.mxu0 0.0
  %229 = vmatpush2.msra.mxu0 %v41
  %230 = vmatprep.subr.mxu0 0.0
  %231 = vmatpush2.msra.mxu0 %v40
  %232 = vmatprep.subr.mxu0 0.0
  %233 = vmatpush2.msra.mxu0 %v39
  %234 = vmatprep.subr.mxu0 0.0
  %235 = vmatpush2.msra.mxu0 %v38
  %236 = vmatprep.subr.mxu0 0.0
  %237 = vmatpush2.msra.mxu0 %v37
  %238 = vmatprep.subr.mxu0 0.0
  %239 = vmatpush2.msra.mxu0 %v36
  %240 = vmatprep.subr.mxu0 0.0
  %241 = vmatpush2.msra.mxu0 %v35
  %242 = vmatprep.subr.mxu0 0.0
  %243 = vmatpush2.msra.mxu0 %v34
  %244 = vmatprep.subr.mxu0 0.0
  %245 = vmatpush2.msra.mxu0 %v33
  %246 = vmatprep.subr.mxu0 0.0
  %247 = vmatpush2.msra.mxu0 %v32
  %248 = vmatprep.subr.mxu0 0.0
  %249 = vmatpush2.msra.mxu0 %v31
  %250 = vmatprep.subr.mxu0 0.0
  %251 = vmatpush2.msra.mxu0 %v30
  %252 = vmatprep.mubr.f32.mxu0 %v175
  %253 = vmatmul.mubr.f32.gmra.mxu0 %v174
  %v254 = vpop.f32.mrf.mxu0
  %v255 = vadd.f32 %v65, %v254
  %v256 = vpop.f32.mrf.mxu0
  %257 = vmatprep.mubr.f32.mxu0 %v177
  %258 = vmatmul.mubr.f32.gmra.mxu0 %v176
  %v259 = vpop.f32.mrf.mxu0
  %v260 = vadd.f32 %v65, %v259
  %v261 = vpop.f32.mrf.mxu0
  %262 = vmatprep.mubr.f32.mxu0 %v179
  %263 = vmatmul.mubr.f32.gmra.mxu0 %v178
  %v264 = vpop.f32.mrf.mxu0
  %v265 = vadd.f32 %v65, %v264
  %v266 = vpop.f32.mrf.mxu0
  %267 = vmatprep.mubr.f32.mxu0 %v181
  %268 = vmatmul.mubr.f32.gmra.mxu0 %v180
  %v269 = vpop.f32.mrf.mxu0
  %v270 = vadd.f32 %v65, %v269
  %v271 = vpop.f32.mrf.mxu0
  %272 = vmatprep.mubr.f32.mxu0 %v183
  %273 = vmatmul.mubr.f32.gmra.mxu0 %v182
  %v274 = vpop.f32.mrf.mxu0
  %v275 = vadd.f32 %v65, %v274
  %v276 = vpop.f32.mrf.mxu0
  %277 = vmatprep.mubr.f32.mxu0 %v185
  %278 = vmatmul.mubr.f32.gmra.mxu0 %v184
  %v279 = vpop.f32.mrf.mxu0
  %v280 = vadd.f32 %v65, %v279
  %v281 = vpop.f32.mrf.mxu0
  %282 = vmatprep.mubr.f32.mxu0 %v187
  %283 = vmatmul.mubr.f32.gmra.mxu0 %v186
  %v284 = vpop.f32.mrf.mxu0
  %v285 = vadd.f32 %v65, %v284
  %v286 = vpop.f32.mrf.mxu0
  %287 = vdwg.mxu0
  %v288 = vmax.f32 %v255, 0.0
  %v289 = vmax.f32 %v260, 0.0
  %v290 = vmax.f32 %v265, 0.0
  %v291 = vmax.f32 %v270, 0.0
  %v292 = vmax.f32 %v275, 0.0
  %v293 = vmax.f32 %v280, 0.0
  %v294 = vmax.f32 %v285, 0.0
  %v295 = vmax.f32 %v167, %v288
  %v296 = vmax.f32 %v168, %v289
  %v297 = vmax.f32 %v169, %v290
  %v298 = vmax.f32 %v170, %v291
  %v299 = vmax.f32 %v171, %v292
  %v300 = vmax.f32 %v172, %v293
  %v301 = vmax.f32 %v173, %v294
  %v302 = vld [vmem:[%s0 + $0xe0] sm:$0xff]
  %v303 = vld [vmem:[%s0 + $0xe8] sm:$0xff]
  %v304 = vld [vmem:[%s0 + $0xf0] sm:$0xff]
  %v305 = vld [vmem:[%s0 + $0xf8] sm:$0xff]
  %v306 = vld [vmem:[%s0 + $0x100] sm:$0xff]
  %v307 = vld [vmem:[%s0 + $0x108] sm:$0xff]
  %v308 = vld [vmem:[%s0 + $0x110] sm:$0xff]
  %v309 = vld [vmem:[%s0 + $0x118] sm:$0xff]
  %v310 = vld [vmem:[%s0 + $0x120] sm:$0xff]
  %v311 = vld [vmem:[%s0 + $0x128] sm:$0xff]
  %v312 = vld [vmem:[%s0 + $0x130] sm:$0xff]
  %v313 = vld [vmem:[%s0 + $0x138] sm:$0xff]
  %v314 = vld [vmem:[%s0 + $0x140] sm:$0xff]
  %v315 = vld [vmem:[%s0 + $0x148] sm:$0xff]
  %316 = vmatprep.subr.mxu0 0.0
  %317 = vmatpush1.msra.mxu0 %v29
  %318 = vmatprep.subr.mxu0 0.0
  %319 = vmatpush1.msra.mxu0 %v28
  %320 = vmatprep.subr.mxu0 0.0
  %321 = vmatpush1.msra.mxu0 %v27
  %322 = vmatprep.subr.mxu0 0.0
  %323 = vmatpush1.msra.mxu0 %v26
  %324 = vmatprep.subr.mxu0 0.0
  %325 = vmatpush1.msra.mxu0 %v25
  %326 = vmatprep.subr.mxu0 0.0
  %327 = vmatpush1.msra.mxu0 %v24
  %328 = vmatprep.subr.mxu0 0.0
  %329 = vmatpush1.msra.mxu0 %v23
  %330 = vmatprep.subr.mxu0 0.0
  %331 = vmatpush1.msra.mxu0 %v22
  %332 = vmatprep.subr.mxu0 0.0
  %333 = vmatpush1.msra.mxu0 %v21
  %334 = vmatprep.subr.mxu0 0.0
  %335 = vmatpush1.msra.mxu0 %v20
  %336 = vmatprep.subr.mxu0 0.0
  %337 = vmatpush1.msra.mxu0 %v19
  %338 = vmatprep.subr.mxu0 0.0
  %339 = vmatpush1.msra.mxu0 %v18
  %340 = vmatprep.subr.mxu0 0.0
  %341 = vmatpush1.msra.mxu0 %v17
  %342 = vmatprep.subr.mxu0 0.0
  %343 = vmatpush1.msra.mxu0 %v16
  %344 = vmatprep.subr.mxu0 0.0
  %345 = vmatpush1.msra.mxu0 %v15
  %346 = vmatprep.subr.mxu0 0.0
  %347 = vmatpush1.msra.mxu0 %v14
  %348 = vmatprep.subr.mxu0 0.0
  %349 = vmatpush2.msra.mxu0 %v45
  %350 = vmatprep.subr.mxu0 0.0
  %351 = vmatpush2.msra.mxu0 %v44
  %352 = vmatprep.subr.mxu0 0.0
  %353 = vmatpush2.msra.mxu0 %v43
  %354 = vmatprep.subr.mxu0 0.0
  %355 = vmatpush2.msra.mxu0 %v42
  %356 = vmatprep.subr.mxu0 0.0
  %357 = vmatpush2.msra.mxu0 %v41
  %358 = vmatprep.subr.mxu0 0.0
  %359 = vmatpush2.msra.mxu0 %v40
  %360 = vmatprep.subr.mxu0 0.0
  %361 = vmatpush2.msra.mxu0 %v39
  %362 = vmatprep.subr.mxu0 0.0
  %363 = vmatpush2.msra.mxu0 %v38
  %364 = vmatprep.subr.mxu0 0.0
  %365 = vmatpush2.msra.mxu0 %v37
  %366 = vmatprep.subr.mxu0 0.0
  %367 = vmatpush2.msra.mxu0 %v36
  %368 = vmatprep.subr.mxu0 0.0
  %369 = vmatpush2.msra.mxu0 %v35
  %370 = vmatprep.subr.mxu0 0.0
  %371 = vmatpush2.msra.mxu0 %v34
  %372 = vmatprep.subr.mxu0 0.0
  %373 = vmatpush2.msra.mxu0 %v33
  %374 = vmatprep.subr.mxu0 0.0
  %375 = vmatpush2.msra.mxu0 %v32
  %376 = vmatprep.subr.mxu0 0.0
  %377 = vmatpush2.msra.mxu0 %v31
  %378 = vmatprep.subr.mxu0 0.0
  %379 = vmatpush2.msra.mxu0 %v30
  %380 = vmatprep.mubr.f32.mxu0 %v303
  %381 = vmatmul.mubr.f32.gmra.mxu0 %v302
  %v382 = vpop.f32.mrf.mxu0
  %v383 = vadd.f32 %v65, %v382
  %v384 = vpop.f32.mrf.mxu0
  %385 = vmatprep.mubr.f32.mxu0 %v305
  %386 = vmatmul.mubr.f32.gmra.mxu0 %v304
  %v387 = vpop.f32.mrf.mxu0
  %v388 = vadd.f32 %v65, %v387
  %v389 = vpop.f32.mrf.mxu0
  %390 = vmatprep.mubr.f32.mxu0 %v307
  %391 = vmatmul.mubr.f32.gmra.mxu0 %v306
  %v392 = vpop.f32.mrf.mxu0
  %v393 = vadd.f32 %v65, %v392
  %v394 = vpop.f32.mrf.mxu0
  %395 = vmatprep.mubr.f32.mxu0 %v309
  %396 = vmatmul.mubr.f32.gmra.mxu0 %v308
  %v397 = vpop.f32.mrf.mxu0
  %v398 = vadd.f32 %v65, %v397
  %v399 = vpop.f32.mrf.mxu0
  %400 = vmatprep.mubr.f32.mxu0 %v311
  %401 = vmatmul.mubr.f32.gmra.mxu0 %v310
  %v402 = vpop.f32.mrf.mxu0
  %v403 = vadd.f32 %v65, %v402
  %v404 = vpop.f32.mrf.mxu0
  %405 = vmatprep.mubr.f32.mxu0 %v313
  %406 = vmatmul.mubr.f32.gmra.mxu0 %v312
  %v407 = vpop.f32.mrf.mxu0
  %v408 = vadd.f32 %v65, %v407
  %v409 = vpop.f32.mrf.mxu0
  %410 = vmatprep.mubr.f32.mxu0 %v315
  %411 = vmatmul.mubr.f32.gmra.mxu0 %v314
  %v412 = vpop.f32.mrf.mxu0
  %v413 = vadd.f32 %v65, %v412
  %v414 = vpop.f32.mrf.mxu0
  %415 = vdwg.mxu0
  %v416 = vmax.f32 %v383, 0.0
  %v417 = vmax.f32 %v388, 0.0
  %v418 = vmax.f32 %v393, 0.0
  %v419 = vmax.f32 %v398, 0.0
  %v420 = vmax.f32 %v403, 0.0
  %v421 = vmax.f32 %v408, 0.0
  %v422 = vmax.f32 %v413, 0.0
  %v423 = vmax.f32 %v295, %v416
  %v424 = vmax.f32 %v296, %v417
  %v425 = vmax.f32 %v297, %v418
  %v426 = vmax.f32 %v298, %v419
  %v427 = vmax.f32 %v299, %v420
  %v428 = vmax.f32 %v300, %v421
  %v429 = vmax.f32 %v301, %v422
  %v430 = vld [vmem:[%s0 + $0x150] sm:$0xff]
  %v431 = vld [vmem:[%s0 + $0x158] sm:$0xff]
  %v432 = vld [vmem:[%s0 + $0x160] sm:$0xff]
  %v433 = vld [vmem:[%s0 + $0x168] sm:$0xff]
  %v434 = vld [vmem:[%s0 + $0x170] sm:$0xff]
  %v435 = vld [vmem:[%s0 + $0x178] sm:$0xff]
  %v436 = vld [vmem:[%s0 + $0x180] sm:$0xff]
  %v437 = vld [vmem:[%s0 + $0x188] sm:$0xff]
  %v438 = vld [vmem:[%s0 + $0x190] sm:$0xff]
  %v439 = vld [vmem:[%s0 + $0x198] sm:$0xff]
  %v440 = vld [vmem:[%s0 + $0x1a0] sm:$0xff]
  %v441 = vld [vmem:[%s0 + $0x1a8] sm:$0xff]
  %v442 = vld [vmem:[%s0 + $0x1b0] sm:$0xff]
  %v443 = vld [vmem:[%s0 + $0x1b8] sm:$0xff]
  %444 = vmatprep.subr.mxu0 0.0
  %445 = vmatpush1.msra.mxu0 %v29
  %446 = vmatprep.subr.mxu0 0.0
  %447 = vmatpush1.msra.mxu0 %v28
  %448 = vmatprep.subr.mxu0 0.0
  %449 = vmatpush1.msra.mxu0 %v27
  %450 = vmatprep.subr.mxu0 0.0
  %451 = vmatpush1.msra.mxu0 %v26
  %452 = vmatprep.subr.mxu0 0.0
  %453 = vmatpush1.msra.mxu0 %v25
  %454 = vmatprep.subr.mxu0 0.0
  %455 = vmatpush1.msra.mxu0 %v24
  %456 = vmatprep.subr.mxu0 0.0
  %457 = vmatpush1.msra.mxu0 %v23
  %458 = vmatprep.subr.mxu0 0.0
  %459 = vmatpush1.msra.mxu0 %v22
  %460 = vmatprep.subr.mxu0 0.0
  %461 = vmatpush1.msra.mxu0 %v21
  %462 = vmatprep.subr.mxu0 0.0
  %463 = vmatpush1.msra.mxu0 %v20
  %464 = vmatprep.subr.mxu0 0.0
  %465 = vmatpush1.msra.mxu0 %v19
  %466 = vmatprep.subr.mxu0 0.0
  %467 = vmatpush1.msra.mxu0 %v18
  %468 = vmatprep.subr.mxu0 0.0
  %469 = vmatpush1.msra.mxu0 %v17
  %470 = vmatprep.subr.mxu0 0.0
  %471 = vmatpush1.msra.mxu0 %v16
  %472 = vmatprep.subr.mxu0 0.0
  %473 = vmatpush1.msra.mxu0 %v15
  %474 = vmatprep.subr.mxu0 0.0
  %475 = vmatpush1.msra.mxu0 %v14
  %476 = vmatprep.subr.mxu0 0.0
  %477 = vmatpush2.msra.mxu0 %v45
  %478 = vmatprep.subr.mxu0 0.0
  %479 = vmatpush2.msra.mxu0 %v44
  %480 = vmatprep.subr.mxu0 0.0
  %481 = vmatpush2.msra.mxu0 %v43
  %482 = vmatprep.subr.mxu0 0.0
  %483 = vmatpush2.msra.mxu0 %v42
  %484 = vmatprep.subr.mxu0 0.0
  %485 = vmatpush2.msra.mxu0 %v41
  %486 = vmatprep.subr.mxu0 0.0
  %487 = vmatpush2.msra.mxu0 %v40
  %488 = vmatprep.subr.mxu0 0.0
  %489 = vmatpush2.msra.mxu0 %v39
  %490 = vmatprep.subr.mxu0 0.0
  %491 = vmatpush2.msra.mxu0 %v38
  %492 = vmatprep.subr.mxu0 0.0
  %493 = vmatpush2.msra.mxu0 %v37
  %494 = vmatprep.subr.mxu0 0.0
  %495 = vmatpush2.msra.mxu0 %v36
  %496 = vmatprep.subr.mxu0 0.0
  %497 = vmatpush2.msra.mxu0 %v35
  %498 = vmatprep.subr.mxu0 0.0
  %499 = vmatpush2.msra.mxu0 %v34
  %500 = vmatprep.subr.mxu0 0.0
  %501 = vmatpush2.msra.mxu0 %v33
  %502 = vmatprep.subr.mxu0 0.0
  %503 = vmatpush2.msra.mxu0 %v32
  %504 = vmatprep.subr.mxu0 0.0
  %505 = vmatpush2.msra.mxu0 %v31
  %506 = vmatprep.subr.mxu0 0.0
  %507 = vmatpush2.msra.mxu0 %v30
  %508 = vmatprep.mubr.f32.mxu0 %v431
  %509 = vmatmul.mubr.f32.gmra.mxu0 %v430
  %v510 = vpop.f32.mrf.mxu0
  %v511 = vadd.f32 %v65, %v510
  %v512 = vpop.f32.mrf.mxu0
  %513 = vmatprep.mubr.f32.mxu0 %v433
  %514 = vmatmul.mubr.f32.gmra.mxu0 %v432
  %v515 = vpop.f32.mrf.mxu0
  %v516 = vadd.f32 %v65, %v515
  %v517 = vpop.f32.mrf.mxu0
  %518 = vmatprep.mubr.f32.mxu0 %v435
  %519 = vmatmul.mubr.f32.gmra.mxu0 %v434
  %v520 = vpop.f32.mrf.mxu0
  %v521 = vadd.f32 %v65, %v520
  %v522 = vpop.f32.mrf.mxu0
  %523 = vmatprep.mubr.f32.mxu0 %v437
  %524 = vmatmul.mubr.f32.gmra.mxu0 %v436
  %v525 = vpop.f32.mrf.mxu0
  %v526 = vadd.f32 %v65, %v525
  %v527 = vpop.f32.mrf.mxu0
  %528 = vmatprep.mubr.f32.mxu0 %v439
  %529 = vmatmul.mubr.f32.gmra.mxu0 %v438
  %v530 = vpop.f32.mrf.mxu0
  %v531 = vadd.f32 %v65, %v530
  %v532 = vpop.f32.mrf.mxu0
  %533 = vmatprep.mubr.f32.mxu0 %v441
  %534 = vmatmul.mubr.f32.gmra.mxu0 %v440
  %v535 = vpop.f32.mrf.mxu0
  %v536 = vadd.f32 %v65, %v535
  %v537 = vpop.f32.mrf.mxu0
  %538 = vmatprep.mubr.f32.mxu0 %v443
  %539 = vmatmul.mubr.f32.gmra.mxu0 %v442
  %v540 = vpop.f32.mrf.mxu0
  %v541 = vadd.f32 %v65, %v540
  %v542 = vpop.f32.mrf.mxu0
  %543 = vdwg.mxu0
  %v544 = vmax.f32 %v511, 0.0
  %v545 = vmax.f32 %v516, 0.0
  %v546 = vmax.f32 %v521, 0.0
  %v547 = vmax.f32 %v526, 0.0
  %v548 = vmax.f32 %v531, 0.0
  %v549 = vmax.f32 %v536, 0.0
  %v550 = vmax.f32 %v541, 0.0
  %v551 = vmax.f32 %v423, %v544
  %v552 = vmax.f32 %v424, %v545
  %v553 = vmax.f32 %v425, %v546
  %v554 = vmax.f32 %v426, %v547
  %v555 = vmax.f32 %v427, %v548
  %v556 = vmax.f32 %v428, %v549
  %v557 = vmax.f32 %v429, %v550
  %558 = vst [vmem:[%s3] sm:$0xff] %v551
  %559 = vst [vmem:[%s3 + $0x8] sm:$0xff] %v552
  %560 = vst [vmem:[%s3 + $0x10] sm:$0xff] %v553
  %561 = vst [vmem:[%s3 + $0x18] sm:$0xff] %v554
  %562 = vst [vmem:[%s3 + $0x20] sm:$0xff] %v555
  %563 = vst [vmem:[%s3 + $0x28] sm:$0xff] %v556
  %564 = vst [vmem:[%s3 + $0x30] sm:$0xff] %v557
  // Predicated region
  $region14: #{net_forward.4} parent=0 // pred_check
    _
  $region15: #{net_forward.4} parent=0 // pred_check_branch
    %566 = sbr.rel (0) target = $region17
  $region16: #{net_forward.4} parent=0 // pred_region
    _
  $region17: #{net_forward.4} parent=0 // pred_fallthru
    _
  // Predicated region
  $region18: #{net_forward.4} parent=0 // pred_check
    _
  $region19: #{net_forward.4} parent=0 // pred_check_branch
    %568 = sbr.rel (0) target = $region21
  $region20: #{net_forward.4} parent=0 // pred_region
    _
  $region21: #{net_forward.4} parent=0 // pred_fallthru
    _

// kernel: net_forward.5
$region0: #{net_forward.5}
  #allocation0 [shape = 'u32[]', space=smem, size = 0x4, offset = 0x4, fixed_abs, tag = 'smem constant byte address 0x4 - core index']
  #allocation1 [shape = 'u32[144,128]{1,0:T(1,128)}', space=vmem, size = 0x12000, scoped, tag = 'internal scratch']
  %s0 = inlined_call_operand.vmem [shape: f32[8,400], index: 0, kind: input, shape index: {}]
  %s1 = inlined_call_operand.vmem [shape: f32[400,128], index: 1, kind: input, shape index: {}]
  %s2 = inlined_call_operand.vmem [shape: f32[1,128], index: 2, kind: input, shape index: {}]
  %s3 = inlined_call_operand.vmem [shape: f32[128,128], index: 3, kind: input, shape index: {}]
  %s4 = inlined_call_operand.vmem [shape: f32[1,128], index: 4, kind: input, shape index: {}]
  %s5 = inlined_call_operand.vmem [shape: f32[128,128], index: 5, kind: input, shape index: {}]
  %s6 = inlined_call_operand.vmem [shape: f32[1,128], index: 6, kind: input, shape index: {}]
  %s7 = inlined_call_operand.vmem [shape: f32[8,128], index: 7, kind: output, shape index: {}]
  %s8 = sld [smem:[#allocation0]]
  $region38: #{net_forward.5} parent=0
    _
  %s10 = ssub.s32 1, %s8
  %s11 = scalar_select 0, %s10, %s8
  // Predicated region
  $region2: #{net_forward.5} parent=0 // pred_check
    _
  $region3: #{net_forward.5} parent=0 // pred_check_branch
    %13 = sbr.rel (0) target = $region5
  $region4: #{net_forward.5} parent=0 // pred_region
    _
  $region5: #{net_forward.5} parent=0 // pred_fallthru
    _
  // Predicated region
  $region6: #{net_forward.5} parent=0 // pred_check
    _
  $region7: #{net_forward.5} parent=0 // pred_check_branch
    %15 = sbr.rel (0) target = $region9
  $region8: #{net_forward.5} parent=0 // pred_region
    _
  $region9: #{net_forward.5} parent=0 // pred_fallthru
    _
  // Predicated region
  $region10: #{net_forward.5} parent=0 // pred_check
    _
  $region11: #{net_forward.5} parent=0 // pred_check_branch
    %17 = sbr.rel (0) target = $region13
  $region12: #{net_forward.5} parent=0 // pred_region
    _
  $region13: #{net_forward.5} parent=0 // pred_fallthru
    _
  // Predicated region
  $region14: #{net_forward.5} parent=0 // pred_check
    _
  $region15: #{net_forward.5} parent=0 // pred_check_branch
    %19 = sbr.rel (0) target = $region17
  $region16: #{net_forward.5} parent=0 // pred_region
    _
  $region17: #{net_forward.5} parent=0 // pred_fallthru
    _
  // Predicated region
  $region18: #{net_forward.5} parent=0 // pred_check
    _
  $region19: #{net_forward.5} parent=0 // pred_check_branch
    %21 = sbr.rel (0) target = $region21
  $region20: #{net_forward.5} parent=0 // pred_region
    _
  $region21: #{net_forward.5} parent=0 // pred_fallthru
    _
  // Predicated region
  $region22: #{net_forward.5} parent=0 // pred_check
    _
  $region23: #{net_forward.5} parent=0 // pred_check_branch
    %23 = sbr.rel (0) target = $region25
  $region24: #{net_forward.5} parent=0 // pred_region
    _
  $region25: #{net_forward.5} parent=0 // pred_fallthru
    _
  // Predicated region
  $region26: #{net_forward.5} parent=0 // pred_check
    _
  $region27: #{net_forward.5} parent=0 // pred_check_branch
    %25 = sbr.rel (0) target = $region29
  $region28: #{net_forward.5} parent=0 // pred_region
    _
  $region29: #{net_forward.5} parent=0 // pred_fallthru
    _
  %v26 = vld [vmem:[%s0] sm:$0xff]
  %v27 = vld [vmem:[%s0 + $0x8] sm:$0xff]
  %v28 = vld [vmem:[%s0 + $0x10] sm:$0xff]
  %v29 = vld [vmem:[%s0 + $0x18] sm:$0xff]
  %v30 = vld [vmem:[%s1] sm:$0xff]
  %v31 = vld [vmem:[%s1 + $0x8] sm:$0xff]
  %v32 = vld [vmem:[%s1 + $0x10] sm:$0xff]
  %v33 = vld [vmem:[%s1 + $0x18] sm:$0xff]
  %v34 = vld [vmem:[%s1 + $0x20] sm:$0xff]
  %v35 = vld [vmem:[%s1 + $0x28] sm:$0xff]
  %v36 = vld [vmem:[%s1 + $0x30] sm:$0xff]
  %v37 = vld [vmem:[%s1 + $0x38] sm:$0xff]
  %v38 = vld [vmem:[%s1 + $0x40] sm:$0xff]
  %v39 = vld [vmem:[%s1 + $0x48] sm:$0xff]
  %v40 = vld [vmem:[%s1 + $0x50] sm:$0xff]
  %v41 = vld [vmem:[%s1 + $0x58] sm:$0xff]
  %v42 = vld [vmem:[%s1 + $0x60] sm:$0xff]
  %v43 = vld [vmem:[%s1 + $0x68] sm:$0xff]
  %v44 = vld [vmem:[%s1 + $0x70] sm:$0xff]
  %v45 = vld [vmem:[%s1 + $0x78] sm:$0xff]
  %v46 = vld [vmem:[%s1 + $0x80] sm:$0xff]
  %v47 = vld [vmem:[%s1 + $0x88] sm:$0xff]
  %v48 = vld [vmem:[%s1 + $0x90] sm:$0xff]
  %v49 = vld [vmem:[%s1 + $0x98] sm:$0xff]
  %v50 = vld [vmem:[%s1 + $0xa0] sm:$0xff]
  %v51 = vld [vmem:[%s1 + $0xa8] sm:$0xff]
  %v52 = vld [vmem:[%s1 + $0xb0] sm:$0xff]
  %v53 = vld [vmem:[%s1 + $0xb8] sm:$0xff]
  %v54 = vld [vmem:[%s1 + $0xc0] sm:$0xff]
  %v55 = vld [vmem:[%s1 + $0xc8] sm:$0xff]
  %v56 = vld [vmem:[%s1 + $0xd0] sm:$0xff]
  %v57 = vld [vmem:[%s1 + $0xd8] sm:$0xff]
  %v58 = vld [vmem:[%s1 + $0xe0] sm:$0xff]
  %v59 = vld [vmem:[%s1 + $0xe8] sm:$0xff]
  %v60 = vld [vmem:[%s1 + $0xf0] sm:$0xff]
  %v61 = vld [vmem:[%s1 + $0xf8] sm:$0xff]
  %v62 = vld [vmem:[%s1 + $0x100] sm:$0xff]
  %v63 = vld [vmem:[%s1 + $0x108] sm:$0xff]
  %v64 = vld [vmem:[%s1 + $0x110] sm:$0xff]
  %v65 = vld [vmem:[%s1 + $0x118] sm:$0xff]
  %v66 = vld [vmem:[%s1 + $0x120] sm:$0xff]
  %v67 = vld [vmem:[%s1 + $0x128] sm:$0xff]
  %v68 = vld [vmem:[%s1 + $0x130] sm:$0xff]
  %v69 = vld [vmem:[%s1 + $0x138] sm:$0xff]
  %v70 = vld [vmem:[%s1 + $0x140] sm:$0xff]
  %v71 = vld [vmem:[%s1 + $0x148] sm:$0xff]
  %v72 = vld [vmem:[%s1 + $0x150] sm:$0xff]
  %v73 = vld [vmem:[%s1 + $0x158] sm:$0xff]
  %v74 = vld [vmem:[%s1 + $0x160] sm:$0xff]
  %v75 = vld [vmem:[%s1 + $0x168] sm:$0xff]
  %v76 = vld [vmem:[%s1 + $0x170] sm:$0xff]
  %v77 = vld [vmem:[%s1 + $0x178] sm:$0xff]
  %v78 = vld [vmem:[%s1 + $0x180] sm:$0xff]
  %v79 = vld [vmem:[%s1 + $0x188] sm:$0xff]
  %v80 = vld [vmem:[%s2] sm:$0x1]
  %v82 = vlaneseq
  %v83 = vshrl.u32 %v82, 7
  %v84 = vsub.s32 0, %v83
  %v85 = vrot.slane %v80, %v84
  %vm87 = vcmask 130048
  %v89 = vsel %vm87, %v29, 0
  %91 = vmatprep.subr.mxu0 0.0
  %92 = vmatpush1.msra.mxu0 %v45
  %93 = vmatprep.subr.mxu0 0.0
  %94 = vmatpush1.msra.mxu0 %v44
  %95 = vmatprep.subr.mxu0 0.0
  %96 = vmatpush1.msra.mxu0 %v43
  %97 = vmatprep.subr.mxu0 0.0
  %98 = vmatpush1.msra.mxu0 %v42
  %99 = vmatprep.subr.mxu0 0.0
  %100 = vmatpush1.msra.mxu0 %v41
  %101 = vmatprep.subr.mxu0 0.0
  %102 = vmatpush1.msra.mxu0 %v40
  %103 = vmatprep.subr.mxu0 0.0
  %104 = vmatpush1.msra.mxu0 %v39
  %105 = vmatprep.subr.mxu0 0.0
  %106 = vmatpush1.msra.mxu0 %v38
  %107 = vmatprep.subr.mxu0 0.0
  %108 = vmatpush1.msra.mxu0 %v37
  %109 = vmatprep.subr.mxu0 0.0
  %110 = vmatpush1.msra.mxu0 %v36
  %111 = vmatprep.subr.mxu0 0.0
  %112 = vmatpush1.msra.mxu0 %v35
  %113 = vmatprep.subr.mxu0 0.0
  %114 = vmatpush1.msra.mxu0 %v34
  %115 = vmatprep.subr.mxu0 0.0
  %116 = vmatpush1.msra.mxu0 %v33
  %117 = vmatprep.subr.mxu0 0.0
  %118 = vmatpush1.msra.mxu0 %v32
  %119 = vmatprep.subr.mxu0 0.0
  %120 = vmatpush1.msra.mxu0 %v31
  %121 = vmatprep.subr.mxu0 0.0
  %122 = vmatpush1.msra.mxu0 %v30
  %123 = vmatprep.subr.mxu0 0.0
  %124 = vmatpush2.msra.mxu0 %v61
  %125 = vmatprep.subr.mxu0 0.0
  %126 = vmatpush2.msra.mxu0 %v60
  %127 = vmatprep.subr.mxu0 0.0
  %128 = vmatpush2.msra.mxu0 %v59
  %129 = vmatprep.subr.mxu0 0.0
  %130 = vmatpush2.msra.mxu0 %v58
  %131 = vmatprep.subr.mxu0 0.0
  %132 = vmatpush2.msra.mxu0 %v57
  %133 = vmatprep.subr.mxu0 0.0
  %134 = vmatpush2.msra.mxu0 %v56
  %135 = vmatprep.subr.mxu0 0.0
  %136 = vmatpush2.msra.mxu0 %v55
  %137 = vmatprep.subr.mxu0 0.0
  %138 = vmatpush2.msra.mxu0 %v54
  %139 = vmatprep.subr.mxu0 0.0
  %140 = vmatpush2.msra.mxu0 %v53
  %141 = vmatprep.subr.mxu0 0.0
  %142 = vmatpush2.msra.mxu0 %v52
  %143 = vmatprep.subr.mxu0 0.0
  %144 = vmatpush2.msra.mxu0 %v51
  %145 = vmatprep.subr.mxu0 0.0
  %146 = vmatpush2.msra.mxu0 %v50
  %147 = vmatprep.subr.mxu0 0.0
  %148 = vmatpush2.msra.mxu0 %v49
  %149 = vmatprep.subr.mxu0 0.0
  %150 = vmatpush2.msra.mxu0 %v48
  %151 = vmatprep.subr.mxu0 0.0
  %152 = vmatpush2.msra.mxu0 %v47
  %153 = vmatprep.subr.mxu0 0.0
  %154 = vmatpush2.msra.mxu0 %v46
  %155 = vmatprep.mubr.f32.mxu0 %v27
  %156 = vmatmul.mubr.f32.gmra.mxu0 %v26
  %v157 = vpop.f32.mrf.mxu0
  %v158 = vadd.f32 %v85, %v157
  %v159 = vpop.f32.mrf.mxu0
  %160 = vdwg.mxu0
  %161 = vmatprep.subr.mxu0 0.0
  %162 = vmatpush1.msra.mxu0 %v77
  %163 = vmatprep.subr.mxu0 0.0
  %164 = vmatpush1.msra.mxu0 %v76
  %165 = vmatprep.subr.mxu0 0.0
  %166 = vmatpush1.msra.mxu0 %v75
  %167 = vmatprep.subr.mxu0 0.0
  %168 = vmatpush1.msra.mxu0 %v74
  %169 = vmatprep.subr.mxu0 0.0
  %170 = vmatpush1.msra.mxu0 %v73
  %171 = vmatprep.subr.mxu0 0.0
  %172 = vmatpush1.msra.mxu0 %v72
  %173 = vmatprep.subr.mxu0 0.0
  %174 = vmatpush1.msra.mxu0 %v71
  %175 = vmatprep.subr.mxu0 0.0
  %176 = vmatpush1.msra.mxu0 %v70
  %177 = vmatprep.subr.mxu0 0.0
  %178 = vmatpush1.msra.mxu0 %v69
  %179 = vmatprep.subr.mxu0 0.0
  %180 = vmatpush1.msra.mxu0 %v68
  %181 = vmatprep.subr.mxu0 0.0
  %182 = vmatpush1.msra.mxu0 %v67
  %183 = vmatprep.subr.mxu0 0.0
  %184 = vmatpush1.msra.mxu0 %v66
  %185 = vmatprep.subr.mxu0 0.0
  %186 = vmatpush1.msra.mxu0 %v65
  %187 = vmatprep.subr.mxu0 0.0
  %188 = vmatpush1.msra.mxu0 %v64
  %189 = vmatprep.subr.mxu0 0.0
  %190 = vmatpush1.msra.mxu0 %v63
  %191 = vmatprep.subr.mxu0 0.0
  %192 = vmatpush1.msra.mxu0 %v62
  %193 = vmatprep.subr.mxu0 0.0
  %194 = vmatpush2.msra.mxu0 0.0
  %195 = vmatprep.subr.mxu0 0.0
  %196 = vmatpush2.msra.mxu0 0.0
  %197 = vmatprep.subr.mxu0 0.0
  %198 = vmatpush2.msra.mxu0 0.0
  %199 = vmatprep.subr.mxu0 0.0
  %200 = vmatpush2.msra.mxu0 0.0
  %201 = vmatprep.subr.mxu0 0.0
  %202 = vmatpush2.msra.mxu0 0.0
  %203 = vmatprep.subr.mxu0 0.0
  %204 = vmatpush2.msra.mxu0 0.0
  %205 = vmatprep.subr.mxu0 0.0
  %206 = vmatpush2.msra.mxu0 0.0
  %207 = vmatprep.subr.mxu0 0.0
  %208 = vmatpush2.msra.mxu0 0.0
  %209 = vmatprep.subr.mxu0 0.0
  %210 = vmatpush2.msra.mxu0 0.0
  %211 = vmatprep.subr.mxu0 0.0
  %212 = vmatpush2.msra.mxu0 0.0
  %213 = vmatprep.subr.mxu0 0.0
  %214 = vmatpush2.msra.mxu0 0.0
  %215 = vmatprep.subr.mxu0 0.0
  %216 = vmatpush2.msra.mxu0 0.0
  %217 = vmatprep.subr.mxu0 0.0
  %218 = vmatpush2.msra.mxu0 0.0
  %219 = vmatprep.subr.mxu0 0.0
  %220 = vmatpush2.msra.mxu0 0.0
  %221 = vmatprep.subr.mxu0 0.0
  %222 = vmatpush2.msra.mxu0 %v79
  %223 = vmatprep.subr.mxu0 0.0
  %224 = vmatpush2.msra.mxu0 %v78
  %225 = vmatprep.mubr.f32.mxu0 %v89
  %226 = vmatmul.mubr.f32.gmra.mxu0 %v28
  %v227 = vpop.f32.mrf.mxu0
  %v228 = vadd.f32 %v158, %v227
  %v229 = vpop.f32.mrf.mxu0
  %230 = vdwg.mxu0
  %v231 = vld [vmem:[%s3] sm:$0xff]
  %v232 = vld [vmem:[%s3 + $0x8] sm:$0xff]
  %v233 = vld [vmem:[%s3 + $0x10] sm:$0xff]
  %v234 = vld [vmem:[%s3 + $0x18] sm:$0xff]
  %v235 = vld [vmem:[%s3 + $0x20] sm:$0xff]
  %v236 = vld [vmem:[%s3 + $0x28] sm:$0xff]
  %v237 = vld [vmem:[%s3 + $0x30] sm:$0xff]
  %v238 = vld [vmem:[%s3 + $0x38] sm:$0xff]
  %v239 = vld [vmem:[%s3 + $0x40] sm:$0xff]
  %v240 = vld [vmem:[%s3 + $0x48] sm:$0xff]
  %v241 = vld [vmem:[%s3 + $0x50] sm:$0xff]
  %v242 = vld [vmem:[%s3 + $0x58] sm:$0xff]
  %v243 = vld [vmem:[%s3 + $0x60] sm:$0xff]
  %v244 = vld [vmem:[%s3 + $0x68] sm:$0xff]
  %v245 = vld [vmem:[%s3 + $0x70] sm:$0xff]
  %v246 = vld [vmem:[%s3 + $0x78] sm:$0xff]
  %v247 = vld [vmem:[%s4] sm:$0x1]
  %v249 = vlaneseq
  %v250 = vshrl.u32 %v249, 7
  %v251 = vsub.s32 0, %v250
  %v252 = vrot.slane %v247, %v251
  %254 = vmatprep.subr.mxu0 0.0
  %255 = vmatpush1.msra.mxu0 %v246
  %256 = vmatprep.subr.mxu0 0.0
  %257 = vmatpush1.msra.mxu0 %v245
  %258 = vmatprep.subr.mxu0 0.0
  %259 = vmatpush1.msra.mxu0 %v244
  %260 = vmatprep.subr.mxu0 0.0
  %261 = vmatpush1.msra.mxu0 %v243
  %262 = vmatprep.subr.mxu0 0.0
  %263 = vmatpush1.msra.mxu0 %v242
  %264 = vmatprep.subr.mxu0 0.0
  %265 = vmatpush1.msra.mxu0 %v241
  %266 = vmatprep.subr.mxu0 0.0
  %267 = vmatpush1.msra.mxu0 %v240
  %268 = vmatprep.subr.mxu0 0.0
  %269 = vmatpush1.msra.mxu0 %v239
  %270 = vmatprep.subr.mxu0 0.0
  %271 = vmatpush1.msra.mxu0 %v238
  %272 = vmatprep.subr.mxu0 0.0
  %273 = vmatpush1.msra.mxu0 %v237
  %274 = vmatprep.subr.mxu0 0.0
  %275 = vmatpush1.msra.mxu0 %v236
  %276 = vmatprep.subr.mxu0 0.0
  %277 = vmatpush1.msra.mxu0 %v235
  %278 = vmatprep.subr.mxu0 0.0
  %279 = vmatpush1.msra.mxu0 %v234
  %280 = vmatprep.subr.mxu0 0.0
  %281 = vmatpush1.msra.mxu0 %v233
  %282 = vmatprep.subr.mxu0 0.0
  %283 = vmatpush1.msra.mxu0 %v232
  %284 = vmatprep.subr.mxu0 0.0
  %285 = vmatpush1.msra.mxu0 %v231
  %286 = vmatprep.subr.mxu0 0.0
  %287 = vmatpush2.msra.mxu0 0.0
  %288 = vmatprep.subr.mxu0 0.0
  %289 = vmatpush2.msra.mxu0 0.0
  %290 = vmatprep.subr.mxu0 0.0
  %291 = vmatpush2.msra.mxu0 0.0
  %292 = vmatprep.subr.mxu0 0.0
  %293 = vmatpush2.msra.mxu0 0.0
  %294 = vmatprep.subr.mxu0 0.0
  %295 = vmatpush2.msra.mxu0 0.0
  %296 = vmatprep.subr.mxu0 0.0
  %297 = vmatpush2.msra.mxu0 0.0
  %298 = vmatprep.subr.mxu0 0.0
  %299 = vmatpush2.msra.mxu0 0.0
  %300 = vmatprep.subr.mxu0 0.0
  %301 = vmatpush2.msra.mxu0 0.0
  %302 = vmatprep.subr.mxu0 0.0
  %303 = vmatpush2.msra.mxu0 0.0
  %304 = vmatprep.subr.mxu0 0.0
  %305 = vmatpush2.msra.mxu0 0.0
  %306 = vmatprep.subr.mxu0 0.0
  %307 = vmatpush2.msra.mxu0 0.0
  %308 = vmatprep.subr.mxu0 0.0
  %309 = vmatpush2.msra.mxu0 0.0
  %310 = vmatprep.subr.mxu0 0.0
  %311 = vmatpush2.msra.mxu0 0.0
  %312 = vmatprep.subr.mxu0 0.0
  %313 = vmatpush2.msra.mxu0 0.0
  %314 = vmatprep.subr.mxu0 0.0
  %315 = vmatpush2.msra.mxu0 0.0
  %316 = vmatprep.subr.mxu0 0.0
  %317 = vmatpush2.msra.mxu0 0.0
  %318 = vmatprep.mubr.f32.mxu0 0.0
  %319 = vmatmul.mubr.f32.gmra.mxu0 %v228
  %v320 = vpop.f32.mrf.mxu0
  %v321 = vadd.f32 %v252, %v320
  %v322 = vpop.f32.mrf.mxu0
  %323 = vdwg.mxu0
  %v324 = vld [vmem:[%s5] sm:$0xff]
  %v325 = vld [vmem:[%s5 + $0x8] sm:$0xff]
  %v326 = vld [vmem:[%s5 + $0x10] sm:$0xff]
  %v327 = vld [vmem:[%s5 + $0x18] sm:$0xff]
  %v328 = vld [vmem:[%s5 + $0x20] sm:$0xff]
  %v329 = vld [vmem:[%s5 + $0x28] sm:$0xff]
  %v330 = vld [vmem:[%s5 + $0x30] sm:$0xff]
  %v331 = vld [vmem:[%s5 + $0x38] sm:$0xff]
  %v332 = vld [vmem:[%s5 + $0x40] sm:$0xff]
  %v333 = vld [vmem:[%s5 + $0x48] sm:$0xff]
  %v334 = vld [vmem:[%s5 + $0x50] sm:$0xff]
  %v335 = vld [vmem:[%s5 + $0x58] sm:$0xff]
  %v336 = vld [vmem:[%s5 + $0x60] sm:$0xff]
  %v337 = vld [vmem:[%s5 + $0x68] sm:$0xff]
  %v338 = vld [vmem:[%s5 + $0x70] sm:$0xff]
  %v339 = vld [vmem:[%s5 + $0x78] sm:$0xff]
  %v340 = vld [vmem:[%s6] sm:$0x1]
  %v342 = vlaneseq
  %v343 = vshrl.u32 %v342, 7
  %v344 = vsub.s32 0, %v343
  %v345 = vrot.slane %v340, %v344
  %347 = vmatprep.subr.mxu0 0.0
  %348 = vmatpush1.msra.mxu0 %v339
  %349 = vmatprep.subr.mxu0 0.0
  %350 = vmatpush1.msra.mxu0 %v338
  %351 = vmatprep.subr.mxu0 0.0
  %352 = vmatpush1.msra.mxu0 %v337
  %353 = vmatprep.subr.mxu0 0.0
  %354 = vmatpush1.msra.mxu0 %v336
  %355 = vmatprep.subr.mxu0 0.0
  %356 = vmatpush1.msra.mxu0 %v335
  %357 = vmatprep.subr.mxu0 0.0
  %358 = vmatpush1.msra.mxu0 %v334
  %359 = vmatprep.subr.mxu0 0.0
  %360 = vmatpush1.msra.mxu0 %v333
  %361 = vmatprep.subr.mxu0 0.0
  %362 = vmatpush1.msra.mxu0 %v332
  %363 = vmatprep.subr.mxu0 0.0
  %364 = vmatpush1.msra.mxu0 %v331
  %365 = vmatprep.subr.mxu0 0.0
  %366 = vmatpush1.msra.mxu0 %v330
  %367 = vmatprep.subr.mxu0 0.0
  %368 = vmatpush1.msra.mxu0 %v329
  %369 = vmatprep.subr.mxu0 0.0
  %370 = vmatpush1.msra.mxu0 %v328
  %371 = vmatprep.subr.mxu0 0.0
  %372 = vmatpush1.msra.mxu0 %v327
  %373 = vmatprep.subr.mxu0 0.0
  %374 = vmatpush1.msra.mxu0 %v326
  %375 = vmatprep.subr.mxu0 0.0
  %376 = vmatpush1.msra.mxu0 %v325
  %377 = vmatprep.subr.mxu0 0.0
  %378 = vmatpush1.msra.mxu0 %v324
  %379 = vmatprep.subr.mxu0 0.0
  %380 = vmatpush2.msra.mxu0 0.0
  %381 = vmatprep.subr.mxu0 0.0
  %382 = vmatpush2.msra.mxu0 0.0
  %383 = vmatprep.subr.mxu0 0.0
  %384 = vmatpush2.msra.mxu0 0.0
  %385 = vmatprep.subr.mxu0 0.0
  %386 = vmatpush2.msra.mxu0 0.0
  %387 = vmatprep.subr.mxu0 0.0
  %388 = vmatpush2.msra.mxu0 0.0
  %389 = vmatprep.subr.mxu0 0.0
  %390 = vmatpush2.msra.mxu0 0.0
  %391 = vmatprep.subr.mxu0 0.0
  %392 = vmatpush2.msra.mxu0 0.0
  %393 = vmatprep.subr.mxu0 0.0
  %394 = vmatpush2.msra.mxu0 0.0
  %395 = vmatprep.subr.mxu0 0.0
  %396 = vmatpush2.msra.mxu0 0.0
  %397 = vmatprep.subr.mxu0 0.0
  %398 = vmatpush2.msra.mxu0 0.0
  %399 = vmatprep.subr.mxu0 0.0
  %400 = vmatpush2.msra.mxu0 0.0
  %401 = vmatprep.subr.mxu0 0.0
  %402 = vmatpush2.msra.mxu0 0.0
  %403 = vmatprep.subr.mxu0 0.0
  %404 = vmatpush2.msra.mxu0 0.0
  %405 = vmatprep.subr.mxu0 0.0
  %406 = vmatpush2.msra.mxu0 0.0
  %407 = vmatprep.subr.mxu0 0.0
  %408 = vmatpush2.msra.mxu0 0.0
  %409 = vmatprep.subr.mxu0 0.0
  %410 = vmatpush2.msra.mxu0 0.0
  %411 = vmatprep.mubr.f32.mxu0 0.0
  %412 = vmatmul.mubr.f32.gmra.mxu0 %v321
  %v413 = vpop.f32.mrf.mxu0
  %v414 = vadd.f32 %v345, %v413
  %v415 = vpop.f32.mrf.mxu0
  %416 = vdwg.mxu0
  %417 = vst [vmem:[%s7] sm:$0xff] %v414
  // Predicated region
  $region30: #{net_forward.5} parent=0 // pred_check
    _
  $region31: #{net_forward.5} parent=0 // pred_check_branch
    %419 = sbr.rel (0) target = $region33
  $region32: #{net_forward.5} parent=0 // pred_region
    _
  $region33: #{net_forward.5} parent=0 // pred_fallthru
    _
  // Predicated region
  $region34: #{net_forward.5} parent=0 // pred_check
    _
  $region35: #{net_forward.5} parent=0 // pred_check_branch
    %421 = sbr.rel (0) target = $region37
  $region36: #{net_forward.5} parent=0 // pred_region
    _
  $region37: #{net_forward.5} parent=0 // pred_fallthru
    _

</llo_original>
